<compile_context>
chip_gen: v7x
topology: tpu7x:2x2x1
jax: 0.10.0
libtpu: 0.0.40
codegen_flags: <defaults>
</compile_context>

<pallas_src>
import functools

import jax
import jax.numpy as jnp
from jax.experimental import pallas as pl
from jax.experimental.pallas import tpu as pltpu

LANE = 128


def _round_up(n, m):
    return (n + m - 1) // m * m


def _pad_last(a, to):
    pad = to - a.shape[-1]
    if pad:
        a = jnp.pad(a, [(0, 0)] * (a.ndim - 1) + [(0, pad)])
    return a


def _pad2(w, rows, cols):
    return jnp.pad(w, ((0, rows - w.shape[0]), (0, cols - w.shape[1])))


# ------------------------------ fused ASPP kernel ------------------------------

def _aspp_fused_kernel(x_ref, w0_ref, s0_ref, b0_ref,
                       poolw_ref, pools_ref, poolb_ref,
                       dww_ref, dws_ref, dwb_ref,
                       pww_ref, pws_ref, pwb_ref,
                       fw_ref, fs_ref, fb_ref,
                       o_ref, dw_acc, *, H, W, Cp, Pp, dilations):
    HW = H * W
    xf = x_ref[0].reshape(HW, Cp)                       # (HW, Cp), this batch element

    # --- pooling branch: GAP -> 1x1 conv + BN + ReLU.  F.interpolate of a 1x1 map with
    #     align_corners=True is an exact broadcast, so its fuse contribution is one row. ---
    pooled = jnp.mean(xf, axis=0, keepdims=True)        # (1, Cp)  (true H*W divisor, no row pad)
    pool = jnp.dot(pooled, poolw_ref[...], preferred_element_type=jnp.float32)
    pool = jnp.maximum(pool * pools_ref[...] + poolb_ref[...], 0.0)          # (1, Pp)
    acc = jnp.dot(pool, fw_ref[0], preferred_element_type=jnp.float32)       # (1, Pp), bcast later

    # --- aspp0: 1x1 conv + BN + ReLU ---
    x0 = jnp.dot(xf, w0_ref[...], preferred_element_type=jnp.float32)        # (HW, Pp)
    x0 = jnp.maximum(x0 * s0_ref[...] + b0_ref[...], 0.0)
    acc = acc + jnp.dot(x0, fw_ref[1], preferred_element_type=jnp.float32)   # (HW, Pp)

    # --- aspp1..3: depthwise dilated 3x3 + BN + ReLU, then pointwise 1x1 + BN + ReLU ---
    dww = dww_ref[...]        # (3, 9, Cp)
    dws = dws_ref[...]        # (3, 1, Cp)
    dwb = dwb_ref[...]
    pws = pws_ref[...]        # (3, 1, Pp)
    pwb = pwb_ref[...]
    for br, d in enumerate(dilations):
        dw_acc[...] = jnp.zeros_like(dw_acc)
        for t in range(9):
            dy, dx = divmod(t, 3)
            oy, ox = (dy - 1) * d, (dx - 1) * d
            y0, y1 = max(0, -oy), min(H, H - oy)
            xl, xh = max(0, -ox), min(W, W - ox)
            if y1 <= y0 or xh <= xl:
                continue      # this tap only sees zero padding at this dilation
            wtap = dww[br:br + 1, t:t + 1, :]           # (1, 1, Cp)
            dw_acc[y0:y1, xl:xh, :] += (
                x_ref[0, y0 + oy:y1 + oy, xl + ox:xh + ox, :] * wtap)
        dwr = jnp.maximum(dw_acc[...].reshape(HW, Cp) * dws[br] + dwb[br], 0.0)
        xi = jnp.dot(dwr, pww_ref[br], preferred_element_type=jnp.float32)   # (HW, Pp)
        xi = jnp.maximum(xi * pws[br] + pwb[br], 0.0)
        acc = acc + jnp.dot(xi, fw_ref[2 + br], preferred_element_type=jnp.float32)

    out = jnp.maximum(acc * fs_ref[...] + fb_ref[...], 0.0)                  # fuse BN + ReLU
    o_ref[...] = out[None].astype(o_ref.dtype)


# ------------------------------ wrapper ------------------------------

def aspp_block_forward(x_nchw, params, output_stride=8):
    assert output_stride in (8, 16)
    dilations = (12, 24, 36) if output_stride == 8 else (6, 12, 18)

    x = jnp.transpose(x_nchw, (0, 2, 3, 1)).astype(jnp.float32)   # NCHW -> NHWC
    N, H, W, Cin = x.shape
    planes = params['aspp0']['w'].shape[1]
    Cp = _round_up(Cin, LANE)
    Pp = _round_up(planes, LANE)
    HW = H * W

    if Cp != Cin:
        x = jnp.pad(x, ((0, 0), (0, 0), (0, 0), (0, Cp - Cin)))

    def pack_1x1(p):
        return (_pad2(p['w'], Cp, Pp),
                _pad_last(p['scale'][None, :], Pp),
                _pad_last(p['shift'][None, :], Pp))

    w0, s0, b0 = pack_1x1(params['aspp0'])
    poolw, pools, poolb = pack_1x1(params['pool'])

    branches = (params['aspp1'], params['aspp2'], params['aspp3'])
    dww = jnp.stack([_pad_last(p['dw']['w'].reshape(9, Cin), Cp) for p in branches])   # (3,9,Cp)
    dws = jnp.stack([_pad_last(p['dw']['scale'][None, :], Cp) for p in branches])      # (3,1,Cp)
    dwb = jnp.stack([_pad_last(p['dw']['shift'][None, :], Cp) for p in branches])
    pww = jnp.stack([_pad2(p['pw']['w'], Cp, Pp) for p in branches])                   # (3,Cp,Pp)
    pws = jnp.stack([_pad_last(p['pw']['scale'][None, :], Pp) for p in branches])      # (3,1,Pp)
    pwb = jnp.stack([_pad_last(p['pw']['shift'][None, :], Pp) for p in branches])

    # fuse conv weight split by concat order (pool, x0, x1, x2, x3) -> 5 lane-padded blocks
    fw_full = params['fuse']['w']                                                      # (5*planes, planes)
    fw = jnp.stack([_pad2(fw_full[i * planes:(i + 1) * planes], Pp, Pp)
                    for i in range(5)])                                                # (5,Pp,Pp)
    fs = _pad_last(params['fuse']['scale'][None, :], Pp)
    fb = _pad_last(params['fuse']['shift'][None, :], Pp)

    kernel = functools.partial(_aspp_fused_kernel, H=H, W=W, Cp=Cp, Pp=Pp,
                               dilations=dilations)
    out = pl.pallas_call(
        kernel,
        out_shape=jax.ShapeDtypeStruct((N, HW, Pp), jnp.float32),
        grid=(N,),
        in_specs=[
            pl.BlockSpec((1, H, W, Cp), lambda b: (b, 0, 0, 0)),   # x (one batch element)
            pl.BlockSpec((Cp, Pp), lambda b: (0, 0)),              # aspp0 w
            pl.BlockSpec((1, Pp), lambda b: (0, 0)),
            pl.BlockSpec((1, Pp), lambda b: (0, 0)),
            pl.BlockSpec((Cp, Pp), lambda b: (0, 0)),              # pool conv w
            pl.BlockSpec((1, Pp), lambda b: (0, 0)),
            pl.BlockSpec((1, Pp), lambda b: (0, 0)),
            pl.BlockSpec((3, 9, Cp), lambda b: (0, 0, 0)),         # depthwise weights
            pl.BlockSpec((3, 1, Cp), lambda b: (0, 0, 0)),
            pl.BlockSpec((3, 1, Cp), lambda b: (0, 0, 0)),
            pl.BlockSpec((3, Cp, Pp), lambda b: (0, 0, 0)),        # pointwise weights
            pl.BlockSpec((3, 1, Pp), lambda b: (0, 0, 0)),
            pl.BlockSpec((3, 1, Pp), lambda b: (0, 0, 0)),
            pl.BlockSpec((5, Pp, Pp), lambda b: (0, 0, 0)),        # fuse conv w (split)
            pl.BlockSpec((1, Pp), lambda b: (0, 0)),
            pl.BlockSpec((1, Pp), lambda b: (0, 0)),
        ],
        out_specs=pl.BlockSpec((1, HW, Pp), lambda b: (b, 0, 0)),
        scratch_shapes=[pltpu.VMEM((H, W, Cp), jnp.float32)],      # depthwise accumulator
        compiler_params=pltpu.CompilerParams(dimension_semantics=("parallel",)),
    )(x, w0, s0, b0, poolw, pools, poolb, dww, dws, dwb, pww, pws, pwb, fw, fs, fb)

    out = out[:, :, :planes].reshape(N, H, W, planes)
    return jnp.transpose(out, (0, 3, 1, 2))                        # NHWC -> NCHW


# ------------------------------ parameter init (eval-mode BN folded) ------------------------------

class KeyGen:
    def __init__(self, seed=0):
        self._key = jax.random.PRNGKey(seed)

    def __call__(self):
        self._key, sub = jax.random.split(self._key)
        return sub


def _init_bn(kg, c):
    gamma = 1.0 + 0.05 * jax.random.normal(kg(), (c,), jnp.float32)
    beta = 0.05 * jax.random.normal(kg(), (c,), jnp.float32)
    mean = 0.05 * jax.random.normal(kg(), (c,), jnp.float32)
    var = 1.0 + 0.05 * jax.random.uniform(kg(), (c,), jnp.float32)
    scale = gamma * jax.lax.rsqrt(var + 1e-5)
    shift = beta - mean * scale
    return scale, shift


def _init_conv1x1bn(kg, cin, cout):
    w = 0.1 * jax.random.normal(kg(), (cin, cout), jnp.float32)
    s, b = _init_bn(kg, cout)
    return {'w': w, 'scale': s, 'shift': b}


def _init_dwbn(kg, c):
    # depthwise weight stored as (3, 3, C): w[ky, kx, c]  (== torch (C,1,3,3) transposed)
    w = 0.1 * jax.random.normal(kg(), (3, 3, c), jnp.float32)
    s, b = _init_bn(kg, c)
    return {'w': w, 'scale': s, 'shift': b}


def init_aspp_params(kg, inplanes, planes):
    return {
        'aspp0': _init_conv1x1bn(kg, inplanes, planes),
        'aspp1': {'dw': _init_dwbn(kg, inplanes), 'pw': _init_conv1x1bn(kg, inplanes, planes)},
        'aspp2': {'dw': _init_dwbn(kg, inplanes), 'pw': _init_conv1x1bn(kg, inplanes, planes)},
        'aspp3': {'dw': _init_dwbn(kg, inplanes), 'pw': _init_conv1x1bn(kg, inplanes, planes)},
        'pool': _init_conv1x1bn(kg, inplanes, planes),
        'fuse': _init_conv1x1bn(kg, 5 * planes, planes),
    }


# ------------------------------ independent reference (lax convs) ------------------------------

def _reference_forward(x_nchw, params, output_stride=8):
    dil = (12, 24, 36) if output_stride == 8 else (6, 12, 18)
    x = x_nchw.astype(jnp.float32)
    P = jax.lax.Precision.HIGHEST

    def conv1x1(v, p):
        w = jnp.transpose(p['w'])[:, :, None, None]                    # (Cout, Cin, 1, 1)
        y = jax.lax.conv_general_dilated(v, w, (1, 1), 'VALID',
                                         dimension_numbers=('NCHW', 'OIHW', 'NCHW'),
                                         precision=P)
        y = y * p['scale'][None, :, None, None] + p['shift'][None, :, None, None]
        return jnp.maximum(y, 0.0)

    def dwconv(v, p, d):
        C = v.shape[1]
        w = jnp.transpose(p['w'], (2, 0, 1))[:, None, :, :]            # (C, 1, 3, 3)
        y = jax.lax.conv_general_dilated(v, w, (1, 1), [(d, d), (d, d)],
                                         rhs_dilation=(d, d),
                                         dimension_numbers=('NCHW', 'OIHW', 'NCHW'),
                                         feature_group_count=C, precision=P)
        y = y * p['scale'][None, :, None, None] + p['shift'][None, :, None, None]
        return jnp.maximum(y, 0.0)

    pool = jnp.mean(x, axis=(2, 3), keepdims=True)
    pool = conv1x1(pool, params['pool'])
    pool = jnp.broadcast_to(pool, (x.shape[0], pool.shape[1], x.shape[2], x.shape[3]))
    x0 = conv1x1(x, params['aspp0'])
    xs = [conv1x1(dwconv(x, p['dw'], d), p['pw'])
          for p, d in zip((params['aspp1'], params['aspp2'], params['aspp3']), dil)]
    cat = jnp.concatenate([pool, x0] + xs, axis=1)
    return conv1x1(cat, params['fuse'])


# ------------------------------ main ------------------------------

if __name__ == "__main__":
    kg = KeyGen(0)
    inplanes, planes = 128, 128     # small stand-ins for (2048, 256); multiples of 128 keep lanes dense
    N, H, W = 2, 16, 16
    output_stride = 8
    params = init_aspp_params(kg, inplanes, planes)
    x = jax.random.normal(jax.random.PRNGKey(0), (N, inplanes, H, W), jnp.float32)

    fwd = jax.jit(functools.partial(aspp_block_forward, output_stride=output_stride))
    out = jax.block_until_ready(fwd(x, params))
    assert out.shape == (N, planes, H, W), out.shape
    assert bool(jnp.all(jnp.isfinite(out)))

    ref = jax.block_until_ready(_reference_forward(x, params, output_stride))
    err = float(jnp.max(jnp.abs(out - ref)))
    assert err < 2e-3, f"max abs error vs reference: {err}"
    print("KERNEL_OK")
</pallas_src>

<mosaic_0001>
module attributes {stable_mosaic.version = 11 : i64} {
  func.func @_aspp_fused_kernel(%arg0: i32, %arg1: memref<1x16x16x128xf32, #tpu.memory_space<vmem>>, %arg2: memref<128x128xf32, #tpu.memory_space<vmem>>, %arg3: memref<1x128xf32, #tpu.memory_space<vmem>>, %arg4: memref<1x128xf32, #tpu.memory_space<vmem>>, %arg5: memref<128x128xf32, #tpu.memory_space<vmem>>, %arg6: memref<1x128xf32, #tpu.memory_space<vmem>>, %arg7: memref<1x128xf32, #tpu.memory_space<vmem>>, %arg8: memref<3x9x128xf32, #tpu.memory_space<vmem>>, %arg9: memref<3x1x128xf32, #tpu.memory_space<vmem>>, %arg10: memref<3x1x128xf32, #tpu.memory_space<vmem>>, %arg11: memref<3x128x128xf32, #tpu.memory_space<vmem>>, %arg12: memref<3x1x128xf32, #tpu.memory_space<vmem>>, %arg13: memref<3x1x128xf32, #tpu.memory_space<vmem>>, %arg14: memref<5x128x128xf32, #tpu.memory_space<vmem>>, %arg15: memref<1x128xf32, #tpu.memory_space<vmem>>, %arg16: memref<1x128xf32, #tpu.memory_space<vmem>>, %arg17: memref<1x256x128xf32, #tpu.memory_space<vmem>>, %arg18: memref<16x16x128xf32, #tpu.memory_space<vmem>>) attributes {dimension_semantics = [#tpu.dimension_semantics<parallel>], iteration_bounds = array<i64: 2>, scalar_prefetch = 0 : i64, scratch_operands = 1 : i64, tpu.core_type = #tpu.core_type<tc>, window_params = [{transform_indices = @transform_0, window_bounds = array<i64: 1, 16, 16, 128>}, {pipeline_mode = #tpu.pipeline_mode<synchronous>, transform_indices = @transform_1, window_bounds = array<i64: 128, 128>}, {pipeline_mode = #tpu.pipeline_mode<synchronous>, transform_indices = @transform_2, window_bounds = array<i64: 1, 128>}, {pipeline_mode = #tpu.pipeline_mode<synchronous>, transform_indices = @transform_3, window_bounds = array<i64: 1, 128>}, {pipeline_mode = #tpu.pipeline_mode<synchronous>, transform_indices = @transform_4, window_bounds = array<i64: 128, 128>}, {pipeline_mode = #tpu.pipeline_mode<synchronous>, transform_indices = @transform_5, window_bounds = array<i64: 1, 128>}, {pipeline_mode = #tpu.pipeline_mode<synchronous>, transform_indices = @transform_6, window_bounds = array<i64: 1, 128>}, {pipeline_mode = #tpu.pipeline_mode<synchronous>, transform_indices = @transform_7, window_bounds = array<i64: 3, 9, 128>}, {pipeline_mode = #tpu.pipeline_mode<synchronous>, transform_indices = @transform_8, window_bounds = array<i64: 3, 1, 128>}, {pipeline_mode = #tpu.pipeline_mode<synchronous>, transform_indices = @transform_9, window_bounds = array<i64: 3, 1, 128>}, {pipeline_mode = #tpu.pipeline_mode<synchronous>, transform_indices = @transform_10, window_bounds = array<i64: 3, 128, 128>}, {pipeline_mode = #tpu.pipeline_mode<synchronous>, transform_indices = @transform_11, window_bounds = array<i64: 3, 1, 128>}, {pipeline_mode = #tpu.pipeline_mode<synchronous>, transform_indices = @transform_12, window_bounds = array<i64: 3, 1, 128>}, {pipeline_mode = #tpu.pipeline_mode<synchronous>, transform_indices = @transform_13, window_bounds = array<i64: 5, 128, 128>}, {pipeline_mode = #tpu.pipeline_mode<synchronous>, transform_indices = @transform_14, window_bounds = array<i64: 1, 128>}, {pipeline_mode = #tpu.pipeline_mode<synchronous>, transform_indices = @transform_15, window_bounds = array<i64: 1, 128>}, {transform_indices = @transform_16, window_bounds = array<i64: 1, 256, 128>}]} {
    %c0 = arith.constant 0 : index
    %c0_0 = arith.constant 0 : index
    %c0_1 = arith.constant 0 : index
    %c0_2 = arith.constant 0 : index
    %0 = vector.load %arg1[%c0, %c0_0, %c0_1, %c0_2] : memref<1x16x16x128xf32, #tpu.memory_space<vmem>>, vector<1x16x16x128xf32>
    %1 = vector.shape_cast %0 : vector<1x16x16x128xf32> to vector<16x16x128xf32>
    %2 = vector.shape_cast %1 : vector<16x16x128xf32> to vector<256x128xf32>
    %cst = arith.constant dense<0.000000e+00> : vector<128xf32>
    %3 = vector.multi_reduction <add>, %2, %cst [0] : vector<256x128xf32> to vector<128xf32>
    %4 = vector.shape_cast %3 : vector<128xf32> to vector<1x128xf32>
    %cst_3 = arith.constant 2.560000e+02 : f32
    %5 = vector.broadcast %cst_3 : f32 to vector<1x128xf32>
    %6 = arith.divf %4, %5 : vector<1x128xf32>
    %c0_4 = arith.constant 0 : index
    %c0_5 = arith.constant 0 : index
    %7 = vector.load %arg5[%c0_4, %c0_5] : memref<128x128xf32, #tpu.memory_space<vmem>>, vector<128x128xf32>
    %cst_6 = arith.constant dense<0.000000e+00> : vector<1x128xf32>
    %8 = tpu.matmul %6, %7, %cst_6 {dimension_numbers = #tpu.dot_dimension_numbers<[1], [0], [0], [1], [0, 0, 1, 1], [], []>} : vector<1x128xf32>, vector<128x128xf32>, vector<1x128xf32> -> vector<1x128xf32>
    %c0_7 = arith.constant 0 : index
    %c0_8 = arith.constant 0 : index
    %9 = vector.load %arg6[%c0_7, %c0_8] : memref<1x128xf32, #tpu.memory_space<vmem>>, vector<1x128xf32>
    %10 = arith.mulf %8, %9 : vector<1x128xf32>
    %c0_9 = arith.constant 0 : index
    %c0_10 = arith.constant 0 : index
    %11 = vector.load %arg7[%c0_9, %c0_10] : memref<1x128xf32, #tpu.memory_space<vmem>>, vector<1x128xf32>
    %12 = arith.addf %10, %11 : vector<1x128xf32>
    %cst_11 = arith.constant 0.000000e+00 : f32
    %13 = vector.broadcast %cst_11 : f32 to vector<1x128xf32>
    %14 = arith.maximumf %12, %13 : vector<1x128xf32>
    %c0_12 = arith.constant 0 : index
    %c0_13 = arith.constant 0 : index
    %c0_14 = arith.constant 0 : index
    %15 = vector.load %arg14[%c0_12, %c0_13, %c0_14] : memref<5x128x128xf32, #tpu.memory_space<vmem>>, vector<1x128x128xf32>
    %16 = vector.shape_cast %15 : vector<1x128x128xf32> to vector<128x128xf32>
    %cst_15 = arith.constant dense<0.000000e+00> : vector<1x128xf32>
    %17 = tpu.matmul %14, %16, %cst_15 {dimension_numbers = #tpu.dot_dimension_numbers<[1], [0], [0], [1], [0, 0, 1, 1], [], []>} : vector<1x128xf32>, vector<128x128xf32>, vector<1x128xf32> -> vector<1x128xf32>
    %c0_16 = arith.constant 0 : index
    %c0_17 = arith.constant 0 : index
    %18 = vector.load %arg2[%c0_16, %c0_17] : memref<128x128xf32, #tpu.memory_space<vmem>>, vector<128x128xf32>
    %cst_18 = arith.constant dense<0.000000e+00> : vector<256x128xf32>
    %19 = tpu.matmul %2, %18, %cst_18 {dimension_numbers = #tpu.dot_dimension_numbers<[1], [0], [0], [1], [0, 0, 1, 1], [], []>} : vector<256x128xf32>, vector<128x128xf32>, vector<256x128xf32> -> vector<256x128xf32>
    %c0_19 = arith.constant 0 : index
    %c0_20 = arith.constant 0 : index
    %20 = vector.load %arg3[%c0_19, %c0_20] : memref<1x128xf32, #tpu.memory_space<vmem>>, vector<1x128xf32>
    %21 = vector.broadcast %20 : vector<1x128xf32> to vector<256x128xf32>
    %22 = arith.mulf %19, %21 : vector<256x128xf32>
    %c0_21 = arith.constant 0 : index
    %c0_22 = arith.constant 0 : index
    %23 = vector.load %arg4[%c0_21, %c0_22] : memref<1x128xf32, #tpu.memory_space<vmem>>, vector<1x128xf32>
    %24 = vector.broadcast %23 : vector<1x128xf32> to vector<256x128xf32>
    %25 = arith.addf %22, %24 : vector<256x128xf32>
    %cst_23 = arith.constant 0.000000e+00 : f32
    %26 = vector.broadcast %cst_23 : f32 to vector<256x128xf32>
    %27 = arith.maximumf %25, %26 : vector<256x128xf32>
    %c1 = arith.constant 1 : index
    %c0_24 = arith.constant 0 : index
    %c0_25 = arith.constant 0 : index
    %28 = vector.load %arg14[%c1, %c0_24, %c0_25] : memref<5x128x128xf32, #tpu.memory_space<vmem>>, vector<1x128x128xf32>
    %29 = vector.shape_cast %28 : vector<1x128x128xf32> to vector<128x128xf32>
    %cst_26 = arith.constant dense<0.000000e+00> : vector<256x128xf32>
    %30 = tpu.matmul %27, %29, %cst_26 {dimension_numbers = #tpu.dot_dimension_numbers<[1], [0], [0], [1], [0, 0, 1, 1], [], []>} : vector<256x128xf32>, vector<128x128xf32>, vector<256x128xf32> -> vector<256x128xf32>
    %31 = vector.broadcast %17 : vector<1x128xf32> to vector<256x128xf32>
    %32 = arith.addf %31, %30 : vector<256x128xf32>
    %c0_27 = arith.constant 0 : index
    %c0_28 = arith.constant 0 : index
    %c0_29 = arith.constant 0 : index
    %33 = vector.load %arg8[%c0_27, %c0_28, %c0_29] : memref<3x9x128xf32, #tpu.memory_space<vmem>>, vector<3x9x128xf32>
    %c0_30 = arith.constant 0 : index
    %c0_31 = arith.constant 0 : index
    %c0_32 = arith.constant 0 : index
    %34 = vector.load %arg9[%c0_30, %c0_31, %c0_32] : memref<3x1x128xf32, #tpu.memory_space<vmem>>, vector<3x1x128xf32>
    %c0_33 = arith.constant 0 : index
    %c0_34 = arith.constant 0 : index
    %c0_35 = arith.constant 0 : index
    %35 = vector.load %arg10[%c0_33, %c0_34, %c0_35] : memref<3x1x128xf32, #tpu.memory_space<vmem>>, vector<3x1x128xf32>
    %c0_36 = arith.constant 0 : index
    %c0_37 = arith.constant 0 : index
    %c0_38 = arith.constant 0 : index
    %36 = vector.load %arg12[%c0_36, %c0_37, %c0_38] : memref<3x1x128xf32, #tpu.memory_space<vmem>>, vector<3x1x128xf32>
    %c0_39 = arith.constant 0 : index
    %c0_40 = arith.constant 0 : index
    %c0_41 = arith.constant 0 : index
    %37 = vector.load %arg13[%c0_39, %c0_40, %c0_41] : memref<3x1x128xf32, #tpu.memory_space<vmem>>, vector<3x1x128xf32>
    %cst_42 = arith.constant 0.000000e+00 : f32
    %38 = vector.broadcast %cst_42 : f32 to vector<16x16x128xf32>
    %c0_43 = arith.constant 0 : index
    %c0_44 = arith.constant 0 : index
    %c0_45 = arith.constant 0 : index
    %39 = vector.load %arg18[%c0_43, %c0_44, %c0_45] : memref<16x16x128xf32, #tpu.memory_space<vmem>>, vector<16x16x128xf32>
    tpu.vector_store %arg18[%c0_43, %c0_44, %c0_45], %38 {strides = array<i32>} : memref<16x16x128xf32, #tpu.memory_space<vmem>>, vector<16x16x128xf32>,
    %40 = vector.extract_strided_slice %33 {offsets = [0, 0, 0], sizes = [1, 1, 128], strides = [1, 1, 1]} : vector<3x9x128xf32> to vector<1x1x128xf32>
    %c12 = arith.constant 12 : index
    %c12_46 = arith.constant 12 : index
    %c0_47 = arith.constant 0 : index
    %41 = vector.load %arg18[%c12, %c12_46, %c0_47] : memref<16x16x128xf32, #tpu.memory_space<vmem>>, vector<4x4x128xf32>
    %c0_48 = arith.constant 0 : index
    %c0_49 = arith.constant 0 : index
    %c0_50 = arith.constant 0 : index
    %c0_51 = arith.constant 0 : index
    %42 = vector.load %arg1[%c0_48, %c0_49, %c0_50, %c0_51] : memref<1x16x16x128xf32, #tpu.memory_space<vmem>>, vector<1x4x4x128xf32>
    %43 = vector.shape_cast %42 : vector<1x4x4x128xf32> to vector<4x4x128xf32>
    %44 = vector.broadcast %40 : vector<1x1x128xf32> to vector<4x4x128xf32>
    %45 = arith.mulf %43, %44 : vector<4x4x128xf32>
    %46 = arith.addf %41, %45 : vector<4x4x128xf32>
    %c12_52 = arith.constant 12 : index
    %c12_53 = arith.constant 12 : index
    %c0_54 = arith.constant 0 : index
    %47 = vector.load %arg18[%c12_52, %c12_53, %c0_54] : memref<16x16x128xf32, #tpu.memory_space<vmem>>, vector<4x4x128xf32>
    tpu.vector_store %arg18[%c12_52, %c12_53, %c0_54], %46 {strides = array<i32>} : memref<16x16x128xf32, #tpu.memory_space<vmem>>, vector<4x4x128xf32>,
    %48 = vector.extract_strided_slice %33 {offsets = [0, 1, 0], sizes = [1, 1, 128], strides = [1, 1, 1]} : vector<3x9x128xf32> to vector<1x1x128xf32>
    %c12_55 = arith.constant 12 : index
    %c0_56 = arith.constant 0 : index
    %c0_57 = arith.constant 0 : index
    %49 = vector.load %arg18[%c12_55, %c0_56, %c0_57] : memref<16x16x128xf32, #tpu.memory_space<vmem>>, vector<4x16x128xf32>
    %c0_58 = arith.constant 0 : index
    %c0_59 = arith.constant 0 : index
    %c0_60 = arith.constant 0 : index
    %c0_61 = arith.constant 0 : index
    %50 = vector.load %arg1[%c0_58, %c0_59, %c0_60, %c0_61] : memref<1x16x16x128xf32, #tpu.memory_space<vmem>>, vector<1x4x16x128xf32>
    %51 = vector.shape_cast %50 : vector<1x4x16x128xf32> to vector<4x16x128xf32>
    %52 = vector.broadcast %48 : vector<1x1x128xf32> to vector<4x16x128xf32>
    %53 = arith.mulf %51, %52 : vector<4x16x128xf32>
    %54 = arith.addf %49, %53 : vector<4x16x128xf32>
    %c12_62 = arith.constant 12 : index
    %c0_63 = arith.constant 0 : index
    %c0_64 = arith.constant 0 : index
    %55 = vector.load %arg18[%c12_62, %c0_63, %c0_64] : memref<16x16x128xf32, #tpu.memory_space<vmem>>, vector<4x16x128xf32>
    tpu.vector_store %arg18[%c12_62, %c0_63, %c0_64], %54 {strides = array<i32>} : memref<16x16x128xf32, #tpu.memory_space<vmem>>, vector<4x16x128xf32>,
    %56 = vector.extract_strided_slice %33 {offsets = [0, 2, 0], sizes = [1, 1, 128], strides = [1, 1, 1]} : vector<3x9x128xf32> to vector<1x1x128xf32>
    %c12_65 = arith.constant 12 : index
    %c0_66 = arith.constant 0 : index
    %c0_67 = arith.constant 0 : index
    %57 = vector.load %arg18[%c12_65, %c0_66, %c0_67] : memref<16x16x128xf32, #tpu.memory_space<vmem>>, vector<4x4x128xf32>
    %c0_68 = arith.constant 0 : index
    %c0_69 = arith.constant 0 : index
    %c12_70 = arith.constant 12 : index
    %c0_71 = arith.constant 0 : index
    %58 = vector.load %arg1[%c0_68, %c0_69, %c12_70, %c0_71] : memref<1x16x16x128xf32, #tpu.memory_space<vmem>>, vector<1x4x4x128xf32>
    %59 = vector.shape_cast %58 : vector<1x4x4x128xf32> to vector<4x4x128xf32>
    %60 = vector.broadcast %56 : vector<1x1x128xf32> to vector<4x4x128xf32>
    %61 = arith.mulf %59, %60 : vector<4x4x128xf32>
    %62 = arith.addf %57, %61 : vector<4x4x128xf32>
    %c12_72 = arith.constant 12 : index
    %c0_73 = arith.constant 0 : index
    %c0_74 = arith.constant 0 : index
    %63 = vector.load %arg18[%c12_72, %c0_73, %c0_74] : memref<16x16x128xf32, #tpu.memory_space<vmem>>, vector<4x4x128xf32>
    tpu.vector_store %arg18[%c12_72, %c0_73, %c0_74], %62 {strides = array<i32>} : memref<16x16x128xf32, #tpu.memory_space<vmem>>, vector<4x4x128xf32>,
    %64 = vector.extract_strided_slice %33 {offsets = [0, 3, 0], sizes = [1, 1, 128], strides = [1, 1, 1]} : vector<3x9x128xf32> to vector<1x1x128xf32>
    %c0_75 = arith.constant 0 : index
    %c12_76 = arith.constant 12 : index
    %c0_77 = arith.constant 0 : index
    %65 = vector.load %arg18[%c0_75, %c12_76, %c0_77] : memref<16x16x128xf32, #tpu.memory_space<vmem>>, vector<16x4x128xf32>
    %c0_78 = arith.constant 0 : index
    %c0_79 = arith.constant 0 : index
    %c0_80 = arith.constant 0 : index
    %c0_81 = arith.constant 0 : index
    %66 = vector.load %arg1[%c0_78, %c0_79, %c0_80, %c0_81] : memref<1x16x16x128xf32, #tpu.memory_space<vmem>>, vector<1x16x4x128xf32>
    %67 = vector.shape_cast %66 : vector<1x16x4x128xf32> to vector<16x4x128xf32>
    %68 = vector.broadcast %64 : vector<1x1x128xf32> to vector<16x4x128xf32>
    %69 = arith.mulf %67, %68 : vector<16x4x128xf32>
    %70 = arith.addf %65, %69 : vector<16x4x128xf32>
    %c0_82 = arith.constant 0 : index
    %c12_83 = arith.constant 12 : index
    %c0_84 = arith.constant 0 : index
    %71 = vector.load %arg18[%c0_82, %c12_83, %c0_84] : memref<16x16x128xf32, #tpu.memory_space<vmem>>, vector<16x4x128xf32>
    tpu.vector_store %arg18[%c0_82, %c12_83, %c0_84], %70 {strides = array<i32>} : memref<16x16x128xf32, #tpu.memory_space<vmem>>, vector<16x4x128xf32>,
    %72 = vector.extract_strided_slice %33 {offsets = [0, 4, 0], sizes = [1, 1, 128], strides = [1, 1, 1]} : vector<3x9x128xf32> to vector<1x1x128xf32>
    %c0_85 = arith.constant 0 : index
    %c0_86 = arith.constant 0 : index
    %c0_87 = arith.constant 0 : index
    %73 = vector.load %arg18[%c0_85, %c0_86, %c0_87] : memref<16x16x128xf32, #tpu.memory_space<vmem>>, vector<16x16x128xf32>
    %c0_88 = arith.constant 0 : index
    %c0_89 = arith.constant 0 : index
    %c0_90 = arith.constant 0 : index
    %c0_91 = arith.constant 0 : index
    %74 = vector.load %arg1[%c0_88, %c0_89, %c0_90, %c0_91] : memref<1x16x16x128xf32, #tpu.memory_space<vmem>>, vector<1x16x16x128xf32>
    %75 = vector.shape_cast %74 : vector<1x16x16x128xf32> to vector<16x16x128xf32>
    %76 = vector.broadcast %72 : vector<1x1x128xf32> to vector<16x16x128xf32>
    %77 = arith.mulf %75, %76 : vector<16x16x128xf32>
    %78 = arith.addf %73, %77 : vector<16x16x128xf32>
    %c0_92 = arith.constant 0 : index
    %c0_93 = arith.constant 0 : index
    %c0_94 = arith.constant 0 : index
    %79 = vector.load %arg18[%c0_92, %c0_93, %c0_94] : memref<16x16x128xf32, #tpu.memory_space<vmem>>, vector<16x16x128xf32>
    tpu.vector_store %arg18[%c0_92, %c0_93, %c0_94], %78 {strides = array<i32>} : memref<16x16x128xf32, #tpu.memory_space<vmem>>, vector<16x16x128xf32>,
    %80 = vector.extract_strided_slice %33 {offsets = [0, 5, 0], sizes = [1, 1, 128], strides = [1, 1, 1]} : vector<3x9x128xf32> to vector<1x1x128xf32>
    %c0_95 = arith.constant 0 : index
    %c0_96 = arith.constant 0 : index
    %c0_97 = arith.constant 0 : index
    %81 = vector.load %arg18[%c0_95, %c0_96, %c0_97] : memref<16x16x128xf32, #tpu.memory_space<vmem>>, vector<16x4x128xf32>
    %c0_98 = arith.constant 0 : index
    %c0_99 = arith.constant 0 : index
    %c12_100 = arith.constant 12 : index
    %c0_101 = arith.constant 0 : index
    %82 = vector.load %arg1[%c0_98, %c0_99, %c12_100, %c0_101] : memref<1x16x16x128xf32, #tpu.memory_space<vmem>>, vector<1x16x4x128xf32>
    %83 = vector.shape_cast %82 : vector<1x16x4x128xf32> to vector<16x4x128xf32>
    %84 = vector.broadcast %80 : vector<1x1x128xf32> to vector<16x4x128xf32>
    %85 = arith.mulf %83, %84 : vector<16x4x128xf32>
    %86 = arith.addf %81, %85 : vector<16x4x128xf32>
    %c0_102 = arith.constant 0 : index
    %c0_103 = arith.constant 0 : index
    %c0_104 = arith.constant 0 : index
    %87 = vector.load %arg18[%c0_102, %c0_103, %c0_104] : memref<16x16x128xf32, #tpu.memory_space<vmem>>, vector<16x4x128xf32>
    tpu.vector_store %arg18[%c0_102, %c0_103, %c0_104], %86 {strides = array<i32>} : memref<16x16x128xf32, #tpu.memory_space<vmem>>, vector<16x4x128xf32>,
    %88 = vector.extract_strided_slice %33 {offsets = [0, 6, 0], sizes = [1, 1, 128], strides = [1, 1, 1]} : vector<3x9x128xf32> to vector<1x1x128xf32>
    %c0_105 = arith.constant 0 : index
    %c12_106 = arith.constant 12 : index
    %c0_107 = arith.constant 0 : index
    %89 = vector.load %arg18[%c0_105, %c12_106, %c0_107] : memref<16x16x128xf32, #tpu.memory_space<vmem>>, vector<4x4x128xf32>
    %c0_108 = arith.constant 0 : index
    %c12_109 = arith.constant 12 : index
    %c0_110 = arith.constant 0 : index
    %c0_111 = arith.constant 0 : index
    %90 = vector.load %arg1[%c0_108, %c12_109, %c0_110, %c0_111] : memref<1x16x16x128xf32, #tpu.memory_space<vmem>>, vector<1x4x4x128xf32>
    %91 = vector.shape_cast %90 : vector<1x4x4x128xf32> to vector<4x4x128xf32>
    %92 = vector.broadcast %88 : vector<1x1x128xf32> to vector<4x4x128xf32>
    %93 = arith.mulf %91, %92 : vector<4x4x128xf32>
    %94 = arith.addf %89, %93 : vector<4x4x128xf32>
    %c0_112 = arith.constant 0 : index
    %c12_113 = arith.constant 12 : index
    %c0_114 = arith.constant 0 : index
    %95 = vector.load %arg18[%c0_112, %c12_113, %c0_114] : memref<16x16x128xf32, #tpu.memory_space<vmem>>, vector<4x4x128xf32>
    tpu.vector_store %arg18[%c0_112, %c12_113, %c0_114], %94 {strides = array<i32>} : memref<16x16x128xf32, #tpu.memory_space<vmem>>, vector<4x4x128xf32>,
    %96 = vector.extract_strided_slice %33 {offsets = [0, 7, 0], sizes = [1, 1, 128], strides = [1, 1, 1]} : vector<3x9x128xf32> to vector<1x1x128xf32>
    %c0_115 = arith.constant 0 : index
    %c0_116 = arith.constant 0 : index
    %c0_117 = arith.constant 0 : index
    %97 = vector.load %arg18[%c0_115, %c0_116, %c0_117] : memref<16x16x128xf32, #tpu.memory_space<vmem>>, vector<4x16x128xf32>
    %c0_118 = arith.constant 0 : index
    %c12_119 = arith.constant 12 : index
    %c0_120 = arith.constant 0 : index
    %c0_121 = arith.constant 0 : index
    %98 = vector.load %arg1[%c0_118, %c12_119, %c0_120, %c0_121] : memref<1x16x16x128xf32, #tpu.memory_space<vmem>>, vector<1x4x16x128xf32>
    %99 = vector.shape_cast %98 : vector<1x4x16x128xf32> to vector<4x16x128xf32>
    %100 = vector.broadcast %96 : vector<1x1x128xf32> to vector<4x16x128xf32>
    %101 = arith.mulf %99, %100 : vector<4x16x128xf32>
    %102 = arith.addf %97, %101 : vector<4x16x128xf32>
    %c0_122 = arith.constant 0 : index
    %c0_123 = arith.constant 0 : index
    %c0_124 = arith.constant 0 : index
    %103 = vector.load %arg18[%c0_122, %c0_123, %c0_124] : memref<16x16x128xf32, #tpu.memory_space<vmem>>, vector<4x16x128xf32>
    tpu.vector_store %arg18[%c0_122, %c0_123, %c0_124], %102 {strides = array<i32>} : memref<16x16x128xf32, #tpu.memory_space<vmem>>, vector<4x16x128xf32>,
    %104 = vector.extract_strided_slice %33 {offsets = [0, 8, 0], sizes = [1, 1, 128], strides = [1, 1, 1]} : vector<3x9x128xf32> to vector<1x1x128xf32>
    %c0_125 = arith.constant 0 : index
    %c0_126 = arith.constant 0 : index
    %c0_127 = arith.constant 0 : index
    %105 = vector.load %arg18[%c0_125, %c0_126, %c0_127] : memref<16x16x128xf32, #tpu.memory_space<vmem>>, vector<4x4x128xf32>
    %c0_128 = arith.constant 0 : index
    %c12_129 = arith.constant 12 : index
    %c12_130 = arith.constant 12 : index
    %c0_131 = arith.constant 0 : index
    %106 = vector.load %arg1[%c0_128, %c12_129, %c12_130, %c0_131] : memref<1x16x16x128xf32, #tpu.memory_space<vmem>>, vector<1x4x4x128xf32>
    %107 = vector.shape_cast %106 : vector<1x4x4x128xf32> to vector<4x4x128xf32>
    %108 = vector.broadcast %104 : vector<1x1x128xf32> to vector<4x4x128xf32>
    %109 = arith.mulf %107, %108 : vector<4x4x128xf32>
    %110 = arith.addf %105, %109 : vector<4x4x128xf32>
    %c0_132 = arith.constant 0 : index
    %c0_133 = arith.constant 0 : index
    %c0_134 = arith.constant 0 : index
    %111 = vector.load %arg18[%c0_132, %c0_133, %c0_134] : memref<16x16x128xf32, #tpu.memory_space<vmem>>, vector<4x4x128xf32>
    tpu.vector_store %arg18[%c0_132, %c0_133, %c0_134], %110 {strides = array<i32>} : memref<16x16x128xf32, #tpu.memory_space<vmem>>, vector<4x4x128xf32>,
    %c0_135 = arith.constant 0 : index
    %c0_136 = arith.constant 0 : index
    %c0_137 = arith.constant 0 : index
    %112 = vector.load %arg18[%c0_135, %c0_136, %c0_137] : memref<16x16x128xf32, #tpu.memory_space<vmem>>, vector<16x16x128xf32>
    %113 = vector.shape_cast %112 : vector<16x16x128xf32> to vector<256x128xf32>
    %114 = vector.extract_strided_slice %34 {offsets = [0, 0, 0], sizes = [1, 1, 128], strides = [1, 1, 1]} : vector<3x1x128xf32> to vector<1x1x128xf32>
    %115 = vector.shape_cast %114 : vector<1x1x128xf32> to vector<1x128xf32>
    %116 = vector.broadcast %115 : vector<1x128xf32> to vector<256x128xf32>
    %117 = arith.mulf %113, %116 : vector<256x128xf32>
    %118 = vector.extract_strided_slice %35 {offsets = [0, 0, 0], sizes = [1, 1, 128], strides = [1, 1, 1]} : vector<3x1x128xf32> to vector<1x1x128xf32>
    %119 = vector.shape_cast %118 : vector<1x1x128xf32> to vector<1x128xf32>
    %120 = vector.broadcast %119 : vector<1x128xf32> to vector<256x128xf32>
    %121 = arith.addf %117, %120 : vector<256x128xf32>
    %cst_138 = arith.constant 0.000000e+00 : f32
    %122 = vector.broadcast %cst_138 : f32 to vector<256x128xf32>
    %123 = arith.maximumf %121, %122 : vector<256x128xf32>
    %c0_139 = arith.constant 0 : index
    %c0_140 = arith.constant 0 : index
    %c0_141 = arith.constant 0 : index
    %124 = vector.load %arg11[%c0_139, %c0_140, %c0_141] : memref<3x128x128xf32, #tpu.memory_space<vmem>>, vector<1x128x128xf32>
    %125 = vector.shape_cast %124 : vector<1x128x128xf32> to vector<128x128xf32>
    %cst_142 = arith.constant dense<0.000000e+00> : vector<256x128xf32>
    %126 = tpu.matmul %123, %125, %cst_142 {dimension_numbers = #tpu.dot_dimension_numbers<[1], [0], [0], [1], [0, 0, 1, 1], [], []>} : vector<256x128xf32>, vector<128x128xf32>, vector<256x128xf32> -> vector<256x128xf32>
    %127 = vector.extract_strided_slice %36 {offsets = [0, 0, 0], sizes = [1, 1, 128], strides = [1, 1, 1]} : vector<3x1x128xf32> to vector<1x1x128xf32>
    %128 = vector.shape_cast %127 : vector<1x1x128xf32> to vector<1x128xf32>
    %129 = vector.broadcast %128 : vector<1x128xf32> to vector<256x128xf32>
    %130 = arith.mulf %126, %129 : vector<256x128xf32>
    %131 = vector.extract_strided_slice %37 {offsets = [0, 0, 0], sizes = [1, 1, 128], strides = [1, 1, 1]} : vector<3x1x128xf32> to vector<1x1x128xf32>
    %132 = vector.shape_cast %131 : vector<1x1x128xf32> to vector<1x128xf32>
    %133 = vector.broadcast %132 : vector<1x128xf32> to vector<256x128xf32>
    %134 = arith.addf %130, %133 : vector<256x128xf32>
    %cst_143 = arith.constant 0.000000e+00 : f32
    %135 = vector.broadcast %cst_143 : f32 to vector<256x128xf32>
    %136 = arith.maximumf %134, %135 : vector<256x128xf32>
    %c2 = arith.constant 2 : index
    %c0_144 = arith.constant 0 : index
    %c0_145 = arith.constant 0 : index
    %137 = vector.load %arg14[%c2, %c0_144, %c0_145] : memref<5x128x128xf32, #tpu.memory_space<vmem>>, vector<1x128x128xf32>
    %138 = vector.shape_cast %137 : vector<1x128x128xf32> to vector<128x128xf32>
    %cst_146 = arith.constant dense<0.000000e+00> : vector<256x128xf32>
    %139 = tpu.matmul %136, %138, %cst_146 {dimension_numbers = #tpu.dot_dimension_numbers<[1], [0], [0], [1], [0, 0, 1, 1], [], []>} : vector<256x128xf32>, vector<128x128xf32>, vector<256x128xf32> -> vector<256x128xf32>
    %140 = arith.addf %32, %139 : vector<256x128xf32>
    %cst_147 = arith.constant 0.000000e+00 : f32
    %141 = vector.broadcast %cst_147 : f32 to vector<16x16x128xf32>
    %c0_148 = arith.constant 0 : index
    %c0_149 = arith.constant 0 : index
    %c0_150 = arith.constant 0 : index
    %142 = vector.load %arg18[%c0_148, %c0_149, %c0_150] : memref<16x16x128xf32, #tpu.memory_space<vmem>>, vector<16x16x128xf32>
    tpu.vector_store %arg18[%c0_148, %c0_149, %c0_150], %141 {strides = array<i32>} : memref<16x16x128xf32, #tpu.memory_space<vmem>>, vector<16x16x128xf32>,
    %143 = vector.extract_strided_slice %33 {offsets = [1, 4, 0], sizes = [1, 1, 128], strides = [1, 1, 1]} : vector<3x9x128xf32> to vector<1x1x128xf32>
    %c0_151 = arith.constant 0 : index
    %c0_152 = arith.constant 0 : index
    %c0_153 = arith.constant 0 : index
    %144 = vector.load %arg18[%c0_151, %c0_152, %c0_153] : memref<16x16x128xf32, #tpu.memory_space<vmem>>, vector<16x16x128xf32>
    %c0_154 = arith.constant 0 : index
    %c0_155 = arith.constant 0 : index
    %c0_156 = arith.constant 0 : index
    %c0_157 = arith.constant 0 : index
    %145 = vector.load %arg1[%c0_154, %c0_155, %c0_156, %c0_157] : memref<1x16x16x128xf32, #tpu.memory_space<vmem>>, vector<1x16x16x128xf32>
    %146 = vector.shape_cast %145 : vector<1x16x16x128xf32> to vector<16x16x128xf32>
    %147 = vector.broadcast %143 : vector<1x1x128xf32> to vector<16x16x128xf32>
    %148 = arith.mulf %146, %147 : vector<16x16x128xf32>
    %149 = arith.addf %144, %148 : vector<16x16x128xf32>
    %c0_158 = arith.constant 0 : index
    %c0_159 = arith.constant 0 : index
    %c0_160 = arith.constant 0 : index
    %150 = vector.load %arg18[%c0_158, %c0_159, %c0_160] : memref<16x16x128xf32, #tpu.memory_space<vmem>>, vector<16x16x128xf32>
    tpu.vector_store %arg18[%c0_158, %c0_159, %c0_160], %149 {strides = array<i32>} : memref<16x16x128xf32, #tpu.memory_space<vmem>>, vector<16x16x128xf32>,
    %c0_161 = arith.constant 0 : index
    %c0_162 = arith.constant 0 : index
    %c0_163 = arith.constant 0 : index
    %151 = vector.load %arg18[%c0_161, %c0_162, %c0_163] : memref<16x16x128xf32, #tpu.memory_space<vmem>>, vector<16x16x128xf32>
    %152 = vector.shape_cast %151 : vector<16x16x128xf32> to vector<256x128xf32>
    %153 = vector.extract_strided_slice %34 {offsets = [1, 0, 0], sizes = [1, 1, 128], strides = [1, 1, 1]} : vector<3x1x128xf32> to vector<1x1x128xf32>
    %154 = vector.shape_cast %153 : vector<1x1x128xf32> to vector<1x128xf32>
    %155 = vector.broadcast %154 : vector<1x128xf32> to vector<256x128xf32>
    %156 = arith.mulf %152, %155 : vector<256x128xf32>
    %157 = vector.extract_strided_slice %35 {offsets = [1, 0, 0], sizes = [1, 1, 128], strides = [1, 1, 1]} : vector<3x1x128xf32> to vector<1x1x128xf32>
    %158 = vector.shape_cast %157 : vector<1x1x128xf32> to vector<1x128xf32>
    %159 = vector.broadcast %158 : vector<1x128xf32> to vector<256x128xf32>
    %160 = arith.addf %156, %159 : vector<256x128xf32>
    %cst_164 = arith.constant 0.000000e+00 : f32
    %161 = vector.broadcast %cst_164 : f32 to vector<256x128xf32>
    %162 = arith.maximumf %160, %161 : vector<256x128xf32>
    %c1_165 = arith.constant 1 : index
    %c0_166 = arith.constant 0 : index
    %c0_167 = arith.constant 0 : index
    %163 = vector.load %arg11[%c1_165, %c0_166, %c0_167] : memref<3x128x128xf32, #tpu.memory_space<vmem>>, vector<1x128x128xf32>
    %164 = vector.shape_cast %163 : vector<1x128x128xf32> to vector<128x128xf32>
    %cst_168 = arith.constant dense<0.000000e+00> : vector<256x128xf32>
    %165 = tpu.matmul %162, %164, %cst_168 {dimension_numbers = #tpu.dot_dimension_numbers<[1], [0], [0], [1], [0, 0, 1, 1], [], []>} : vector<256x128xf32>, vector<128x128xf32>, vector<256x128xf32> -> vector<256x128xf32>
    %166 = vector.extract_strided_slice %36 {offsets = [1, 0, 0], sizes = [1, 1, 128], strides = [1, 1, 1]} : vector<3x1x128xf32> to vector<1x1x128xf32>
    %167 = vector.shape_cast %166 : vector<1x1x128xf32> to vector<1x128xf32>
    %168 = vector.broadcast %167 : vector<1x128xf32> to vector<256x128xf32>
    %169 = arith.mulf %165, %168 : vector<256x128xf32>
    %170 = vector.extract_strided_slice %37 {offsets = [1, 0, 0], sizes = [1, 1, 128], strides = [1, 1, 1]} : vector<3x1x128xf32> to vector<1x1x128xf32>
    %171 = vector.shape_cast %170 : vector<1x1x128xf32> to vector<1x128xf32>
    %172 = vector.broadcast %171 : vector<1x128xf32> to vector<256x128xf32>
    %173 = arith.addf %169, %172 : vector<256x128xf32>
    %cst_169 = arith.constant 0.000000e+00 : f32
    %174 = vector.broadcast %cst_169 : f32 to vector<256x128xf32>
    %175 = arith.maximumf %173, %174 : vector<256x128xf32>
    %c3 = arith.constant 3 : index
    %c0_170 = arith.constant 0 : index
    %c0_171 = arith.constant 0 : index
    %176 = vector.load %arg14[%c3, %c0_170, %c0_171] : memref<5x128x128xf32, #tpu.memory_space<vmem>>, vector<1x128x128xf32>
    %177 = vector.shape_cast %176 : vector<1x128x128xf32> to vector<128x128xf32>
    %cst_172 = arith.constant dense<0.000000e+00> : vector<256x128xf32>
    %178 = tpu.matmul %175, %177, %cst_172 {dimension_numbers = #tpu.dot_dimension_numbers<[1], [0], [0], [1], [0, 0, 1, 1], [], []>} : vector<256x128xf32>, vector<128x128xf32>, vector<256x128xf32> -> vector<256x128xf32>
    %179 = arith.addf %140, %178 : vector<256x128xf32>
    %cst_173 = arith.constant 0.000000e+00 : f32
    %180 = vector.broadcast %cst_173 : f32 to vector<16x16x128xf32>
    %c0_174 = arith.constant 0 : index
    %c0_175 = arith.constant 0 : index
    %c0_176 = arith.constant 0 : index
    %181 = vector.load %arg18[%c0_174, %c0_175, %c0_176] : memref<16x16x128xf32, #tpu.memory_space<vmem>>, vector<16x16x128xf32>
    tpu.vector_store %arg18[%c0_174, %c0_175, %c0_176], %180 {strides = array<i32>} : memref<16x16x128xf32, #tpu.memory_space<vmem>>, vector<16x16x128xf32>,
    %182 = vector.extract_strided_slice %33 {offsets = [2, 4, 0], sizes = [1, 1, 128], strides = [1, 1, 1]} : vector<3x9x128xf32> to vector<1x1x128xf32>
    %c0_177 = arith.constant 0 : index
    %c0_178 = arith.constant 0 : index
    %c0_179 = arith.constant 0 : index
    %183 = vector.load %arg18[%c0_177, %c0_178, %c0_179] : memref<16x16x128xf32, #tpu.memory_space<vmem>>, vector<16x16x128xf32>
    %c0_180 = arith.constant 0 : index
    %c0_181 = arith.constant 0 : index
    %c0_182 = arith.constant 0 : index
    %c0_183 = arith.constant 0 : index
    %184 = vector.load %arg1[%c0_180, %c0_181, %c0_182, %c0_183] : memref<1x16x16x128xf32, #tpu.memory_space<vmem>>, vector<1x16x16x128xf32>
    %185 = vector.shape_cast %184 : vector<1x16x16x128xf32> to vector<16x16x128xf32>
    %186 = vector.broadcast %182 : vector<1x1x128xf32> to vector<16x16x128xf32>
    %187 = arith.mulf %185, %186 : vector<16x16x128xf32>
    %188 = arith.addf %183, %187 : vector<16x16x128xf32>
    %c0_184 = arith.constant 0 : index
    %c0_185 = arith.constant 0 : index
    %c0_186 = arith.constant 0 : index
    %189 = vector.load %arg18[%c0_184, %c0_185, %c0_186] : memref<16x16x128xf32, #tpu.memory_space<vmem>>, vector<16x16x128xf32>
    tpu.vector_store %arg18[%c0_184, %c0_185, %c0_186], %188 {strides = array<i32>} : memref<16x16x128xf32, #tpu.memory_space<vmem>>, vector<16x16x128xf32>,
    %c0_187 = arith.constant 0 : index
    %c0_188 = arith.constant 0 : index
    %c0_189 = arith.constant 0 : index
    %190 = vector.load %arg18[%c0_187, %c0_188, %c0_189] : memref<16x16x128xf32, #tpu.memory_space<vmem>>, vector<16x16x128xf32>
    %191 = vector.shape_cast %190 : vector<16x16x128xf32> to vector<256x128xf32>
    %192 = vector.extract_strided_slice %34 {offsets = [2, 0, 0], sizes = [1, 1, 128], strides = [1, 1, 1]} : vector<3x1x128xf32> to vector<1x1x128xf32>
    %193 = vector.shape_cast %192 : vector<1x1x128xf32> to vector<1x128xf32>
    %194 = vector.broadcast %193 : vector<1x128xf32> to vector<256x128xf32>
    %195 = arith.mulf %191, %194 : vector<256x128xf32>
    %196 = vector.extract_strided_slice %35 {offsets = [2, 0, 0], sizes = [1, 1, 128], strides = [1, 1, 1]} : vector<3x1x128xf32> to vector<1x1x128xf32>
    %197 = vector.shape_cast %196 : vector<1x1x128xf32> to vector<1x128xf32>
    %198 = vector.broadcast %197 : vector<1x128xf32> to vector<256x128xf32>
    %199 = arith.addf %195, %198 : vector<256x128xf32>
    %cst_190 = arith.constant 0.000000e+00 : f32
    %200 = vector.broadcast %cst_190 : f32 to vector<256x128xf32>
    %201 = arith.maximumf %199, %200 : vector<256x128xf32>
    %c2_191 = arith.constant 2 : index
    %c0_192 = arith.constant 0 : index
    %c0_193 = arith.constant 0 : index
    %202 = vector.load %arg11[%c2_191, %c0_192, %c0_193] : memref<3x128x128xf32, #tpu.memory_space<vmem>>, vector<1x128x128xf32>
    %203 = vector.shape_cast %202 : vector<1x128x128xf32> to vector<128x128xf32>
    %cst_194 = arith.constant dense<0.000000e+00> : vector<256x128xf32>
    %204 = tpu.matmul %201, %203, %cst_194 {dimension_numbers = #tpu.dot_dimension_numbers<[1], [0], [0], [1], [0, 0, 1, 1], [], []>} : vector<256x128xf32>, vector<128x128xf32>, vector<256x128xf32> -> vector<256x128xf32>
    %205 = vector.extract_strided_slice %36 {offsets = [2, 0, 0], sizes = [1, 1, 128], strides = [1, 1, 1]} : vector<3x1x128xf32> to vector<1x1x128xf32>
    %206 = vector.shape_cast %205 : vector<1x1x128xf32> to vector<1x128xf32>
    %207 = vector.broadcast %206 : vector<1x128xf32> to vector<256x128xf32>
    %208 = arith.mulf %204, %207 : vector<256x128xf32>
    %209 = vector.extract_strided_slice %37 {offsets = [2, 0, 0], sizes = [1, 1, 128], strides = [1, 1, 1]} : vector<3x1x128xf32> to vector<1x1x128xf32>
    %210 = vector.shape_cast %209 : vector<1x1x128xf32> to vector<1x128xf32>
    %211 = vector.broadcast %210 : vector<1x128xf32> to vector<256x128xf32>
    %212 = arith.addf %208, %211 : vector<256x128xf32>
    %cst_195 = arith.constant 0.000000e+00 : f32
    %213 = vector.broadcast %cst_195 : f32 to vector<256x128xf32>
    %214 = arith.maximumf %212, %213 : vector<256x128xf32>
    %c4 = arith.constant 4 : index
    %c0_196 = arith.constant 0 : index
    %c0_197 = arith.constant 0 : index
    %215 = vector.load %arg14[%c4, %c0_196, %c0_197] : memref<5x128x128xf32, #tpu.memory_space<vmem>>, vector<1x128x128xf32>
    %216 = vector.shape_cast %215 : vector<1x128x128xf32> to vector<128x128xf32>
    %cst_198 = arith.constant dense<0.000000e+00> : vector<256x128xf32>
    %217 = tpu.matmul %214, %216, %cst_198 {dimension_numbers = #tpu.dot_dimension_numbers<[1], [0], [0], [1], [0, 0, 1, 1], [], []>} : vector<256x128xf32>, vector<128x128xf32>, vector<256x128xf32> -> vector<256x128xf32>
    %218 = arith.addf %179, %217 : vector<256x128xf32>
    %c0_199 = arith.constant 0 : index
    %c0_200 = arith.constant 0 : index
    %219 = vector.load %arg15[%c0_199, %c0_200] : memref<1x128xf32, #tpu.memory_space<vmem>>, vector<1x128xf32>
    %220 = vector.broadcast %219 : vector<1x128xf32> to vector<256x128xf32>
    %221 = arith.mulf %218, %220 : vector<256x128xf32>
    %c0_201 = arith.constant 0 : index
    %c0_202 = arith.constant 0 : index
    %222 = vector.load %arg16[%c0_201, %c0_202] : memref<1x128xf32, #tpu.memory_space<vmem>>, vector<1x128xf32>
    %223 = vector.broadcast %222 : vector<1x128xf32> to vector<256x128xf32>
    %224 = arith.addf %221, %223 : vector<256x128xf32>
    %cst_203 = arith.constant 0.000000e+00 : f32
    %225 = vector.broadcast %cst_203 : f32 to vector<256x128xf32>
    %226 = arith.maximumf %224, %225 : vector<256x128xf32>
    %227 = vector.shape_cast %226 : vector<256x128xf32> to vector<1x256x128xf32>
    %c0_204 = arith.constant 0 : index
    %c0_205 = arith.constant 0 : index
    %c0_206 = arith.constant 0 : index
    %228 = vector.load %arg17[%c0_204, %c0_205, %c0_206] : memref<1x256x128xf32, #tpu.memory_space<vmem>>, vector<1x256x128xf32>
    tpu.vector_store %arg17[%c0_204, %c0_205, %c0_206], %227 {strides = array<i32>} : memref<1x256x128xf32, #tpu.memory_space<vmem>>, vector<1x256x128xf32>,
    return
  }
  func.func @transform_0(%arg0: i32) -> (i32, i32, i32, i32) {
    %c0_i32 = arith.constant 0 : i32
    %c0_i32_0 = arith.constant 0 : i32
    %c0_i32_1 = arith.constant 0 : i32
    %c0_i32_2 = arith.constant 0 : i32
    return %arg0, %c0_i32, %c0_i32_0, %c0_i32_1 : i32, i32, i32, i32
  }
  func.func @transform_1(%arg0: i32) -> (i32, i32) {
    %c0_i32 = arith.constant 0 : i32
    %c0_i32_0 = arith.constant 0 : i32
    %c0_i32_1 = arith.constant 0 : i32
    return %c0_i32, %c0_i32_0 : i32, i32
  }
  func.func @transform_2(%arg0: i32) -> (i32, i32) {
    %c0_i32 = arith.constant 0 : i32
    %c0_i32_0 = arith.constant 0 : i32
    %c0_i32_1 = arith.constant 0 : i32
    return %c0_i32, %c0_i32_0 : i32, i32
  }
  func.func @transform_3(%arg0: i32) -> (i32, i32) {
    %c0_i32 = arith.constant 0 : i32
    %c0_i32_0 = arith.constant 0 : i32
    %c0_i32_1 = arith.constant 0 : i32
    return %c0_i32, %c0_i32_0 : i32, i32
  }
  func.func @transform_4(%arg0: i32) -> (i32, i32) {
    %c0_i32 = arith.constant 0 : i32
    %c0_i32_0 = arith.constant 0 : i32
    %c0_i32_1 = arith.constant 0 : i32
    return %c0_i32, %c0_i32_0 : i32, i32
  }
  func.func @transform_5(%arg0: i32) -> (i32, i32) {
    %c0_i32 = arith.constant 0 : i32
    %c0_i32_0 = arith.constant 0 : i32
    %c0_i32_1 = arith.constant 0 : i32
    return %c0_i32, %c0_i32_0 : i32, i32
  }
  func.func @transform_6(%arg0: i32) -> (i32, i32) {
    %c0_i32 = arith.constant 0 : i32
    %c0_i32_0 = arith.constant 0 : i32
    %c0_i32_1 = arith.constant 0 : i32
    return %c0_i32, %c0_i32_0 : i32, i32
  }
  func.func @transform_7(%arg0: i32) -> (i32, i32, i32) {
    %c0_i32 = arith.constant 0 : i32
    %c0_i32_0 = arith.constant 0 : i32
    %c0_i32_1 = arith.constant 0 : i32
    %c0_i32_2 = arith.constant 0 : i32
    return %c0_i32, %c0_i32_0, %c0_i32_1 : i32, i32, i32
  }
  func.func @transform_8(%arg0: i32) -> (i32, i32, i32) {
    %c0_i32 = arith.constant 0 : i32
    %c0_i32_0 = arith.constant 0 : i32
    %c0_i32_1 = arith.constant 0 : i32
    %c0_i32_2 = arith.constant 0 : i32
    return %c0_i32, %c0_i32_0, %c0_i32_1 : i32, i32, i32
  }
  func.func @transform_9(%arg0: i32) -> (i32, i32, i32) {
    %c0_i32 = arith.constant 0 : i32
    %c0_i32_0 = arith.constant 0 : i32
    %c0_i32_1 = arith.constant 0 : i32
    %c0_i32_2 = arith.constant 0 : i32
    return %c0_i32, %c0_i32_0, %c0_i32_1 : i32, i32, i32
  }
  func.func @transform_10(%arg0: i32) -> (i32, i32, i32) {
    %c0_i32 = arith.constant 0 : i32
    %c0_i32_0 = arith.constant 0 : i32
    %c0_i32_1 = arith.constant 0 : i32
    %c0_i32_2 = arith.constant 0 : i32
    return %c0_i32, %c0_i32_0, %c0_i32_1 : i32, i32, i32
  }
  func.func @transform_11(%arg0: i32) -> (i32, i32, i32) {
    %c0_i32 = arith.constant 0 : i32
    %c0_i32_0 = arith.constant 0 : i32
    %c0_i32_1 = arith.constant 0 : i32
    %c0_i32_2 = arith.constant 0 : i32
    return %c0_i32, %c0_i32_0, %c0_i32_1 : i32, i32, i32
  }
  func.func @transform_12(%arg0: i32) -> (i32, i32, i32) {
    %c0_i32 = arith.constant 0 : i32
    %c0_i32_0 = arith.constant 0 : i32
    %c0_i32_1 = arith.constant 0 : i32
    %c0_i32_2 = arith.constant 0 : i32
    return %c0_i32, %c0_i32_0, %c0_i32_1 : i32, i32, i32
  }
  func.func @transform_13(%arg0: i32) -> (i32, i32, i32) {
    %c0_i32 = arith.constant 0 : i32
    %c0_i32_0 = arith.constant 0 : i32
    %c0_i32_1 = arith.constant 0 : i32
    %c0_i32_2 = arith.constant 0 : i32
    return %c0_i32, %c0_i32_0, %c0_i32_1 : i32, i32, i32
  }
  func.func @transform_14(%arg0: i32) -> (i32, i32) {
    %c0_i32 = arith.constant 0 : i32
    %c0_i32_0 = arith.constant 0 : i32
    %c0_i32_1 = arith.constant 0 : i32
    return %c0_i32, %c0_i32_0 : i32, i32
  }
  func.func @transform_15(%arg0: i32) -> (i32, i32) {
    %c0_i32 = arith.constant 0 : i32
    %c0_i32_0 = arith.constant 0 : i32
    %c0_i32_1 = arith.constant 0 : i32
    return %c0_i32, %c0_i32_0 : i32, i32
  }
  func.func @transform_16(%arg0: i32) -> (i32, i32, i32) {
    %c0_i32 = arith.constant 0 : i32
    %c0_i32_0 = arith.constant 0 : i32
    %c0_i32_1 = arith.constant 0 : i32
    return %arg0, %c0_i32, %c0_i32_0 : i32, i32, i32
  }
}

</mosaic_0001>

<llo_original>
// kernel: aspp_block_forward.1
$region0: #{aspp_block_forward.1}
  #allocation0 [shape = 'u32[]', space=smem, size = 0x4, offset = 0x4, fixed_abs, tag = 'smem constant byte address 0x4 - core index']
  #allocation1 [shape = 'u32[144,128]{1,0:T(1,128)}', space=vmem, size = 0x12000, scoped, tag = 'internal scratch']
  #allocation2 [shape = 'f32[16,16,128]{2,1,0:T(8,128)}', space=vmem, size = 0x20000, scoped, tag = 'scratch operand']
  %s0 = inlined_call_operand.vmem [shape: f32[2,16,16,128], index: 0, kind: input, shape index: {}]
  %s1 = inlined_call_operand.vmem [shape: f32[128,128], index: 1, kind: input, shape index: {}]
  %s2 = inlined_call_operand.vmem [shape: f32[1,128], index: 2, kind: input, shape index: {}]
  %s3 = inlined_call_operand.vmem [shape: f32[1,128], index: 3, kind: input, shape index: {}]
  %s4 = inlined_call_operand.vmem [shape: f32[128,128], index: 4, kind: input, shape index: {}]
  %s5 = inlined_call_operand.vmem [shape: f32[1,128], index: 5, kind: input, shape index: {}]
  %s6 = inlined_call_operand.vmem [shape: f32[1,128], index: 6, kind: input, shape index: {}]
  %s7 = inlined_call_operand.vmem [shape: f32[3,9,128], index: 7, kind: input, shape index: {}]
  %s8 = inlined_call_operand.vmem [shape: f32[3,1,128], index: 8, kind: input, shape index: {}]
  %s9 = inlined_call_operand.vmem [shape: f32[3,1,128], index: 9, kind: input, shape index: {}]
  %s10 = inlined_call_operand.vmem [shape: f32[3,128,128], index: 10, kind: input, shape index: {}]
  %s11 = inlined_call_operand.vmem [shape: f32[3,1,128], index: 11, kind: input, shape index: {}]
  %s12 = inlined_call_operand.vmem [shape: f32[3,1,128], index: 12, kind: input, shape index: {}]
  %s13 = inlined_call_operand.vmem [shape: f32[5,128,128], index: 13, kind: input, shape index: {}]
  %s14 = inlined_call_operand.vmem [shape: f32[1,128], index: 14, kind: input, shape index: {}]
  %s15 = inlined_call_operand.vmem [shape: f32[1,128], index: 15, kind: input, shape index: {}]
  %s16 = inlined_call_operand.hbm [shape: f32[2,256,128], index: 16, kind: output, shape index: {}]
  %s17 = sld [smem:[#allocation0]]
  $region97: #{aspp_block_forward.1} parent=0
    _
  %s19 = ssub.s32 1, %s17
  %s20 = scalar_select 0, %s19, %s17
  $region1: #{aspp_block_forward.1} parent=0
    #allocation3 [shape = 'u8[262144]{0}', space=vmem, size = 0x40000, scoped, tag = 'output window, operand 0']
    #allocation4 [shape = 's32[2]{0}', space=sflag, size = 0x8, scoped, tag = 'scoped memory for aspp_block_forward.1']
    %21 = vsyncpa [#allocation4], 0
    %s22 = scalar_lea.sflag [#allocation4], 1
    %23 = vsyncpa %s22, 0
    loop: start=0, step=1, limit=4
    $region2: #{aspp_block_forward.1} parent=1 // loop_pre_header
      _
    $region3: #{aspp_block_forward.1} parent=1 // loop_header
      %s25 = sphi 0, %s29
      %p26 = scmp.ge.s32.totalorder %s25, 4
      %s35 = sphi 0, %s37
      %s38 = sphi 0, %s35
      %s39 = sphi 0, %s38
      %s55 = sphi 0, %s39
      %s59 = sphi 0, %s59
      %s61 = sphi 0, %s59
      %s62 = sphi 0, %s61
      %s76 = sphi 0, %s62
      %s80 = sphi 0, %s80
      %s82 = sphi 0, %s80
      %s83 = sphi 0, %s82
      %s97 = sphi 0, %s83
      %s101 = sphi 0, %s101
      %s103 = sphi 0, %s101
      %s104 = sphi 0, %s103
      %s118 = sphi 0, %s104
      %s122 = sphi 0, %s122
      %s124 = sphi 0, %s122
      %s125 = sphi 0, %s124
      %s139 = sphi 0, %s125
      %s143 = sphi 0, %s143
      %s145 = sphi 0, %s143
      %s146 = sphi 0, %s145
      %s160 = sphi 0, %s146
      %s164 = sphi 0, %s164
      %s166 = sphi 0, %s164
      %s167 = sphi 0, %s166
      %s181 = sphi 0, %s167
      %s185 = sphi 0, %s185
      %s187 = sphi 0, %s185
      %s188 = sphi 0, %s187
      %s202 = sphi 0, %s188
      %s206 = sphi 0, %s206
      %s208 = sphi 0, %s206
      %s209 = sphi 0, %s208
      %s223 = sphi 0, %s209
      %s227 = sphi 0, %s227
      %s229 = sphi 0, %s227
      %s230 = sphi 0, %s229
      %s244 = sphi 0, %s230
      %s248 = sphi 0, %s248
      %s250 = sphi 0, %s248
      %s251 = sphi 0, %s250
      %s265 = sphi 0, %s251
      %s269 = sphi 0, %s269
      %s271 = sphi 0, %s269
      %s272 = sphi 0, %s271
      %s286 = sphi 0, %s272
      %s290 = sphi 0, %s290
      %s292 = sphi 0, %s290
      %s293 = sphi 0, %s292
      %s307 = sphi 0, %s293
      %s311 = sphi 0, %s311
      %s313 = sphi 0, %s311
      %s314 = sphi 0, %s313
      %s328 = sphi 0, %s314
      %s332 = sphi 0, %s332
      %s334 = sphi 0, %s332
      %s335 = sphi 0, %s334
      %s349 = sphi 0, %s335
      %s353 = sphi 0, %s353
      %s355 = sphi 0, %s353
      %s356 = sphi 0, %s355
      %s370 = sphi 0, %s356
      %s376 = sphi 0, %s378
      %s379 = sphi 0, %s376
      %s380 = sphi 0, %s379
      %s396 = sphi 0, %s380
    $region4: #{aspp_block_forward.1} parent=1 // loop_header_branch
      %28 = sbr.rel (%p26) target = $region8
    $region5: #{aspp_block_forward.1} parent=1 // loop_body
      %s30 = ssub.s32 %s25, 1
      %s31 = ssub.s32 %s25, 2
      %s32 = sadd.s32 %s25, 1
      %s33 = ssub.s32 %s25, %s32
      %p34 = scmp.eq.s32.totalorder %s33, 0
      %s36 = sadd.s32 %s35, 1
      %s37 = scalar_select %p34, %s35, %s36
      %p40 = pneg %p34
      %p41 = scmp.eq.s32.totalorder %s25, 1
      %p42 = por %p40, %p41
      %p43 = scmp.ne.s32.totalorder %s35, %s38
      %p44 = scmp.eq.s32.totalorder %s25, 0
      %p45 = por %p43, %p44
      %p46 = scmp.ne.s32.totalorder %s35, %s38
      %p47 = scmp.eq.s32.totalorder %s30, 1
      %p48 = por %p46, %p47
      %p49 = scmp.ne.s32.totalorder %s38, %s39
      %p50 = scmp.eq.s32.totalorder %s30, 0
      %p51 = por %p49, %p50
      %p52 = scmp.ne.s32.totalorder %s38, %s39
      %p53 = scmp.eq.s32.totalorder %s31, 1
      %p54 = por %p52, %p53
      %p56 = scmp.ne.s32.totalorder %s39, %s55
      %p57 = scmp.eq.s32.totalorder %s31, 0
      %p58 = por %p56, %p57
      %s60 = sadd.s32 %s59, 1
      %p63 = scmp.eq.s32.totalorder %s25, 1
      %p64 = scmp.ne.s32.totalorder %s59, %s61
      %p65 = scmp.eq.s32.totalorder %s25, 0
      %p66 = por %p64, %p65
      %p67 = scmp.ne.s32.totalorder %s59, %s61
      %p68 = scmp.eq.s32.totalorder %s30, 1
      %p69 = por %p67, %p68
      %p70 = scmp.ne.s32.totalorder %s61, %s62
      %p71 = scmp.eq.s32.totalorder %s30, 0
      %p72 = por %p70, %p71
      %p73 = scmp.ne.s32.totalorder %s61, %s62
      %p74 = scmp.eq.s32.totalorder %s31, 1
      %p75 = por %p73, %p74
      %p77 = scmp.ne.s32.totalorder %s62, %s76
      %p78 = scmp.eq.s32.totalorder %s31, 0
      %p79 = por %p77, %p78
      %s81 = sadd.s32 %s80, 1
      %p84 = scmp.eq.s32.totalorder %s25, 1
      %p85 = scmp.ne.s32.totalorder %s80, %s82
      %p86 = scmp.eq.s32.totalorder %s25, 0
      %p87 = por %p85, %p86
      %p88 = scmp.ne.s32.totalorder %s80, %s82
      %p89 = scmp.eq.s32.totalorder %s30, 1
      %p90 = por %p88, %p89
      %p91 = scmp.ne.s32.totalorder %s82, %s83
      %p92 = scmp.eq.s32.totalorder %s30, 0
      %p93 = por %p91, %p92
      %p94 = scmp.ne.s32.totalorder %s82, %s83
      %p95 = scmp.eq.s32.totalorder %s31, 1
      %p96 = por %p94, %p95
      %p98 = scmp.ne.s32.totalorder %s83, %s97
      %p99 = scmp.eq.s32.totalorder %s31, 0
      %p100 = por %p98, %p99
      %s102 = sadd.s32 %s101, 1
      %p105 = scmp.eq.s32.totalorder %s25, 1
      %p106 = scmp.ne.s32.totalorder %s101, %s103
      %p107 = scmp.eq.s32.totalorder %s25, 0
      %p108 = por %p106, %p107
      %p109 = scmp.ne.s32.totalorder %s101, %s103
      %p110 = scmp.eq.s32.totalorder %s30, 1
      %p111 = por %p109, %p110
      %p112 = scmp.ne.s32.totalorder %s103, %s104
      %p113 = scmp.eq.s32.totalorder %s30, 0
      %p114 = por %p112, %p113
      %p115 = scmp.ne.s32.totalorder %s103, %s104
      %p116 = scmp.eq.s32.totalorder %s31, 1
      %p117 = por %p115, %p116
      %p119 = scmp.ne.s32.totalorder %s104, %s118
      %p120 = scmp.eq.s32.totalorder %s31, 0
      %p121 = por %p119, %p120
      %s123 = sadd.s32 %s122, 1
      %p126 = scmp.eq.s32.totalorder %s25, 1
      %p127 = scmp.ne.s32.totalorder %s122, %s124
      %p128 = scmp.eq.s32.totalorder %s25, 0
      %p129 = por %p127, %p128
      %p130 = scmp.ne.s32.totalorder %s122, %s124
      %p131 = scmp.eq.s32.totalorder %s30, 1
      %p132 = por %p130, %p131
      %p133 = scmp.ne.s32.totalorder %s124, %s125
      %p134 = scmp.eq.s32.totalorder %s30, 0
      %p135 = por %p133, %p134
      %p136 = scmp.ne.s32.totalorder %s124, %s125
      %p137 = scmp.eq.s32.totalorder %s31, 1
      %p138 = por %p136, %p137
      %p140 = scmp.ne.s32.totalorder %s125, %s139
      %p141 = scmp.eq.s32.totalorder %s31, 0
      %p142 = por %p140, %p141
      %s144 = sadd.s32 %s143, 1
      %p147 = scmp.eq.s32.totalorder %s25, 1
      %p148 = scmp.ne.s32.totalorder %s143, %s145
      %p149 = scmp.eq.s32.totalorder %s25, 0
      %p150 = por %p148, %p149
      %p151 = scmp.ne.s32.totalorder %s143, %s145
      %p152 = scmp.eq.s32.totalorder %s30, 1
      %p153 = por %p151, %p152
      %p154 = scmp.ne.s32.totalorder %s145, %s146
      %p155 = scmp.eq.s32.totalorder %s30, 0
      %p156 = por %p154, %p155
      %p157 = scmp.ne.s32.totalorder %s145, %s146
      %p158 = scmp.eq.s32.totalorder %s31, 1
      %p159 = por %p157, %p158
      %p161 = scmp.ne.s32.totalorder %s146, %s160
      %p162 = scmp.eq.s32.totalorder %s31, 0
      %p163 = por %p161, %p162
      %s165 = sadd.s32 %s164, 1
      %p168 = scmp.eq.s32.totalorder %s25, 1
      %p169 = scmp.ne.s32.totalorder %s164, %s166
      %p170 = scmp.eq.s32.totalorder %s25, 0
      %p171 = por %p169, %p170
      %p172 = scmp.ne.s32.totalorder %s164, %s166
      %p173 = scmp.eq.s32.totalorder %s30, 1
      %p174 = por %p172, %p173
      %p175 = scmp.ne.s32.totalorder %s166, %s167
      %p176 = scmp.eq.s32.totalorder %s30, 0
      %p177 = por %p175, %p176
      %p178 = scmp.ne.s32.totalorder %s166, %s167
      %p179 = scmp.eq.s32.totalorder %s31, 1
      %p180 = por %p178, %p179
      %p182 = scmp.ne.s32.totalorder %s167, %s181
      %p183 = scmp.eq.s32.totalorder %s31, 0
      %p184 = por %p182, %p183
      %s186 = sadd.s32 %s185, 1
      %p189 = scmp.eq.s32.totalorder %s25, 1
      %p190 = scmp.ne.s32.totalorder %s185, %s187
      %p191 = scmp.eq.s32.totalorder %s25, 0
      %p192 = por %p190, %p191
      %p193 = scmp.ne.s32.totalorder %s185, %s187
      %p194 = scmp.eq.s32.totalorder %s30, 1
      %p195 = por %p193, %p194
      %p196 = scmp.ne.s32.totalorder %s187, %s188
      %p197 = scmp.eq.s32.totalorder %s30, 0
      %p198 = por %p196, %p197
      %p199 = scmp.ne.s32.totalorder %s187, %s188
      %p200 = scmp.eq.s32.totalorder %s31, 1
      %p201 = por %p199, %p200
      %p203 = scmp.ne.s32.totalorder %s188, %s202
      %p204 = scmp.eq.s32.totalorder %s31, 0
      %p205 = por %p203, %p204
      %s207 = sadd.s32 %s206, 1
      %p210 = scmp.eq.s32.totalorder %s25, 1
      %p211 = scmp.ne.s32.totalorder %s206, %s208
      %p212 = scmp.eq.s32.totalorder %s25, 0
      %p213 = por %p211, %p212
      %p214 = scmp.ne.s32.totalorder %s206, %s208
      %p215 = scmp.eq.s32.totalorder %s30, 1
      %p216 = por %p214, %p215
      %p217 = scmp.ne.s32.totalorder %s208, %s209
      %p218 = scmp.eq.s32.totalorder %s30, 0
      %p219 = por %p217, %p218
      %p220 = scmp.ne.s32.totalorder %s208, %s209
      %p221 = scmp.eq.s32.totalorder %s31, 1
      %p222 = por %p220, %p221
      %p224 = scmp.ne.s32.totalorder %s209, %s223
      %p225 = scmp.eq.s32.totalorder %s31, 0
      %p226 = por %p224, %p225
      %s228 = sadd.s32 %s227, 1
      %p231 = scmp.eq.s32.totalorder %s25, 1
      %p232 = scmp.ne.s32.totalorder %s227, %s229
      %p233 = scmp.eq.s32.totalorder %s25, 0
      %p234 = por %p232, %p233
      %p235 = scmp.ne.s32.totalorder %s227, %s229
      %p236 = scmp.eq.s32.totalorder %s30, 1
      %p237 = por %p235, %p236
      %p238 = scmp.ne.s32.totalorder %s229, %s230
      %p239 = scmp.eq.s32.totalorder %s30, 0
      %p240 = por %p238, %p239
      %p241 = scmp.ne.s32.totalorder %s229, %s230
      %p242 = scmp.eq.s32.totalorder %s31, 1
      %p243 = por %p241, %p242
      %p245 = scmp.ne.s32.totalorder %s230, %s244
      %p246 = scmp.eq.s32.totalorder %s31, 0
      %p247 = por %p245, %p246
      %s249 = sadd.s32 %s248, 1
      %p252 = scmp.eq.s32.totalorder %s25, 1
      %p253 = scmp.ne.s32.totalorder %s248, %s250
      %p254 = scmp.eq.s32.totalorder %s25, 0
      %p255 = por %p253, %p254
      %p256 = scmp.ne.s32.totalorder %s248, %s250
      %p257 = scmp.eq.s32.totalorder %s30, 1
      %p258 = por %p256, %p257
      %p259 = scmp.ne.s32.totalorder %s250, %s251
      %p260 = scmp.eq.s32.totalorder %s30, 0
      %p261 = por %p259, %p260
      %p262 = scmp.ne.s32.totalorder %s250, %s251
      %p263 = scmp.eq.s32.totalorder %s31, 1
      %p264 = por %p262, %p263
      %p266 = scmp.ne.s32.totalorder %s251, %s265
      %p267 = scmp.eq.s32.totalorder %s31, 0
      %p268 = por %p266, %p267
      %s270 = sadd.s32 %s269, 1
      %p273 = scmp.eq.s32.totalorder %s25, 1
      %p274 = scmp.ne.s32.totalorder %s269, %s271
      %p275 = scmp.eq.s32.totalorder %s25, 0
      %p276 = por %p274, %p275
      %p277 = scmp.ne.s32.totalorder %s269, %s271
      %p278 = scmp.eq.s32.totalorder %s30, 1
      %p279 = por %p277, %p278
      %p280 = scmp.ne.s32.totalorder %s271, %s272
      %p281 = scmp.eq.s32.totalorder %s30, 0
      %p282 = por %p280, %p281
      %p283 = scmp.ne.s32.totalorder %s271, %s272
      %p284 = scmp.eq.s32.totalorder %s31, 1
      %p285 = por %p283, %p284
      %p287 = scmp.ne.s32.totalorder %s272, %s286
      %p288 = scmp.eq.s32.totalorder %s31, 0
      %p289 = por %p287, %p288
      %s291 = sadd.s32 %s290, 1
      %p294 = scmp.eq.s32.totalorder %s25, 1
      %p295 = scmp.ne.s32.totalorder %s290, %s292
      %p296 = scmp.eq.s32.totalorder %s25, 0
      %p297 = por %p295, %p296
      %p298 = scmp.ne.s32.totalorder %s290, %s292
      %p299 = scmp.eq.s32.totalorder %s30, 1
      %p300 = por %p298, %p299
      %p301 = scmp.ne.s32.totalorder %s292, %s293
      %p302 = scmp.eq.s32.totalorder %s30, 0
      %p303 = por %p301, %p302
      %p304 = scmp.ne.s32.totalorder %s292, %s293
      %p305 = scmp.eq.s32.totalorder %s31, 1
      %p306 = por %p304, %p305
      %p308 = scmp.ne.s32.totalorder %s293, %s307
      %p309 = scmp.eq.s32.totalorder %s31, 0
      %p310 = por %p308, %p309
      %s312 = sadd.s32 %s311, 1
      %p315 = scmp.eq.s32.totalorder %s25, 1
      %p316 = scmp.ne.s32.totalorder %s311, %s313
      %p317 = scmp.eq.s32.totalorder %s25, 0
      %p318 = por %p316, %p317
      %p319 = scmp.ne.s32.totalorder %s311, %s313
      %p320 = scmp.eq.s32.totalorder %s30, 1
      %p321 = por %p319, %p320
      %p322 = scmp.ne.s32.totalorder %s313, %s314
      %p323 = scmp.eq.s32.totalorder %s30, 0
      %p324 = por %p322, %p323
      %p325 = scmp.ne.s32.totalorder %s313, %s314
      %p326 = scmp.eq.s32.totalorder %s31, 1
      %p327 = por %p325, %p326
      %p329 = scmp.ne.s32.totalorder %s314, %s328
      %p330 = scmp.eq.s32.totalorder %s31, 0
      %p331 = por %p329, %p330
      %s333 = sadd.s32 %s332, 1
      %p336 = scmp.eq.s32.totalorder %s25, 1
      %p337 = scmp.ne.s32.totalorder %s332, %s334
      %p338 = scmp.eq.s32.totalorder %s25, 0
      %p339 = por %p337, %p338
      %p340 = scmp.ne.s32.totalorder %s332, %s334
      %p341 = scmp.eq.s32.totalorder %s30, 1
      %p342 = por %p340, %p341
      %p343 = scmp.ne.s32.totalorder %s334, %s335
      %p344 = scmp.eq.s32.totalorder %s30, 0
      %p345 = por %p343, %p344
      %p346 = scmp.ne.s32.totalorder %s334, %s335
      %p347 = scmp.eq.s32.totalorder %s31, 1
      %p348 = por %p346, %p347
      %p350 = scmp.ne.s32.totalorder %s335, %s349
      %p351 = scmp.eq.s32.totalorder %s31, 0
      %p352 = por %p350, %p351
      %s354 = sadd.s32 %s353, 1
      %p357 = scmp.eq.s32.totalorder %s25, 1
      %p358 = scmp.ne.s32.totalorder %s353, %s355
      %p359 = scmp.eq.s32.totalorder %s25, 0
      %p360 = por %p358, %p359
      %p361 = scmp.ne.s32.totalorder %s353, %s355
      %p362 = scmp.eq.s32.totalorder %s30, 1
      %p363 = por %p361, %p362
      %p364 = scmp.ne.s32.totalorder %s355, %s356
      %p365 = scmp.eq.s32.totalorder %s30, 0
      %p366 = por %p364, %p365
      %p367 = scmp.ne.s32.totalorder %s355, %s356
      %p368 = scmp.eq.s32.totalorder %s31, 1
      %p369 = por %p367, %p368
      %p371 = scmp.ne.s32.totalorder %s356, %s370
      %p372 = scmp.eq.s32.totalorder %s31, 0
      %p373 = por %p371, %p372
      %s374 = ssub.s32 %s25, %s32
      %p375 = scmp.eq.s32.totalorder %s374, 0
      %s377 = sadd.s32 %s376, 1
      %s378 = scalar_select %p375, %s376, %s377
      %p381 = pneg %p375
      %p382 = scmp.eq.s32.totalorder %s25, 1
      %p383 = por %p381, %p382
      %p384 = scmp.ne.s32.totalorder %s376, %s379
      %p385 = scmp.eq.s32.totalorder %s25, 0
      %p386 = por %p384, %p385
      %p387 = scmp.ne.s32.totalorder %s376, %s379
      %p388 = scmp.eq.s32.totalorder %s30, 1
      %p389 = por %p387, %p388
      %p390 = scmp.ne.s32.totalorder %s379, %s380
      %p391 = scmp.eq.s32.totalorder %s30, 0
      %p392 = por %p390, %p391
      %p393 = scmp.ne.s32.totalorder %s379, %s380
      %p394 = scmp.eq.s32.totalorder %s31, 1
      %p395 = por %p393, %p394
      %p397 = scmp.ne.s32.totalorder %s380, %s396
      %p398 = scmp.eq.s32.totalorder %s31, 0
      %p399 = por %p397, %p398
      %p400 = scmp.le.s32.totalorder 1, %s25
      %p401 = scmp.lt.s32.totalorder %s25, 3
      %p402 = pnand %p400, %p401
      %p403 = pneg %p402
      // Predicated region
      $region9: #{aspp_block_forward.1} parent=5 // pred_check
        _
      $region10: #{aspp_block_forward.1} parent=5 // pred_check_branch
        %405 = sbr.rel (%p402) target = $region12
      $region11: #{aspp_block_forward.1} parent=5 // pred_region
        %s406 = ssub.s32 %s25, 1
        // Predicated region
        $region13: #{aspp_block_forward.1} parent=11 // pred_check
          %p407 = pneg %p72
        $region14: #{aspp_block_forward.1} parent=11 // pred_check_branch
          %409 = sbr.rel (%p407) target = $region16
        $region15: #{aspp_block_forward.1} parent=11 // pred_region
          _
        $region16: #{aspp_block_forward.1} parent=11 // pred_fallthru
          _
        // Predicated region
        $region17: #{aspp_block_forward.1} parent=11 // pred_check
          %p410 = pneg %p93
        $region18: #{aspp_block_forward.1} parent=11 // pred_check_branch
          %412 = sbr.rel (%p410) target = $region20
        $region19: #{aspp_block_forward.1} parent=11 // pred_region
          _
        $region20: #{aspp_block_forward.1} parent=11 // pred_fallthru
          _
        // Predicated region
        $region21: #{aspp_block_forward.1} parent=11 // pred_check
          %p413 = pneg %p114
        $region22: #{aspp_block_forward.1} parent=11 // pred_check_branch
          %415 = sbr.rel (%p413) target = $region24
        $region23: #{aspp_block_forward.1} parent=11 // pred_region
          _
        $region24: #{aspp_block_forward.1} parent=11 // pred_fallthru
          _
        // Predicated region
        $region25: #{aspp_block_forward.1} parent=11 // pred_check
          %p416 = pneg %p135
        $region26: #{aspp_block_forward.1} parent=11 // pred_check_branch
          %418 = sbr.rel (%p416) target = $region28
        $region27: #{aspp_block_forward.1} parent=11 // pred_region
          _
        $region28: #{aspp_block_forward.1} parent=11 // pred_fallthru
          _
        // Predicated region
        $region29: #{aspp_block_forward.1} parent=11 // pred_check
          %p419 = pneg %p156
        $region30: #{aspp_block_forward.1} parent=11 // pred_check_branch
          %421 = sbr.rel (%p419) target = $region32
        $region31: #{aspp_block_forward.1} parent=11 // pred_region
          _
        $region32: #{aspp_block_forward.1} parent=11 // pred_fallthru
          _
        // Predicated region
        $region33: #{aspp_block_forward.1} parent=11 // pred_check
          %p422 = pneg %p177
        $region34: #{aspp_block_forward.1} parent=11 // pred_check_branch
          %424 = sbr.rel (%p422) target = $region36
        $region35: #{aspp_block_forward.1} parent=11 // pred_region
          _
        $region36: #{aspp_block_forward.1} parent=11 // pred_fallthru
          _
        // Predicated region
        $region37: #{aspp_block_forward.1} parent=11 // pred_check
          %p425 = pneg %p198
        $region38: #{aspp_block_forward.1} parent=11 // pred_check_branch
          %427 = sbr.rel (%p425) target = $region40
        $region39: #{aspp_block_forward.1} parent=11 // pred_region
          _
        $region40: #{aspp_block_forward.1} parent=11 // pred_fallthru
          _
        // Predicated region
        $region41: #{aspp_block_forward.1} parent=11 // pred_check
          %p428 = pneg %p219
        $region42: #{aspp_block_forward.1} parent=11 // pred_check_branch
          %430 = sbr.rel (%p428) target = $region44
        $region43: #{aspp_block_forward.1} parent=11 // pred_region
          _
        $region44: #{aspp_block_forward.1} parent=11 // pred_fallthru
          _
        // Predicated region
        $region45: #{aspp_block_forward.1} parent=11 // pred_check
          %p431 = pneg %p240
        $region46: #{aspp_block_forward.1} parent=11 // pred_check_branch
          %433 = sbr.rel (%p431) target = $region48
        $region47: #{aspp_block_forward.1} parent=11 // pred_region
          _
        $region48: #{aspp_block_forward.1} parent=11 // pred_fallthru
          _
        // Predicated region
        $region49: #{aspp_block_forward.1} parent=11 // pred_check
          %p434 = pneg %p261
        $region50: #{aspp_block_forward.1} parent=11 // pred_check_branch
          %436 = sbr.rel (%p434) target = $region52
        $region51: #{aspp_block_forward.1} parent=11 // pred_region
          _
        $region52: #{aspp_block_forward.1} parent=11 // pred_fallthru
          _
        // Predicated region
        $region53: #{aspp_block_forward.1} parent=11 // pred_check
          %p437 = pneg %p282
        $region54: #{aspp_block_forward.1} parent=11 // pred_check_branch
          %439 = sbr.rel (%p437) target = $region56
        $region55: #{aspp_block_forward.1} parent=11 // pred_region
          _
        $region56: #{aspp_block_forward.1} parent=11 // pred_fallthru
          _
        // Predicated region
        $region57: #{aspp_block_forward.1} parent=11 // pred_check
          %p440 = pneg %p303
        $region58: #{aspp_block_forward.1} parent=11 // pred_check_branch
          %442 = sbr.rel (%p440) target = $region60
        $region59: #{aspp_block_forward.1} parent=11 // pred_region
          _
        $region60: #{aspp_block_forward.1} parent=11 // pred_fallthru
          _
        // Predicated region
        $region61: #{aspp_block_forward.1} parent=11 // pred_check
          %p443 = pneg %p324
        $region62: #{aspp_block_forward.1} parent=11 // pred_check_branch
          %445 = sbr.rel (%p443) target = $region64
        $region63: #{aspp_block_forward.1} parent=11 // pred_region
          _
        $region64: #{aspp_block_forward.1} parent=11 // pred_fallthru
          _
        // Predicated region
        $region65: #{aspp_block_forward.1} parent=11 // pred_check
          %p446 = pneg %p345
        $region66: #{aspp_block_forward.1} parent=11 // pred_check_branch
          %448 = sbr.rel (%p446) target = $region68
        $region67: #{aspp_block_forward.1} parent=11 // pred_region
          _
        $region68: #{aspp_block_forward.1} parent=11 // pred_fallthru
          _
        // Predicated region
        $region69: #{aspp_block_forward.1} parent=11 // pred_check
          %p449 = pneg %p366
        $region70: #{aspp_block_forward.1} parent=11 // pred_check_branch
          %451 = sbr.rel (%p449) target = $region72
        $region71: #{aspp_block_forward.1} parent=11 // pred_region
          _
        $region72: #{aspp_block_forward.1} parent=11 // pred_fallthru
          _
      $region12: #{aspp_block_forward.1} parent=5 // pred_fallthru
        _
      %p452 = scmp.lt.s32.totalorder %s25, 2
      // Predicated region
      $region73: #{aspp_block_forward.1} parent=5 // pred_check
        %p453 = pneg %p452
      $region74: #{aspp_block_forward.1} parent=5 // pred_check_branch
        %455 = sbr.rel (%p453) target = $region76
      $region75: #{aspp_block_forward.1} parent=5 // pred_region
        // Predicated region
        $region77: #{aspp_block_forward.1} parent=75 // pred_check
          %p456 = pneg %p45
        $region78: #{aspp_block_forward.1} parent=75 // pred_check_branch
          %458 = sbr.rel (%p456) target = $region80
        $region79: #{aspp_block_forward.1} parent=75 // pred_region
          %p459 = scmp.lt.s32.totalorder %s25, 1
          %s460 = scalar_select %p459, %s25, 1
          %s461 = smul.addr %s460, 32
          %s462 = smul.addr %s461, 8
          %s463 = scalar_lea.vmem %s0, %s462
        $region80: #{aspp_block_forward.1} parent=75 // pred_fallthru
          _
      $region76: #{aspp_block_forward.1} parent=5 // pred_fallthru
        _
      %p464 = scmp.le.s32.totalorder 1, %s25
      %p465 = scmp.lt.s32.totalorder %s25, 3
      %p466 = pnand %p464, %p465
      %p467 = pneg %p466
      // Predicated region
      $region81: #{aspp_block_forward.1} parent=5 // pred_check
        _
      $region82: #{aspp_block_forward.1} parent=5 // pred_check_branch
        %469 = sbr.rel (%p466) target = $region84
      $region83: #{aspp_block_forward.1} parent=5 // pred_region
        %s470 = ssub.s32 %s25, 1
        %p471 = scmp.lt.s32.totalorder %s30, 1
        %s472 = scalar_select %p471, %s30, 1
        %s473 = smul.addr %s472, 32
        %s474 = smul.addr %s473, 8
        %s475 = scalar_lea.vmem %s0, %s474
        %p476 = pneg %p51
        %p477 = pneg %p48
        %p478 = pneg %p72
        %p479 = pneg %p69
        %p480 = pneg %p93
        %p481 = pneg %p90
        %p482 = pneg %p114
        %p483 = pneg %p111
        %p484 = pneg %p135
        %p485 = pneg %p132
        %p486 = pneg %p156
        %p487 = pneg %p153
        %p488 = pneg %p177
        %p489 = pneg %p174
        %p490 = pneg %p198
        %p491 = pneg %p195
        %p492 = pneg %p219
        %p493 = pneg %p216
        %p494 = pneg %p240
        %p495 = pneg %p237
        %p496 = pneg %p261
        %p497 = pneg %p258
        %p498 = pneg %p282
        %p499 = pneg %p279
        %p500 = pneg %p303
        %p501 = pneg %p300
        %p502 = pneg %p324
        %p503 = pneg %p321
        %p504 = pneg %p345
        %p505 = pneg %p342
        %p506 = pneg %p366
        %p507 = pneg %p363
        %p508 = pneg %p392
        %p509 = pneg %p389
        %s510 = sand.u32 %s379, 1
        %s511 = scalar_lea.sflag [#allocation4], %s510
        %s512 = sand.u32 %s379, 1
        %s513 = smul.addr %s512, 256
        %s514 = scalar_lea.vmem [#allocation3], %s513
        %p515 = scmp.lt.s32.totalorder %s30, 1
        %s516 = scalar_select %p515, %s30, 1
        %s517 = smul.addr %s516, 32
        %s518 = smul.addr %s517, 8
        %s519 = scalar_lea.vmem %s0, %s518
        %v520 = vld [vmem:[%s519] sm:$0xff]
        %v521 = vld [vmem:[%s519 + $0x8] sm:$0xff]
        %v522 = vld [vmem:[%s519 + $0x10] sm:$0xff]
        %v523 = vld [vmem:[%s519 + $0x18] sm:$0xff]
        %v524 = vld [vmem:[%s519 + $0x20] sm:$0xff]
        %v525 = vld [vmem:[%s519 + $0x28] sm:$0xff]
        %v526 = vld [vmem:[%s519 + $0x30] sm:$0xff]
        %v527 = vld [vmem:[%s519 + $0x38] sm:$0xff]
        %v528 = vld [vmem:[%s519 + $0x40] sm:$0xff]
        %v529 = vld [vmem:[%s519 + $0x48] sm:$0xff]
        %v530 = vld [vmem:[%s519 + $0x50] sm:$0xff]
        %v531 = vld [vmem:[%s519 + $0x58] sm:$0xff]
        %v532 = vld [vmem:[%s519 + $0x60] sm:$0xff]
        %v533 = vld [vmem:[%s519 + $0x68] sm:$0xff]
        %v534 = vld [vmem:[%s519 + $0x70] sm:$0xff]
        %v535 = vld [vmem:[%s519 + $0x78] sm:$0xff]
        %v536 = vld [vmem:[%s519 + $0x80] sm:$0xff]
        %v537 = vld [vmem:[%s519 + $0x88] sm:$0xff]
        %v538 = vld [vmem:[%s519 + $0x90] sm:$0xff]
        %v539 = vld [vmem:[%s519 + $0x98] sm:$0xff]
        %v540 = vld [vmem:[%s519 + $0xa0] sm:$0xff]
        %v541 = vld [vmem:[%s519 + $0xa8] sm:$0xff]
        %v542 = vld [vmem:[%s519 + $0xb0] sm:$0xff]
        %v543 = vld [vmem:[%s519 + $0xb8] sm:$0xff]
        %v544 = vld [vmem:[%s519 + $0xc0] sm:$0xff]
        %v545 = vld [vmem:[%s519 + $0xc8] sm:$0xff]
        %v546 = vld [vmem:[%s519 + $0xd0] sm:$0xff]
        %v547 = vld [vmem:[%s519 + $0xd8] sm:$0xff]
        %v548 = vld [vmem:[%s519 + $0xe0] sm:$0xff]
        %v549 = vld [vmem:[%s519 + $0xe8] sm:$0xff]
        %v550 = vld [vmem:[%s519 + $0xf0] sm:$0xff]
        %v551 = vld [vmem:[%s519 + $0xf8] sm:$0xff]
        %v552 = vadd.f32 %v520, %v521
        %v553 = vadd.f32 %v552, %v522
        %v554 = vadd.f32 %v553, %v523
        %v555 = vadd.f32 %v554, %v524
        %v556 = vadd.f32 %v555, %v525
        %v557 = vadd.f32 %v556, %v526
        %v558 = vadd.f32 %v557, %v527
        %v559 = vadd.f32 %v558, %v528
        %v560 = vadd.f32 %v559, %v529
        %v561 = vadd.f32 %v560, %v530
        %v562 = vadd.f32 %v561, %v531
        %v563 = vadd.f32 %v562, %v532
        %v564 = vadd.f32 %v563, %v533
        %v565 = vadd.f32 %v564, %v534
        %v566 = vadd.f32 %v565, %v535
        %v567 = vadd.f32 %v566, %v536
        %v568 = vadd.f32 %v567, %v537
        %v569 = vadd.f32 %v568, %v538
        %v570 = vadd.f32 %v569, %v539
        %v571 = vadd.f32 %v570, %v540
        %v572 = vadd.f32 %v571, %v541
        %v573 = vadd.f32 %v572, %v542
        %v574 = vadd.f32 %v573, %v543
        %v575 = vadd.f32 %v574, %v544
        %v576 = vadd.f32 %v575, %v545
        %v577 = vadd.f32 %v576, %v546
        %v578 = vadd.f32 %v577, %v547
        %v579 = vadd.f32 %v578, %v548
        %v580 = vadd.f32 %v579, %v549
        %v581 = vadd.f32 %v580, %v550
        %v582 = vadd.f32 %v581, %v551
        %v583 = vrot.slane %v582, 4
        %v584 = vadd.f32 %v582, %v583
        %v585 = vrot.slane %v584, 2
        %v586 = vadd.f32 %v584, %v585
        %v587 = vrot.slane %v586, 1
        %v588 = vadd.f32 %v586, %v587
        %v589 = vrcp.pop 256.0
        %v590 = vmul.f32 %v588, %v589
        %v591 = vld [vmem:[%s4] sm:$0xff]
        %v592 = vld [vmem:[%s4 + $0x8] sm:$0xff]
        %v593 = vld [vmem:[%s4 + $0x10] sm:$0xff]
        %v594 = vld [vmem:[%s4 + $0x18] sm:$0xff]
        %v595 = vld [vmem:[%s4 + $0x20] sm:$0xff]
        %v596 = vld [vmem:[%s4 + $0x28] sm:$0xff]
        %v597 = vld [vmem:[%s4 + $0x30] sm:$0xff]
        %v598 = vld [vmem:[%s4 + $0x38] sm:$0xff]
        %v599 = vld [vmem:[%s4 + $0x40] sm:$0xff]
        %v600 = vld [vmem:[%s4 + $0x48] sm:$0xff]
        %v601 = vld [vmem:[%s4 + $0x50] sm:$0xff]
        %v602 = vld [vmem:[%s4 + $0x58] sm:$0xff]
        %v603 = vld [vmem:[%s4 + $0x60] sm:$0xff]
        %v604 = vld [vmem:[%s4 + $0x68] sm:$0xff]
        %v605 = vld [vmem:[%s4 + $0x70] sm:$0xff]
        %v606 = vld [vmem:[%s4 + $0x78] sm:$0xff]
        %607 = vmatprep.subr.mxu0 0.0
        %608 = vmatpush1.msra.mxu0 %v591
        %609 = vmatprep.subr.mxu0 0.0
        %610 = vmatpush1.msra.mxu0 %v592
        %611 = vmatprep.subr.mxu0 0.0
        %612 = vmatpush1.msra.mxu0 %v593
        %613 = vmatprep.subr.mxu0 0.0
        %614 = vmatpush1.msra.mxu0 %v594
        %615 = vmatprep.subr.mxu0 0.0
        %616 = vmatpush1.msra.mxu0 %v595
        %617 = vmatprep.subr.mxu0 0.0
        %618 = vmatpush1.msra.mxu0 %v596
        %619 = vmatprep.subr.mxu0 0.0
        %620 = vmatpush1.msra.mxu0 %v597
        %621 = vmatprep.subr.mxu0 0.0
        %622 = vmatpush1.msra.mxu0 %v598
        %623 = vmatprep.subr.mxu0 0.0
        %624 = vmatpush1.msra.mxu0 %v599
        %625 = vmatprep.subr.mxu0 0.0
        %626 = vmatpush1.msra.mxu0 %v600
        %627 = vmatprep.subr.mxu0 0.0
        %628 = vmatpush1.msra.mxu0 %v601
        %629 = vmatprep.subr.mxu0 0.0
        %630 = vmatpush1.msra.mxu0 %v602
        %631 = vmatprep.subr.mxu0 0.0
        %632 = vmatpush1.msra.mxu0 %v603
        %633 = vmatprep.subr.mxu0 0.0
        %634 = vmatpush1.msra.mxu0 %v604
        %635 = vmatprep.subr.mxu0 0.0
        %636 = vmatpush1.msra.mxu0 %v605
        %637 = vmatprep.subr.mxu0 0.0
        %638 = vmatpush1.msra.mxu0 %v606
        %639 = vmatprep.subr.mxu0 0.0
        %640 = vmatpush1.msra.mxu0 0.0
        %641 = vmatprep.subr.mxu0 0.0
        %642 = vmatpush1.msra.mxu0 0.0
        %643 = vmatprep.subr.mxu0 0.0
        %644 = vmatpush1.msra.mxu0 0.0
        %645 = vmatprep.subr.mxu0 0.0
        %646 = vmatpush1.msra.mxu0 0.0
        %647 = vmatprep.subr.mxu0 0.0
        %648 = vmatpush1.msra.mxu0 0.0
        %649 = vmatprep.subr.mxu0 0.0
        %650 = vmatpush1.msra.mxu0 0.0
        %651 = vmatprep.subr.mxu0 0.0
        %652 = vmatpush1.msra.mxu0 0.0
        %653 = vmatprep.subr.mxu0 0.0
        %654 = vmatpush1.msra.mxu0 0.0
        %655 = vmatprep.subr.mxu0 0.0
        %656 = vmatpush1.msra.mxu0 0.0
        %657 = vmatprep.subr.mxu0 0.0
        %658 = vmatpush1.msra.mxu0 0.0
        %659 = vmatprep.subr.mxu0 0.0
        %660 = vmatpush1.msra.mxu0 0.0
        %661 = vmatprep.subr.mxu0 0.0
        %662 = vmatpush1.msra.mxu0 0.0
        %663 = vmatprep.subr.mxu0 0.0
        %664 = vmatpush1.msra.mxu0 0.0
        %665 = vmatprep.subr.mxu0 0.0
        %666 = vmatpush1.msra.mxu0 0.0
        %667 = vmatprep.subr.mxu0 0.0
        %668 = vmatpush1.msra.mxu0 0.0
        %669 = vmatprep.subr.mxu0 0.0
        %670 = vmatpush1.msra.mxu0 0.0
        %671 = vmatprep.mubr.f32.mxu0 0.0
        %672 = vmatmul.mubr.f32.gmra.mrb[0].mxu0 %v590
        %v673 = vpop.f32.mrb[0].mxu0
        %v674 = vadd.f32 0.0, %v673
        %v675 = vpop.f32.mrb[0].mxu0
        %676 = vdwg.mxu0
        %v677 = vld [vmem:[%s5] sm:$0x1]
        %v678 = vmul.f32 %v674, %v677
        %v679 = vld [vmem:[%s6] sm:$0x1]
        %v680 = vadd.f32 %v678, %v679
        %v681 = vmax.f32 %v680, 0.0
        %v682 = vld [vmem:[%s13] sm:$0xff]
        %v683 = vld [vmem:[%s13 + $0x8] sm:$0xff]
        %v684 = vld [vmem:[%s13 + $0x10] sm:$0xff]
        %v685 = vld [vmem:[%s13 + $0x18] sm:$0xff]
        %v686 = vld [vmem:[%s13 + $0x20] sm:$0xff]
        %v687 = vld [vmem:[%s13 + $0x28] sm:$0xff]
        %v688 = vld [vmem:[%s13 + $0x30] sm:$0xff]
        %v689 = vld [vmem:[%s13 + $0x38] sm:$0xff]
        %v690 = vld [vmem:[%s13 + $0x40] sm:$0xff]
        %v691 = vld [vmem:[%s13 + $0x48] sm:$0xff]
        %v692 = vld [vmem:[%s13 + $0x50] sm:$0xff]
        %v693 = vld [vmem:[%s13 + $0x58] sm:$0xff]
        %v694 = vld [vmem:[%s13 + $0x60] sm:$0xff]
        %v695 = vld [vmem:[%s13 + $0x68] sm:$0xff]
        %v696 = vld [vmem:[%s13 + $0x70] sm:$0xff]
        %v697 = vld [vmem:[%s13 + $0x78] sm:$0xff]
        %698 = vmatprep.subr.mxu0 0.0
        %699 = vmatpush1.msra.mxu0 %v682
        %700 = vmatprep.subr.mxu0 0.0
        %701 = vmatpush1.msra.mxu0 %v683
        %702 = vmatprep.subr.mxu0 0.0
        %703 = vmatpush1.msra.mxu0 %v684
        %704 = vmatprep.subr.mxu0 0.0
        %705 = vmatpush1.msra.mxu0 %v685
        %706 = vmatprep.subr.mxu0 0.0
        %707 = vmatpush1.msra.mxu0 %v686
        %708 = vmatprep.subr.mxu0 0.0
        %709 = vmatpush1.msra.mxu0 %v687
        %710 = vmatprep.subr.mxu0 0.0
        %711 = vmatpush1.msra.mxu0 %v688
        %712 = vmatprep.subr.mxu0 0.0
        %713 = vmatpush1.msra.mxu0 %v689
        %714 = vmatprep.subr.mxu0 0.0
        %715 = vmatpush1.msra.mxu0 %v690
        %716 = vmatprep.subr.mxu0 0.0
        %717 = vmatpush1.msra.mxu0 %v691
        %718 = vmatprep.subr.mxu0 0.0
        %719 = vmatpush1.msra.mxu0 %v692
        %720 = vmatprep.subr.mxu0 0.0
        %721 = vmatpush1.msra.mxu0 %v693
        %722 = vmatprep.subr.mxu0 0.0
        %723 = vmatpush1.msra.mxu0 %v694
        %724 = vmatprep.subr.mxu0 0.0
        %725 = vmatpush1.msra.mxu0 %v695
        %726 = vmatprep.subr.mxu0 0.0
        %727 = vmatpush1.msra.mxu0 %v696
        %728 = vmatprep.subr.mxu0 0.0
        %729 = vmatpush1.msra.mxu0 %v697
        %730 = vmatprep.subr.mxu0 0.0
        %731 = vmatpush1.msra.mxu0 0.0
        %732 = vmatprep.subr.mxu0 0.0
        %733 = vmatpush1.msra.mxu0 0.0
        %734 = vmatprep.subr.mxu0 0.0
        %735 = vmatpush1.msra.mxu0 0.0
        %736 = vmatprep.subr.mxu0 0.0
        %737 = vmatpush1.msra.mxu0 0.0
        %738 = vmatprep.subr.mxu0 0.0
        %739 = vmatpush1.msra.mxu0 0.0
        %740 = vmatprep.subr.mxu0 0.0
        %741 = vmatpush1.msra.mxu0 0.0
        %742 = vmatprep.subr.mxu0 0.0
        %743 = vmatpush1.msra.mxu0 0.0
        %744 = vmatprep.subr.mxu0 0.0
        %745 = vmatpush1.msra.mxu0 0.0
        %746 = vmatprep.subr.mxu0 0.0
        %747 = vmatpush1.msra.mxu0 0.0
        %748 = vmatprep.subr.mxu0 0.0
        %749 = vmatpush1.msra.mxu0 0.0
        %750 = vmatprep.subr.mxu0 0.0
        %751 = vmatpush1.msra.mxu0 0.0
        %752 = vmatprep.subr.mxu0 0.0
        %753 = vmatpush1.msra.mxu0 0.0
        %754 = vmatprep.subr.mxu0 0.0
        %755 = vmatpush1.msra.mxu0 0.0
        %756 = vmatprep.subr.mxu0 0.0
        %757 = vmatpush1.msra.mxu0 0.0
        %758 = vmatprep.subr.mxu0 0.0
        %759 = vmatpush1.msra.mxu0 0.0
        %760 = vmatprep.subr.mxu0 0.0
        %761 = vmatpush1.msra.mxu0 0.0
        %762 = vmatprep.mubr.f32.mxu0 0.0
        %763 = vmatmul.mubr.f32.gmra.mrb[0].mxu0 %v681
        %v764 = vpop.f32.mrb[0].mxu0
        %v765 = vadd.f32 0.0, %v764
        %v766 = vpop.f32.mrb[0].mxu0
        %767 = vdwg.mxu0
        %v768 = vld [vmem:[%s1] sm:$0xff]
        %v769 = vld [vmem:[%s1 + $0x8] sm:$0xff]
        %v770 = vld [vmem:[%s1 + $0x10] sm:$0xff]
        %v771 = vld [vmem:[%s1 + $0x18] sm:$0xff]
        %v772 = vld [vmem:[%s1 + $0x20] sm:$0xff]
        %v773 = vld [vmem:[%s1 + $0x28] sm:$0xff]
        %v774 = vld [vmem:[%s1 + $0x30] sm:$0xff]
        %v775 = vld [vmem:[%s1 + $0x38] sm:$0xff]
        %v776 = vld [vmem:[%s1 + $0x40] sm:$0xff]
        %v777 = vld [vmem:[%s1 + $0x48] sm:$0xff]
        %v778 = vld [vmem:[%s1 + $0x50] sm:$0xff]
        %v779 = vld [vmem:[%s1 + $0x58] sm:$0xff]
        %v780 = vld [vmem:[%s1 + $0x60] sm:$0xff]
        %v781 = vld [vmem:[%s1 + $0x68] sm:$0xff]
        %v782 = vld [vmem:[%s1 + $0x70] sm:$0xff]
        %v783 = vld [vmem:[%s1 + $0x78] sm:$0xff]
        %784 = vmatprep.subr.mxu0 0.0
        %785 = vmatpush1.msra.mxu0 %v768
        %786 = vmatprep.subr.mxu0 0.0
        %787 = vmatpush1.msra.mxu0 %v769
        %788 = vmatprep.subr.mxu0 0.0
        %789 = vmatpush1.msra.mxu0 %v770
        %790 = vmatprep.subr.mxu0 0.0
        %791 = vmatpush1.msra.mxu0 %v771
        %792 = vmatprep.subr.mxu0 0.0
        %793 = vmatpush1.msra.mxu0 %v772
        %794 = vmatprep.subr.mxu0 0.0
        %795 = vmatpush1.msra.mxu0 %v773
        %796 = vmatprep.subr.mxu0 0.0
        %797 = vmatpush1.msra.mxu0 %v774
        %798 = vmatprep.subr.mxu0 0.0
        %799 = vmatpush1.msra.mxu0 %v775
        %800 = vmatprep.subr.mxu0 0.0
        %801 = vmatpush1.msra.mxu0 %v776
        %802 = vmatprep.subr.mxu0 0.0
        %803 = vmatpush1.msra.mxu0 %v777
        %804 = vmatprep.subr.mxu0 0.0
        %805 = vmatpush1.msra.mxu0 %v778
        %806 = vmatprep.subr.mxu0 0.0
        %807 = vmatpush1.msra.mxu0 %v779
        %808 = vmatprep.subr.mxu0 0.0
        %809 = vmatpush1.msra.mxu0 %v780
        %810 = vmatprep.subr.mxu0 0.0
        %811 = vmatpush1.msra.mxu0 %v781
        %812 = vmatprep.subr.mxu0 0.0
        %813 = vmatpush1.msra.mxu0 %v782
        %814 = vmatprep.subr.mxu0 0.0
        %815 = vmatpush1.msra.mxu0 %v783
        %816 = vmatprep.subr.mxu0 0.0
        %817 = vmatpush1.msra.mxu0 0.0
        %818 = vmatprep.subr.mxu0 0.0
        %819 = vmatpush1.msra.mxu0 0.0
        %820 = vmatprep.subr.mxu0 0.0
        %821 = vmatpush1.msra.mxu0 0.0
        %822 = vmatprep.subr.mxu0 0.0
        %823 = vmatpush1.msra.mxu0 0.0
        %824 = vmatprep.subr.mxu0 0.0
        %825 = vmatpush1.msra.mxu0 0.0
        %826 = vmatprep.subr.mxu0 0.0
        %827 = vmatpush1.msra.mxu0 0.0
        %828 = vmatprep.subr.mxu0 0.0
        %829 = vmatpush1.msra.mxu0 0.0
        %830 = vmatprep.subr.mxu0 0.0
        %831 = vmatpush1.msra.mxu0 0.0
        %832 = vmatprep.subr.mxu0 0.0
        %833 = vmatpush1.msra.mxu0 0.0
        %834 = vmatprep.subr.mxu0 0.0
        %835 = vmatpush1.msra.mxu0 0.0
        %836 = vmatprep.subr.mxu0 0.0
        %837 = vmatpush1.msra.mxu0 0.0
        %838 = vmatprep.subr.mxu0 0.0
        %839 = vmatpush1.msra.mxu0 0.0
        %840 = vmatprep.subr.mxu0 0.0
        %841 = vmatpush1.msra.mxu0 0.0
        %842 = vmatprep.subr.mxu0 0.0
        %843 = vmatpush1.msra.mxu0 0.0
        %844 = vmatprep.subr.mxu0 0.0
        %845 = vmatpush1.msra.mxu0 0.0
        %846 = vmatprep.subr.mxu0 0.0
        %847 = vmatpush1.msra.mxu0 0.0
        %848 = vmatprep.mubr.f32.mxu0 0.0
        %849 = vmatmul.mubr.f32.gmra.mrb[0].mxu0 %v520
        %v850 = vpop.f32.mrb[0].mxu0
        %v851 = vadd.f32 0.0, %v850
        %v852 = vpop.f32.mrb[0].mxu0
        %853 = vmatprep.mubr.f32.mxu0 0.0
        %854 = vmatmul.mubr.f32.gmra.mrb[0].mxu0 %v521
        %v855 = vpop.f32.mrb[0].mxu0
        %v856 = vadd.f32 0.0, %v855
        %v857 = vpop.f32.mrb[0].mxu0
        %858 = vmatprep.mubr.f32.mxu0 0.0
        %859 = vmatmul.mubr.f32.gmra.mrb[0].mxu0 %v522
        %v860 = vpop.f32.mrb[0].mxu0
        %v861 = vadd.f32 0.0, %v860
        %v862 = vpop.f32.mrb[0].mxu0
        %863 = vmatprep.mubr.f32.mxu0 0.0
        %864 = vmatmul.mubr.f32.gmra.mrb[0].mxu0 %v523
        %v865 = vpop.f32.mrb[0].mxu0
        %v866 = vadd.f32 0.0, %v865
        %v867 = vpop.f32.mrb[0].mxu0
        %868 = vmatprep.mubr.f32.mxu0 0.0
        %869 = vmatmul.mubr.f32.gmra.mrb[0].mxu0 %v524
        %v870 = vpop.f32.mrb[0].mxu0
        %v871 = vadd.f32 0.0, %v870
        %v872 = vpop.f32.mrb[0].mxu0
        %873 = vmatprep.mubr.f32.mxu0 0.0
        %874 = vmatmul.mubr.f32.gmra.mrb[0].mxu0 %v525
        %v875 = vpop.f32.mrb[0].mxu0
        %v876 = vadd.f32 0.0, %v875
        %v877 = vpop.f32.mrb[0].mxu0
        %878 = vmatprep.mubr.f32.mxu0 0.0
        %879 = vmatmul.mubr.f32.gmra.mrb[0].mxu0 %v526
        %v880 = vpop.f32.mrb[0].mxu0
        %v881 = vadd.f32 0.0, %v880
        %v882 = vpop.f32.mrb[0].mxu0
        %883 = vmatprep.mubr.f32.mxu0 0.0
        %884 = vmatmul.mubr.f32.gmra.mrb[0].mxu0 %v527
        %v885 = vpop.f32.mrb[0].mxu0
        %v886 = vadd.f32 0.0, %v885
        %v887 = vpop.f32.mrb[0].mxu0
        %888 = vmatprep.mubr.f32.mxu0 0.0
        %889 = vmatmul.mubr.f32.gmra.mrb[0].mxu0 %v528
        %v890 = vpop.f32.mrb[0].mxu0
        %v891 = vadd.f32 0.0, %v890
        %v892 = vpop.f32.mrb[0].mxu0
        %893 = vmatprep.mubr.f32.mxu0 0.0
        %894 = vmatmul.mubr.f32.gmra.mrb[0].mxu0 %v529
        %v895 = vpop.f32.mrb[0].mxu0
        %v896 = vadd.f32 0.0, %v895
        %v897 = vpop.f32.mrb[0].mxu0
        %898 = vmatprep.mubr.f32.mxu0 0.0
        %899 = vmatmul.mubr.f32.gmra.mrb[0].mxu0 %v530
        %v900 = vpop.f32.mrb[0].mxu0
        %v901 = vadd.f32 0.0, %v900
        %v902 = vpop.f32.mrb[0].mxu0
        %903 = vmatprep.mubr.f32.mxu0 0.0
        %904 = vmatmul.mubr.f32.gmra.mrb[0].mxu0 %v531
        %v905 = vpop.f32.mrb[0].mxu0
        %v906 = vadd.f32 0.0, %v905
        %v907 = vpop.f32.mrb[0].mxu0
        %908 = vmatprep.mubr.f32.mxu0 0.0
        %909 = vmatmul.mubr.f32.gmra.mrb[0].mxu0 %v532
        %v910 = vpop.f32.mrb[0].mxu0
        %v911 = vadd.f32 0.0, %v910
        %v912 = vpop.f32.mrb[0].mxu0
        %913 = vmatprep.mubr.f32.mxu0 0.0
        %914 = vmatmul.mubr.f32.gmra.mrb[0].mxu0 %v533
        %v915 = vpop.f32.mrb[0].mxu0
        %v916 = vadd.f32 0.0, %v915
        %v917 = vpop.f32.mrb[0].mxu0
        %918 = vmatprep.mubr.f32.mxu0 0.0
        %919 = vmatmul.mubr.f32.gmra.mrb[0].mxu0 %v534
        %v920 = vpop.f32.mrb[0].mxu0
        %v921 = vadd.f32 0.0, %v920
        %v922 = vpop.f32.mrb[0].mxu0
        %923 = vmatprep.mubr.f32.mxu0 0.0
        %924 = vmatmul.mubr.f32.gmra.mrb[0].mxu0 %v535
        %v925 = vpop.f32.mrb[0].mxu0
        %v926 = vadd.f32 0.0, %v925
        %v927 = vpop.f32.mrb[0].mxu0
        %928 = vmatprep.mubr.f32.mxu0 0.0
        %929 = vmatmul.mubr.f32.gmra.mrb[0].mxu0 %v536
        %v930 = vpop.f32.mrb[0].mxu0
        %v931 = vadd.f32 0.0, %v930
        %v932 = vpop.f32.mrb[0].mxu0
        %933 = vmatprep.mubr.f32.mxu0 0.0
        %934 = vmatmul.mubr.f32.gmra.mrb[0].mxu0 %v537
        %v935 = vpop.f32.mrb[0].mxu0
        %v936 = vadd.f32 0.0, %v935
        %v937 = vpop.f32.mrb[0].mxu0
        %938 = vmatprep.mubr.f32.mxu0 0.0
        %939 = vmatmul.mubr.f32.gmra.mrb[0].mxu0 %v538
        %v940 = vpop.f32.mrb[0].mxu0
        %v941 = vadd.f32 0.0, %v940
        %v942 = vpop.f32.mrb[0].mxu0
        %943 = vmatprep.mubr.f32.mxu0 0.0
        %944 = vmatmul.mubr.f32.gmra.mrb[0].mxu0 %v539
        %v945 = vpop.f32.mrb[0].mxu0
        %v946 = vadd.f32 0.0, %v945
        %v947 = vpop.f32.mrb[0].mxu0
        %948 = vmatprep.mubr.f32.mxu0 0.0
        %949 = vmatmul.mubr.f32.gmra.mrb[0].mxu0 %v540
        %v950 = vpop.f32.mrb[0].mxu0
        %v951 = vadd.f32 0.0, %v950
        %v952 = vpop.f32.mrb[0].mxu0
        %953 = vmatprep.mubr.f32.mxu0 0.0
        %954 = vmatmul.mubr.f32.gmra.mrb[0].mxu0 %v541
        %v955 = vpop.f32.mrb[0].mxu0
        %v956 = vadd.f32 0.0, %v955
        %v957 = vpop.f32.mrb[0].mxu0
        %958 = vmatprep.mubr.f32.mxu0 0.0
        %959 = vmatmul.mubr.f32.gmra.mrb[0].mxu0 %v542
        %v960 = vpop.f32.mrb[0].mxu0
        %v961 = vadd.f32 0.0, %v960
        %v962 = vpop.f32.mrb[0].mxu0
        %963 = vmatprep.mubr.f32.mxu0 0.0
        %964 = vmatmul.mubr.f32.gmra.mrb[0].mxu0 %v543
        %v965 = vpop.f32.mrb[0].mxu0
        %v966 = vadd.f32 0.0, %v965
        %v967 = vpop.f32.mrb[0].mxu0
        %968 = vmatprep.mubr.f32.mxu0 0.0
        %969 = vmatmul.mubr.f32.gmra.mrb[0].mxu0 %v544
        %v970 = vpop.f32.mrb[0].mxu0
        %v971 = vadd.f32 0.0, %v970
        %v972 = vpop.f32.mrb[0].mxu0
        %973 = vmatprep.mubr.f32.mxu0 0.0
        %974 = vmatmul.mubr.f32.gmra.mrb[0].mxu0 %v545
        %v975 = vpop.f32.mrb[0].mxu0
        %v976 = vadd.f32 0.0, %v975
        %v977 = vpop.f32.mrb[0].mxu0
        %978 = vmatprep.mubr.f32.mxu0 0.0
        %979 = vmatmul.mubr.f32.gmra.mrb[0].mxu0 %v546
        %v980 = vpop.f32.mrb[0].mxu0
        %v981 = vadd.f32 0.0, %v980
        %v982 = vpop.f32.mrb[0].mxu0
        %983 = vmatprep.mubr.f32.mxu0 0.0
        %984 = vmatmul.mubr.f32.gmra.mrb[0].mxu0 %v547
        %v985 = vpop.f32.mrb[0].mxu0
        %v986 = vadd.f32 0.0, %v985
        %v987 = vpop.f32.mrb[0].mxu0
        %988 = vmatprep.mubr.f32.mxu0 0.0
        %989 = vmatmul.mubr.f32.gmra.mrb[0].mxu0 %v548
        %v990 = vpop.f32.mrb[0].mxu0
        %v991 = vadd.f32 0.0, %v990
        %v992 = vpop.f32.mrb[0].mxu0
        %993 = vmatprep.mubr.f32.mxu0 0.0
        %994 = vmatmul.mubr.f32.gmra.mrb[0].mxu0 %v549
        %v995 = vpop.f32.mrb[0].mxu0
        %v996 = vadd.f32 0.0, %v995
        %v997 = vpop.f32.mrb[0].mxu0
        %998 = vmatprep.mubr.f32.mxu0 0.0
        %999 = vmatmul.mubr.f32.gmra.mrb[0].mxu0 %v550
        %v1000 = vpop.f32.mrb[0].mxu0
        %v1001 = vadd.f32 0.0, %v1000
        %v1002 = vpop.f32.mrb[0].mxu0
        %1003 = vmatprep.mubr.f32.mxu0 0.0
        %1004 = vmatmul.mubr.f32.gmra.mrb[0].mxu0 %v551
        %v1005 = vpop.f32.mrb[0].mxu0
        %v1006 = vadd.f32 0.0, %v1005
        %v1007 = vpop.f32.mrb[0].mxu0
        %1008 = vdwg.mxu0
        %v1009 = vld [vmem:[%s2] sm:$0x1]
        %v1011 = vlaneseq
        %v1012 = vshrl.u32 %v1011, 7
        %v1013 = vsub.s32 0, %v1012
        %v1014 = vrot.slane %v1009, %v1013
        %v1016 = vmul.f32 %v851, %v1014
        %v1017 = vmul.f32 %v856, %v1014
        %v1018 = vmul.f32 %v861, %v1014
        %v1019 = vmul.f32 %v866, %v1014
        %v1020 = vmul.f32 %v871, %v1014
        %v1021 = vmul.f32 %v876, %v1014
        %v1022 = vmul.f32 %v881, %v1014
        %v1023 = vmul.f32 %v886, %v1014
        %v1024 = vmul.f32 %v891, %v1014
        %v1025 = vmul.f32 %v896, %v1014
        %v1026 = vmul.f32 %v901, %v1014
        %v1027 = vmul.f32 %v906, %v1014
        %v1028 = vmul.f32 %v911, %v1014
        %v1029 = vmul.f32 %v916, %v1014
        %v1030 = vmul.f32 %v921, %v1014
        %v1031 = vmul.f32 %v926, %v1014
        %v1032 = vmul.f32 %v931, %v1014
        %v1033 = vmul.f32 %v936, %v1014
        %v1034 = vmul.f32 %v941, %v1014
        %v1035 = vmul.f32 %v946, %v1014
        %v1036 = vmul.f32 %v951, %v1014
        %v1037 = vmul.f32 %v956, %v1014
        %v1038 = vmul.f32 %v961, %v1014
        %v1039 = vmul.f32 %v966, %v1014
        %v1040 = vmul.f32 %v971, %v1014
        %v1041 = vmul.f32 %v976, %v1014
        %v1042 = vmul.f32 %v981, %v1014
        %v1043 = vmul.f32 %v986, %v1014
        %v1044 = vmul.f32 %v991, %v1014
        %v1045 = vmul.f32 %v996, %v1014
        %v1046 = vmul.f32 %v1001, %v1014
        %v1047 = vmul.f32 %v1006, %v1014
        %v1048 = vld [vmem:[%s3] sm:$0x1]
        %v1050 = vlaneseq
        %v1051 = vshrl.u32 %v1050, 7
        %v1052 = vsub.s32 0, %v1051
        %v1053 = vrot.slane %v1048, %v1052
        %v1055 = vadd.f32 %v1016, %v1053
        %v1056 = vadd.f32 %v1017, %v1053
        %v1057 = vadd.f32 %v1018, %v1053
        %v1058 = vadd.f32 %v1019, %v1053
        %v1059 = vadd.f32 %v1020, %v1053
        %v1060 = vadd.f32 %v1021, %v1053
        %v1061 = vadd.f32 %v1022, %v1053
        %v1062 = vadd.f32 %v1023, %v1053
        %v1063 = vadd.f32 %v1024, %v1053
        %v1064 = vadd.f32 %v1025, %v1053
        %v1065 = vadd.f32 %v1026, %v1053
        %v1066 = vadd.f32 %v1027, %v1053
        %v1067 = vadd.f32 %v1028, %v1053
        %v1068 = vadd.f32 %v1029, %v1053
        %v1069 = vadd.f32 %v1030, %v1053
        %v1070 = vadd.f32 %v1031, %v1053
        %v1071 = vadd.f32 %v1032, %v1053
        %v1072 = vadd.f32 %v1033, %v1053
        %v1073 = vadd.f32 %v1034, %v1053
        %v1074 = vadd.f32 %v1035, %v1053
        %v1075 = vadd.f32 %v1036, %v1053
        %v1076 = vadd.f32 %v1037, %v1053
        %v1077 = vadd.f32 %v1038, %v1053
        %v1078 = vadd.f32 %v1039, %v1053
        %v1079 = vadd.f32 %v1040, %v1053
        %v1080 = vadd.f32 %v1041, %v1053
        %v1081 = vadd.f32 %v1042, %v1053
        %v1082 = vadd.f32 %v1043, %v1053
        %v1083 = vadd.f32 %v1044, %v1053
        %v1084 = vadd.f32 %v1045, %v1053
        %v1085 = vadd.f32 %v1046, %v1053
        %v1086 = vadd.f32 %v1047, %v1053
        %v1087 = vmax.f32 %v1055, 0.0
        %v1088 = vmax.f32 %v1056, 0.0
        %v1089 = vmax.f32 %v1057, 0.0
        %v1090 = vmax.f32 %v1058, 0.0
        %v1091 = vmax.f32 %v1059, 0.0
        %v1092 = vmax.f32 %v1060, 0.0
        %v1093 = vmax.f32 %v1061, 0.0
        %v1094 = vmax.f32 %v1062, 0.0
        %v1095 = vmax.f32 %v1063, 0.0
        %v1096 = vmax.f32 %v1064, 0.0
        %v1097 = vmax.f32 %v1065, 0.0
        %v1098 = vmax.f32 %v1066, 0.0
        %v1099 = vmax.f32 %v1067, 0.0
        %v1100 = vmax.f32 %v1068, 0.0
        %v1101 = vmax.f32 %v1069, 0.0
        %v1102 = vmax.f32 %v1070, 0.0
        %v1103 = vmax.f32 %v1071, 0.0
        %v1104 = vmax.f32 %v1072, 0.0
        %v1105 = vmax.f32 %v1073, 0.0
        %v1106 = vmax.f32 %v1074, 0.0
        %v1107 = vmax.f32 %v1075, 0.0
        %v1108 = vmax.f32 %v1076, 0.0
        %v1109 = vmax.f32 %v1077, 0.0
        %v1110 = vmax.f32 %v1078, 0.0
        %v1111 = vmax.f32 %v1079, 0.0
        %v1112 = vmax.f32 %v1080, 0.0
        %v1113 = vmax.f32 %v1081, 0.0
        %v1114 = vmax.f32 %v1082, 0.0
        %v1115 = vmax.f32 %v1083, 0.0
        %v1116 = vmax.f32 %v1084, 0.0
        %v1117 = vmax.f32 %v1085, 0.0
        %v1118 = vmax.f32 %v1086, 0.0
        %s1119 = scalar_lea.vmem %s13, 128
        %v1120 = vld [vmem:[%s1119] sm:$0xff]
        %v1121 = vld [vmem:[%s1119 + $0x8] sm:$0xff]
        %v1122 = vld [vmem:[%s1119 + $0x10] sm:$0xff]
        %v1123 = vld [vmem:[%s1119 + $0x18] sm:$0xff]
        %v1124 = vld [vmem:[%s1119 + $0x20] sm:$0xff]
        %v1125 = vld [vmem:[%s1119 + $0x28] sm:$0xff]
        %v1126 = vld [vmem:[%s1119 + $0x30] sm:$0xff]
        %v1127 = vld [vmem:[%s1119 + $0x38] sm:$0xff]
        %v1128 = vld [vmem:[%s1119 + $0x40] sm:$0xff]
        %v1129 = vld [vmem:[%s1119 + $0x48] sm:$0xff]
        %v1130 = vld [vmem:[%s1119 + $0x50] sm:$0xff]
        %v1131 = vld [vmem:[%s1119 + $0x58] sm:$0xff]
        %v1132 = vld [vmem:[%s1119 + $0x60] sm:$0xff]
        %v1133 = vld [vmem:[%s1119 + $0x68] sm:$0xff]
        %v1134 = vld [vmem:[%s1119 + $0x70] sm:$0xff]
        %v1135 = vld [vmem:[%s1119 + $0x78] sm:$0xff]
        %1136 = vmatprep.subr.mxu0 0.0
        %1137 = vmatpush1.msra.mxu0 %v1120
        %1138 = vmatprep.subr.mxu0 0.0
        %1139 = vmatpush1.msra.mxu0 %v1121
        %1140 = vmatprep.subr.mxu0 0.0
        %1141 = vmatpush1.msra.mxu0 %v1122
        %1142 = vmatprep.subr.mxu0 0.0
        %1143 = vmatpush1.msra.mxu0 %v1123
        %1144 = vmatprep.subr.mxu0 0.0
        %1145 = vmatpush1.msra.mxu0 %v1124
        %1146 = vmatprep.subr.mxu0 0.0
        %1147 = vmatpush1.msra.mxu0 %v1125
        %1148 = vmatprep.subr.mxu0 0.0
        %1149 = vmatpush1.msra.mxu0 %v1126
        %1150 = vmatprep.subr.mxu0 0.0
        %1151 = vmatpush1.msra.mxu0 %v1127
        %1152 = vmatprep.subr.mxu0 0.0
        %1153 = vmatpush1.msra.mxu0 %v1128
        %1154 = vmatprep.subr.mxu0 0.0
        %1155 = vmatpush1.msra.mxu0 %v1129
        %1156 = vmatprep.subr.mxu0 0.0
        %1157 = vmatpush1.msra.mxu0 %v1130
        %1158 = vmatprep.subr.mxu0 0.0
        %1159 = vmatpush1.msra.mxu0 %v1131
        %1160 = vmatprep.subr.mxu0 0.0
        %1161 = vmatpush1.msra.mxu0 %v1132
        %1162 = vmatprep.subr.mxu0 0.0
        %1163 = vmatpush1.msra.mxu0 %v1133
        %1164 = vmatprep.subr.mxu0 0.0
        %1165 = vmatpush1.msra.mxu0 %v1134
        %1166 = vmatprep.subr.mxu0 0.0
        %1167 = vmatpush1.msra.mxu0 %v1135
        %1168 = vmatprep.subr.mxu0 0.0
        %1169 = vmatpush1.msra.mxu0 0.0
        %1170 = vmatprep.subr.mxu0 0.0
        %1171 = vmatpush1.msra.mxu0 0.0
        %1172 = vmatprep.subr.mxu0 0.0
        %1173 = vmatpush1.msra.mxu0 0.0
        %1174 = vmatprep.subr.mxu0 0.0
        %1175 = vmatpush1.msra.mxu0 0.0
        %1176 = vmatprep.subr.mxu0 0.0
        %1177 = vmatpush1.msra.mxu0 0.0
        %1178 = vmatprep.subr.mxu0 0.0
        %1179 = vmatpush1.msra.mxu0 0.0
        %1180 = vmatprep.subr.mxu0 0.0
        %1181 = vmatpush1.msra.mxu0 0.0
        %1182 = vmatprep.subr.mxu0 0.0
        %1183 = vmatpush1.msra.mxu0 0.0
        %1184 = vmatprep.subr.mxu0 0.0
        %1185 = vmatpush1.msra.mxu0 0.0
        %1186 = vmatprep.subr.mxu0 0.0
        %1187 = vmatpush1.msra.mxu0 0.0
        %1188 = vmatprep.subr.mxu0 0.0
        %1189 = vmatpush1.msra.mxu0 0.0
        %1190 = vmatprep.subr.mxu0 0.0
        %1191 = vmatpush1.msra.mxu0 0.0
        %1192 = vmatprep.subr.mxu0 0.0
        %1193 = vmatpush1.msra.mxu0 0.0
        %1194 = vmatprep.subr.mxu0 0.0
        %1195 = vmatpush1.msra.mxu0 0.0
        %1196 = vmatprep.subr.mxu0 0.0
        %1197 = vmatpush1.msra.mxu0 0.0
        %1198 = vmatprep.subr.mxu0 0.0
        %1199 = vmatpush1.msra.mxu0 0.0
        %1200 = vmatprep.mubr.f32.mxu0 0.0
        %1201 = vmatmul.mubr.f32.gmra.mrb[0].mxu0 %v1087
        %v1202 = vpop.f32.mrb[0].mxu0
        %v1203 = vadd.f32 0.0, %v1202
        %v1204 = vpop.f32.mrb[0].mxu0
        %1205 = vmatprep.mubr.f32.mxu0 0.0
        %1206 = vmatmul.mubr.f32.gmra.mrb[0].mxu0 %v1088
        %v1207 = vpop.f32.mrb[0].mxu0
        %v1208 = vadd.f32 0.0, %v1207
        %v1209 = vpop.f32.mrb[0].mxu0
        %1210 = vmatprep.mubr.f32.mxu0 0.0
        %1211 = vmatmul.mubr.f32.gmra.mrb[0].mxu0 %v1089
        %v1212 = vpop.f32.mrb[0].mxu0
        %v1213 = vadd.f32 0.0, %v1212
        %v1214 = vpop.f32.mrb[0].mxu0
        %1215 = vmatprep.mubr.f32.mxu0 0.0
        %1216 = vmatmul.mubr.f32.gmra.mrb[0].mxu0 %v1090
        %v1217 = vpop.f32.mrb[0].mxu0
        %v1218 = vadd.f32 0.0, %v1217
        %v1219 = vpop.f32.mrb[0].mxu0
        %1220 = vmatprep.mubr.f32.mxu0 0.0
        %1221 = vmatmul.mubr.f32.gmra.mrb[0].mxu0 %v1091
        %v1222 = vpop.f32.mrb[0].mxu0
        %v1223 = vadd.f32 0.0, %v1222
        %v1224 = vpop.f32.mrb[0].mxu0
        %1225 = vmatprep.mubr.f32.mxu0 0.0
        %1226 = vmatmul.mubr.f32.gmra.mrb[0].mxu0 %v1092
        %v1227 = vpop.f32.mrb[0].mxu0
        %v1228 = vadd.f32 0.0, %v1227
        %v1229 = vpop.f32.mrb[0].mxu0
        %1230 = vmatprep.mubr.f32.mxu0 0.0
        %1231 = vmatmul.mubr.f32.gmra.mrb[0].mxu0 %v1093
        %v1232 = vpop.f32.mrb[0].mxu0
        %v1233 = vadd.f32 0.0, %v1232
        %v1234 = vpop.f32.mrb[0].mxu0
        %1235 = vmatprep.mubr.f32.mxu0 0.0
        %1236 = vmatmul.mubr.f32.gmra.mrb[0].mxu0 %v1094
        %v1237 = vpop.f32.mrb[0].mxu0
        %v1238 = vadd.f32 0.0, %v1237
        %v1239 = vpop.f32.mrb[0].mxu0
        %1240 = vmatprep.mubr.f32.mxu0 0.0
        %1241 = vmatmul.mubr.f32.gmra.mrb[0].mxu0 %v1095
        %v1242 = vpop.f32.mrb[0].mxu0
        %v1243 = vadd.f32 0.0, %v1242
        %v1244 = vpop.f32.mrb[0].mxu0
        %1245 = vmatprep.mubr.f32.mxu0 0.0
        %1246 = vmatmul.mubr.f32.gmra.mrb[0].mxu0 %v1096
        %v1247 = vpop.f32.mrb[0].mxu0
        %v1248 = vadd.f32 0.0, %v1247
        %v1249 = vpop.f32.mrb[0].mxu0
        %1250 = vmatprep.mubr.f32.mxu0 0.0
        %1251 = vmatmul.mubr.f32.gmra.mrb[0].mxu0 %v1097
        %v1252 = vpop.f32.mrb[0].mxu0
        %v1253 = vadd.f32 0.0, %v1252
        %v1254 = vpop.f32.mrb[0].mxu0
        %1255 = vmatprep.mubr.f32.mxu0 0.0
        %1256 = vmatmul.mubr.f32.gmra.mrb[0].mxu0 %v1098
        %v1257 = vpop.f32.mrb[0].mxu0
        %v1258 = vadd.f32 0.0, %v1257
        %v1259 = vpop.f32.mrb[0].mxu0
        %1260 = vmatprep.mubr.f32.mxu0 0.0
        %1261 = vmatmul.mubr.f32.gmra.mrb[0].mxu0 %v1099
        %v1262 = vpop.f32.mrb[0].mxu0
        %v1263 = vadd.f32 0.0, %v1262
        %v1264 = vpop.f32.mrb[0].mxu0
        %1265 = vmatprep.mubr.f32.mxu0 0.0
        %1266 = vmatmul.mubr.f32.gmra.mrb[0].mxu0 %v1100
        %v1267 = vpop.f32.mrb[0].mxu0
        %v1268 = vadd.f32 0.0, %v1267
        %v1269 = vpop.f32.mrb[0].mxu0
        %1270 = vmatprep.mubr.f32.mxu0 0.0
        %1271 = vmatmul.mubr.f32.gmra.mrb[0].mxu0 %v1101
        %v1272 = vpop.f32.mrb[0].mxu0
        %v1273 = vadd.f32 0.0, %v1272
        %v1274 = vpop.f32.mrb[0].mxu0
        %1275 = vmatprep.mubr.f32.mxu0 0.0
        %1276 = vmatmul.mubr.f32.gmra.mrb[0].mxu0 %v1102
        %v1277 = vpop.f32.mrb[0].mxu0
        %v1278 = vadd.f32 0.0, %v1277
        %v1279 = vpop.f32.mrb[0].mxu0
        %1280 = vmatprep.mubr.f32.mxu0 0.0
        %1281 = vmatmul.mubr.f32.gmra.mrb[0].mxu0 %v1103
        %v1282 = vpop.f32.mrb[0].mxu0
        %v1283 = vadd.f32 0.0, %v1282
        %v1284 = vpop.f32.mrb[0].mxu0
        %1285 = vmatprep.mubr.f32.mxu0 0.0
        %1286 = vmatmul.mubr.f32.gmra.mrb[0].mxu0 %v1104
        %v1287 = vpop.f32.mrb[0].mxu0
        %v1288 = vadd.f32 0.0, %v1287
        %v1289 = vpop.f32.mrb[0].mxu0
        %1290 = vmatprep.mubr.f32.mxu0 0.0
        %1291 = vmatmul.mubr.f32.gmra.mrb[0].mxu0 %v1105
        %v1292 = vpop.f32.mrb[0].mxu0
        %v1293 = vadd.f32 0.0, %v1292
        %v1294 = vpop.f32.mrb[0].mxu0
        %1295 = vmatprep.mubr.f32.mxu0 0.0
        %1296 = vmatmul.mubr.f32.gmra.mrb[0].mxu0 %v1106
        %v1297 = vpop.f32.mrb[0].mxu0
        %v1298 = vadd.f32 0.0, %v1297
        %v1299 = vpop.f32.mrb[0].mxu0
        %1300 = vmatprep.mubr.f32.mxu0 0.0
        %1301 = vmatmul.mubr.f32.gmra.mrb[0].mxu0 %v1107
        %v1302 = vpop.f32.mrb[0].mxu0
        %v1303 = vadd.f32 0.0, %v1302
        %v1304 = vpop.f32.mrb[0].mxu0
        %1305 = vmatprep.mubr.f32.mxu0 0.0
        %1306 = vmatmul.mubr.f32.gmra.mrb[0].mxu0 %v1108
        %v1307 = vpop.f32.mrb[0].mxu0
        %v1308 = vadd.f32 0.0, %v1307
        %v1309 = vpop.f32.mrb[0].mxu0
        %1310 = vmatprep.mubr.f32.mxu0 0.0
        %1311 = vmatmul.mubr.f32.gmra.mrb[0].mxu0 %v1109
        %v1312 = vpop.f32.mrb[0].mxu0
        %v1313 = vadd.f32 0.0, %v1312
        %v1314 = vpop.f32.mrb[0].mxu0
        %1315 = vmatprep.mubr.f32.mxu0 0.0
        %1316 = vmatmul.mubr.f32.gmra.mrb[0].mxu0 %v1110
        %v1317 = vpop.f32.mrb[0].mxu0
        %v1318 = vadd.f32 0.0, %v1317
        %v1319 = vpop.f32.mrb[0].mxu0
        %1320 = vmatprep.mubr.f32.mxu0 0.0
        %1321 = vmatmul.mubr.f32.gmra.mrb[0].mxu0 %v1111
        %v1322 = vpop.f32.mrb[0].mxu0
        %v1323 = vadd.f32 0.0, %v1322
        %v1324 = vpop.f32.mrb[0].mxu0
        %1325 = vmatprep.mubr.f32.mxu0 0.0
        %1326 = vmatmul.mubr.f32.gmra.mrb[0].mxu0 %v1112
        %v1327 = vpop.f32.mrb[0].mxu0
        %v1328 = vadd.f32 0.0, %v1327
        %v1329 = vpop.f32.mrb[0].mxu0
        %1330 = vmatprep.mubr.f32.mxu0 0.0
        %1331 = vmatmul.mubr.f32.gmra.mrb[0].mxu0 %v1113
        %v1332 = vpop.f32.mrb[0].mxu0
        %v1333 = vadd.f32 0.0, %v1332
        %v1334 = vpop.f32.mrb[0].mxu0
        %1335 = vmatprep.mubr.f32.mxu0 0.0
        %1336 = vmatmul.mubr.f32.gmra.mrb[0].mxu0 %v1114
        %v1337 = vpop.f32.mrb[0].mxu0
        %v1338 = vadd.f32 0.0, %v1337
        %v1339 = vpop.f32.mrb[0].mxu0
        %1340 = vmatprep.mubr.f32.mxu0 0.0
        %1341 = vmatmul.mubr.f32.gmra.mrb[0].mxu0 %v1115
        %v1342 = vpop.f32.mrb[0].mxu0
        %v1343 = vadd.f32 0.0, %v1342
        %v1344 = vpop.f32.mrb[0].mxu0
        %1345 = vmatprep.mubr.f32.mxu0 0.0
        %1346 = vmatmul.mubr.f32.gmra.mrb[0].mxu0 %v1116
        %v1347 = vpop.f32.mrb[0].mxu0
        %v1348 = vadd.f32 0.0, %v1347
        %v1349 = vpop.f32.mrb[0].mxu0
        %1350 = vmatprep.mubr.f32.mxu0 0.0
        %1351 = vmatmul.mubr.f32.gmra.mrb[0].mxu0 %v1117
        %v1352 = vpop.f32.mrb[0].mxu0
        %v1353 = vadd.f32 0.0, %v1352
        %v1354 = vpop.f32.mrb[0].mxu0
        %1355 = vmatprep.mubr.f32.mxu0 0.0
        %1356 = vmatmul.mubr.f32.gmra.mrb[0].mxu0 %v1118
        %v1357 = vpop.f32.mrb[0].mxu0
        %v1358 = vadd.f32 0.0, %v1357
        %v1359 = vpop.f32.mrb[0].mxu0
        %1360 = vdwg.mxu0
        %v1361 = vlaneseq
        %v1362 = vshrl.u32 %v1361, 7
        %v1363 = vsub.s32 0, %v1362
        %v1364 = vrot.slane %v765, %v1363
        %v1365 = vadd.f32 %v1364, %v1203
        %v1366 = vadd.f32 %v1364, %v1208
        %v1367 = vadd.f32 %v1364, %v1213
        %v1368 = vadd.f32 %v1364, %v1218
        %v1369 = vadd.f32 %v1364, %v1223
        %v1370 = vadd.f32 %v1364, %v1228
        %v1371 = vadd.f32 %v1364, %v1233
        %v1372 = vadd.f32 %v1364, %v1238
        %v1373 = vadd.f32 %v1364, %v1243
        %v1374 = vadd.f32 %v1364, %v1248
        %v1375 = vadd.f32 %v1364, %v1253
        %v1376 = vadd.f32 %v1364, %v1258
        %v1377 = vadd.f32 %v1364, %v1263
        %v1378 = vadd.f32 %v1364, %v1268
        %v1379 = vadd.f32 %v1364, %v1273
        %v1380 = vadd.f32 %v1364, %v1278
        %v1381 = vadd.f32 %v1364, %v1283
        %v1382 = vadd.f32 %v1364, %v1288
        %v1383 = vadd.f32 %v1364, %v1293
        %v1384 = vadd.f32 %v1364, %v1298
        %v1385 = vadd.f32 %v1364, %v1303
        %v1386 = vadd.f32 %v1364, %v1308
        %v1387 = vadd.f32 %v1364, %v1313
        %v1388 = vadd.f32 %v1364, %v1318
        %v1389 = vadd.f32 %v1364, %v1323
        %v1390 = vadd.f32 %v1364, %v1328
        %v1391 = vadd.f32 %v1364, %v1333
        %v1392 = vadd.f32 %v1364, %v1338
        %v1393 = vadd.f32 %v1364, %v1343
        %v1394 = vadd.f32 %v1364, %v1348
        %v1395 = vadd.f32 %v1364, %v1353
        %v1396 = vadd.f32 %v1364, %v1358
        %v1397 = vld [vmem:[%s7] sm:$0xff]
        %v1398 = vld [vmem:[%s7 + $0x8] sm:$0x1]
        %v1399 = vld [vmem:[%s7 + $0x10] sm:$0xff]
        %v1400 = vld [vmem:[%s7 + $0x20] sm:$0xff]
        %v1401 = vld [vmem:[%s8] sm:$0x1]
        %v1402 = vld [vmem:[%s8 + $0x1] sm:$0x1]
        %v1403 = vld [vmem:[%s8 + $0x2] sm:$0x1]
        %v1404 = vld [vmem:[%s9] sm:$0x1]
        %v1405 = vld [vmem:[%s9 + $0x1] sm:$0x1]
        %v1406 = vld [vmem:[%s9 + $0x2] sm:$0x1]
        %v1407 = vld [vmem:[%s11] sm:$0x1]
        %v1408 = vld [vmem:[%s11 + $0x1] sm:$0x1]
        %v1409 = vld [vmem:[%s11 + $0x2] sm:$0x1]
        %v1410 = vld [vmem:[%s12] sm:$0x1]
        %v1411 = vld [vmem:[%s12 + $0x1] sm:$0x1]
        %v1412 = vld [vmem:[%s12 + $0x2] sm:$0x1]
        %1413 = vst [vmem:[#allocation2] sm:$0xff] 0.0
        %1414 = vst [vmem:[#allocation2 + $0x8] sm:$0xff] 0.0
        %1415 = vst [vmem:[#allocation2 + $0x10] sm:$0xff] 0.0
        %1416 = vst [vmem:[#allocation2 + $0x18] sm:$0xff] 0.0
        %1417 = vst [vmem:[#allocation2 + $0x20] sm:$0xff] 0.0
        %1418 = vst [vmem:[#allocation2 + $0x28] sm:$0xff] 0.0
        %1419 = vst [vmem:[#allocation2 + $0x30] sm:$0xff] 0.0
        %1420 = vst [vmem:[#allocation2 + $0x38] sm:$0xff] 0.0
        %1421 = vst [vmem:[#allocation2 + $0x40] sm:$0xff] 0.0
        %1422 = vst [vmem:[#allocation2 + $0x48] sm:$0xff] 0.0
        %1423 = vst [vmem:[#allocation2 + $0x50] sm:$0xff] 0.0
        %1424 = vst [vmem:[#allocation2 + $0x58] sm:$0xff] 0.0
        %1425 = vst [vmem:[#allocation2 + $0x60] sm:$0xff] 0.0
        %1426 = vst [vmem:[#allocation2 + $0x68] sm:$0xff] 0.0
        %1427 = vst [vmem:[#allocation2 + $0x70] sm:$0xff] 0.0
        %1428 = vst [vmem:[#allocation2 + $0x78] sm:$0xff] 0.0
        %1429 = vst [vmem:[#allocation2 + $0x80] sm:$0xff] 0.0
        %1430 = vst [vmem:[#allocation2 + $0x88] sm:$0xff] 0.0
        %1431 = vst [vmem:[#allocation2 + $0x90] sm:$0xff] 0.0
        %1432 = vst [vmem:[#allocation2 + $0x98] sm:$0xff] 0.0
        %1433 = vst [vmem:[#allocation2 + $0xa0] sm:$0xff] 0.0
        %1434 = vst [vmem:[#allocation2 + $0xa8] sm:$0xff] 0.0
        %1435 = vst [vmem:[#allocation2 + $0xb0] sm:$0xff] 0.0
        %1436 = vst [vmem:[#allocation2 + $0xb8] sm:$0xff] 0.0
        %1437 = vst [vmem:[#allocation2 + $0xc0] sm:$0xff] 0.0
        %1438 = vst [vmem:[#allocation2 + $0xc8] sm:$0xff] 0.0
        %1439 = vst [vmem:[#allocation2 + $0xd0] sm:$0xff] 0.0
        %1440 = vst [vmem:[#allocation2 + $0xd8] sm:$0xff] 0.0
        %1441 = vst [vmem:[#allocation2 + $0xe0] sm:$0xff] 0.0
        %1442 = vst [vmem:[#allocation2 + $0xe8] sm:$0xff] 0.0
        %1443 = vst [vmem:[#allocation2 + $0xf0] sm:$0xff] 0.0
        %1444 = vst [vmem:[#allocation2 + $0xf8] sm:$0xff] 0.0
        %s1445 = scalar_lea.vmem [#allocation2], 192
        %v1446 = vld [vmem:[%s1445 + $0xc] sm:$0xf]
        %v1447 = vld [vmem:[%s1445 + $0x1c] sm:$0xf]
        %v1448 = vld [vmem:[%s1445 + $0x2c] sm:$0xf]
        %v1449 = vld [vmem:[%s1445 + $0x3c] sm:$0xf]
        %v1450 = vld [vmem:[%s519] sm:$0xf]
        %v1451 = vld [vmem:[%s519 + $0x10] sm:$0xf]
        %v1452 = vld [vmem:[%s519 + $0x20] sm:$0xf]
        %v1453 = vld [vmem:[%s519 + $0x30] sm:$0xf]
        %v1454 = vlaneseq
        %v1455 = vshrl.u32 %v1454, 7
        %v1456 = vsub.s32 0, %v1455
        %v1457 = vrot.slane %v1397, %v1456
        %v1458 = vmul.f32 %v1450, %v1457
        %v1459 = vmul.f32 %v1451, %v1457
        %v1460 = vmul.f32 %v1452, %v1457
        %v1461 = vmul.f32 %v1453, %v1457
        %v1462 = vadd.f32 %v1446, %v1458
        %v1463 = vadd.f32 %v1447, %v1459
        %v1464 = vadd.f32 %v1448, %v1460
        %v1465 = vadd.f32 %v1449, %v1461
        %1466 = vst [vmem:[%s1445 + $0xc] sm:$0xf] %v1462
        %1467 = vst [vmem:[%s1445 + $0x1c] sm:$0xf] %v1463
        %1468 = vst [vmem:[%s1445 + $0x2c] sm:$0xf] %v1464
        %1469 = vst [vmem:[%s1445 + $0x3c] sm:$0xf] %v1465
        %v1470 = vld [vmem:[%s1445] sm:$0xff]
        %v1471 = vld [vmem:[%s1445 + $0x8] sm:$0xff]
        %v1472 = vld [vmem:[%s1445 + $0x10] sm:$0xff]
        %v1473 = vld [vmem:[%s1445 + $0x18] sm:$0xff]
        %v1474 = vld [vmem:[%s1445 + $0x20] sm:$0xff]
        %v1475 = vld [vmem:[%s1445 + $0x28] sm:$0xff]
        %v1476 = vld [vmem:[%s1445 + $0x30] sm:$0xff]
        %v1477 = vld [vmem:[%s1445 + $0x38] sm:$0xff]
        %v1478 = vld [vmem:[%s519] sm:$0xff]
        %v1479 = vld [vmem:[%s519 + $0x8] sm:$0xff]
        %v1480 = vld [vmem:[%s519 + $0x10] sm:$0xff]
        %v1481 = vld [vmem:[%s519 + $0x18] sm:$0xff]
        %v1482 = vld [vmem:[%s519 + $0x20] sm:$0xff]
        %v1483 = vld [vmem:[%s519 + $0x28] sm:$0xff]
        %v1484 = vld [vmem:[%s519 + $0x30] sm:$0xff]
        %v1485 = vld [vmem:[%s519 + $0x38] sm:$0xff]
        %v1486 = vlaneseq
        %v1487 = vshrl.u32 %v1486, 7
        %v1488 = vsub.s32 1, %v1487
        %v1489 = vrot.slane %v1397, %v1488
        %v1490 = vmul.f32 %v1478, %v1489
        %v1491 = vmul.f32 %v1479, %v1489
        %v1492 = vmul.f32 %v1480, %v1489
        %v1493 = vmul.f32 %v1481, %v1489
        %v1494 = vmul.f32 %v1482, %v1489
        %v1495 = vmul.f32 %v1483, %v1489
        %v1496 = vmul.f32 %v1484, %v1489
        %v1497 = vmul.f32 %v1485, %v1489
        %v1498 = vadd.f32 %v1470, %v1490
        %v1499 = vadd.f32 %v1471, %v1491
        %v1500 = vadd.f32 %v1472, %v1492
        %v1501 = vadd.f32 %v1473, %v1493
        %v1502 = vadd.f32 %v1474, %v1494
        %v1503 = vadd.f32 %v1475, %v1495
        %v1504 = vadd.f32 %v1476, %v1496
        %v1505 = vadd.f32 %v1477, %v1497
        %1506 = vst [vmem:[%s1445] sm:$0xff] %v1498
        %1507 = vst [vmem:[%s1445 + $0x8] sm:$0xff] %v1499
        %1508 = vst [vmem:[%s1445 + $0x10] sm:$0xff] %v1500
        %1509 = vst [vmem:[%s1445 + $0x18] sm:$0xff] %v1501
        %1510 = vst [vmem:[%s1445 + $0x20] sm:$0xff] %v1502
        %1511 = vst [vmem:[%s1445 + $0x28] sm:$0xff] %v1503
        %1512 = vst [vmem:[%s1445 + $0x30] sm:$0xff] %v1504
        %1513 = vst [vmem:[%s1445 + $0x38] sm:$0xff] %v1505
        %v1514 = vld [vmem:[%s1445] sm:$0xf]
        %v1515 = vld [vmem:[%s1445 + $0x10] sm:$0xf]
        %v1516 = vld [vmem:[%s1445 + $0x20] sm:$0xf]
        %v1517 = vld [vmem:[%s1445 + $0x30] sm:$0xf]
        %v1518 = vld [vmem:[%s519 + $0xc] sm:$0xf]
        %v1519 = vld [vmem:[%s519 + $0x1c] sm:$0xf]
        %v1520 = vld [vmem:[%s519 + $0x2c] sm:$0xf]
        %v1521 = vld [vmem:[%s519 + $0x3c] sm:$0xf]
        %v1522 = vlaneseq
        %v1523 = vshrl.u32 %v1522, 7
        %v1524 = vsub.s32 2, %v1523
        %v1525 = vrot.slane %v1397, %v1524
        %v1526 = vmul.f32 %v1518, %v1525
        %v1527 = vmul.f32 %v1519, %v1525
        %v1528 = vmul.f32 %v1520, %v1525
        %v1529 = vmul.f32 %v1521, %v1525
        %v1530 = vadd.f32 %v1514, %v1526
        %v1531 = vadd.f32 %v1515, %v1527
        %v1532 = vadd.f32 %v1516, %v1528
        %v1533 = vadd.f32 %v1517, %v1529
        %1534 = vst [vmem:[%s1445] sm:$0xf] %v1530
        %1535 = vst [vmem:[%s1445 + $0x10] sm:$0xf] %v1531
        %1536 = vst [vmem:[%s1445 + $0x20] sm:$0xf] %v1532
        %1537 = vst [vmem:[%s1445 + $0x30] sm:$0xf] %v1533
        %v1538 = vld [vmem:[#allocation2 + $0xc] sm:$0xf]
        %v1539 = vld [vmem:[#allocation2 + $0x1c] sm:$0xf]
        %v1540 = vld [vmem:[#allocation2 + $0x2c] sm:$0xf]
        %v1541 = vld [vmem:[#allocation2 + $0x3c] sm:$0xf]
        %v1542 = vld [vmem:[#allocation2 + $0x4c] sm:$0xf]
        %v1543 = vld [vmem:[#allocation2 + $0x5c] sm:$0xf]
        %v1544 = vld [vmem:[#allocation2 + $0x6c] sm:$0xf]
        %v1545 = vld [vmem:[#allocation2 + $0x7c] sm:$0xf]
        %v1546 = vld [vmem:[#allocation2 + $0x8c] sm:$0xf]
        %v1547 = vld [vmem:[#allocation2 + $0x9c] sm:$0xf]
        %v1548 = vld [vmem:[#allocation2 + $0xac] sm:$0xf]
        %v1549 = vld [vmem:[#allocation2 + $0xbc] sm:$0xf]
        %v1550 = vld [vmem:[#allocation2 + $0xcc] sm:$0xf]
        %v1551 = vld [vmem:[#allocation2 + $0xdc] sm:$0xf]
        %v1552 = vld [vmem:[#allocation2 + $0xec] sm:$0xf]
        %v1553 = vld [vmem:[#allocation2 + $0xfc] sm:$0xf]
        %v1554 = vld [vmem:[%s519] sm:$0xf]
        %v1555 = vld [vmem:[%s519 + $0x10] sm:$0xf]
        %v1556 = vld [vmem:[%s519 + $0x20] sm:$0xf]
        %v1557 = vld [vmem:[%s519 + $0x30] sm:$0xf]
        %v1558 = vld [vmem:[%s519 + $0x40] sm:$0xf]
        %v1559 = vld [vmem:[%s519 + $0x50] sm:$0xf]
        %v1560 = vld [vmem:[%s519 + $0x60] sm:$0xf]
        %v1561 = vld [vmem:[%s519 + $0x70] sm:$0xf]
        %v1562 = vld [vmem:[%s519 + $0x80] sm:$0xf]
        %v1563 = vld [vmem:[%s519 + $0x90] sm:$0xf]
        %v1564 = vld [vmem:[%s519 + $0xa0] sm:$0xf]
        %v1565 = vld [vmem:[%s519 + $0xb0] sm:$0xf]
        %v1566 = vld [vmem:[%s519 + $0xc0] sm:$0xf]
        %v1567 = vld [vmem:[%s519 + $0xd0] sm:$0xf]
        %v1568 = vld [vmem:[%s519 + $0xe0] sm:$0xf]
        %v1569 = vld [vmem:[%s519 + $0xf0] sm:$0xf]
        %v1570 = vlaneseq
        %v1571 = vshrl.u32 %v1570, 7
        %v1572 = vsub.s32 3, %v1571
        %v1573 = vrot.slane %v1397, %v1572
        %v1574 = vmul.f32 %v1554, %v1573
        %v1575 = vmul.f32 %v1555, %v1573
        %v1576 = vmul.f32 %v1556, %v1573
        %v1577 = vmul.f32 %v1557, %v1573
        %v1578 = vmul.f32 %v1558, %v1573
        %v1579 = vmul.f32 %v1559, %v1573
        %v1580 = vmul.f32 %v1560, %v1573
        %v1581 = vmul.f32 %v1561, %v1573
        %v1582 = vmul.f32 %v1562, %v1573
        %v1583 = vmul.f32 %v1563, %v1573
        %v1584 = vmul.f32 %v1564, %v1573
        %v1585 = vmul.f32 %v1565, %v1573
        %v1586 = vmul.f32 %v1566, %v1573
        %v1587 = vmul.f32 %v1567, %v1573
        %v1588 = vmul.f32 %v1568, %v1573
        %v1589 = vmul.f32 %v1569, %v1573
        %v1590 = vadd.f32 %v1538, %v1574
        %v1591 = vadd.f32 %v1539, %v1575
        %v1592 = vadd.f32 %v1540, %v1576
        %v1593 = vadd.f32 %v1541, %v1577
        %v1594 = vadd.f32 %v1542, %v1578
        %v1595 = vadd.f32 %v1543, %v1579
        %v1596 = vadd.f32 %v1544, %v1580
        %v1597 = vadd.f32 %v1545, %v1581
        %v1598 = vadd.f32 %v1546, %v1582
        %v1599 = vadd.f32 %v1547, %v1583
        %v1600 = vadd.f32 %v1548, %v1584
        %v1601 = vadd.f32 %v1549, %v1585
        %v1602 = vadd.f32 %v1550, %v1586
        %v1603 = vadd.f32 %v1551, %v1587
        %v1604 = vadd.f32 %v1552, %v1588
        %v1605 = vadd.f32 %v1553, %v1589
        %1606 = vst [vmem:[#allocation2 + $0xc] sm:$0xf] %v1590
        %1607 = vst [vmem:[#allocation2 + $0x1c] sm:$0xf] %v1591
        %1608 = vst [vmem:[#allocation2 + $0x2c] sm:$0xf] %v1592
        %1609 = vst [vmem:[#allocation2 + $0x3c] sm:$0xf] %v1593
        %1610 = vst [vmem:[#allocation2 + $0x4c] sm:$0xf] %v1594
        %1611 = vst [vmem:[#allocation2 + $0x5c] sm:$0xf] %v1595
        %1612 = vst [vmem:[#allocation2 + $0x6c] sm:$0xf] %v1596
        %1613 = vst [vmem:[#allocation2 + $0x7c] sm:$0xf] %v1597
        %1614 = vst [vmem:[#allocation2 + $0x8c] sm:$0xf] %v1598
        %1615 = vst [vmem:[#allocation2 + $0x9c] sm:$0xf] %v1599
        %1616 = vst [vmem:[#allocation2 + $0xac] sm:$0xf] %v1600
        %1617 = vst [vmem:[#allocation2 + $0xbc] sm:$0xf] %v1601
        %1618 = vst [vmem:[#allocation2 + $0xcc] sm:$0xf] %v1602
        %1619 = vst [vmem:[#allocation2 + $0xdc] sm:$0xf] %v1603
        %1620 = vst [vmem:[#allocation2 + $0xec] sm:$0xf] %v1604
        %1621 = vst [vmem:[#allocation2 + $0xfc] sm:$0xf] %v1605
        %v1622 = vld [vmem:[#allocation2] sm:$0xff]
        %v1623 = vld [vmem:[#allocation2 + $0x8] sm:$0xff]
        %v1624 = vld [vmem:[#allocation2 + $0x10] sm:$0xff]
        %v1625 = vld [vmem:[#allocation2 + $0x18] sm:$0xff]
        %v1626 = vld [vmem:[#allocation2 + $0x20] sm:$0xff]
        %v1627 = vld [vmem:[#allocation2 + $0x28] sm:$0xff]
        %v1628 = vld [vmem:[#allocation2 + $0x30] sm:$0xff]
        %v1629 = vld [vmem:[#allocation2 + $0x38] sm:$0xff]
        %v1630 = vld [vmem:[#allocation2 + $0x40] sm:$0xff]
        %v1631 = vld [vmem:[#allocation2 + $0x48] sm:$0xff]
        %v1632 = vld [vmem:[#allocation2 + $0x50] sm:$0xff]
        %v1633 = vld [vmem:[#allocation2 + $0x58] sm:$0xff]
        %v1634 = vld [vmem:[#allocation2 + $0x60] sm:$0xff]
        %v1635 = vld [vmem:[#allocation2 + $0x68] sm:$0xff]
        %v1636 = vld [vmem:[#allocation2 + $0x70] sm:$0xff]
        %v1637 = vld [vmem:[#allocation2 + $0x78] sm:$0xff]
        %v1638 = vld [vmem:[#allocation2 + $0x80] sm:$0xff]
        %v1639 = vld [vmem:[#allocation2 + $0x88] sm:$0xff]
        %v1640 = vld [vmem:[#allocation2 + $0x90] sm:$0xff]
        %v1641 = vld [vmem:[#allocation2 + $0x98] sm:$0xff]
        %v1642 = vld [vmem:[#allocation2 + $0xa0] sm:$0xff]
        %v1643 = vld [vmem:[#allocation2 + $0xa8] sm:$0xff]
        %v1644 = vld [vmem:[#allocation2 + $0xb0] sm:$0xff]
        %v1645 = vld [vmem:[#allocation2 + $0xb8] sm:$0xff]
        %v1646 = vld [vmem:[#allocation2 + $0xc0] sm:$0xff]
        %v1647 = vld [vmem:[#allocation2 + $0xc8] sm:$0xff]
        %v1648 = vld [vmem:[#allocation2 + $0xd0] sm:$0xff]
        %v1649 = vld [vmem:[#allocation2 + $0xd8] sm:$0xff]
        %v1650 = vld [vmem:[#allocation2 + $0xe0] sm:$0xff]
        %v1651 = vld [vmem:[#allocation2 + $0xe8] sm:$0xff]
        %v1652 = vld [vmem:[#allocation2 + $0xf0] sm:$0xff]
        %v1653 = vld [vmem:[#allocation2 + $0xf8] sm:$0xff]
        %v1654 = vld [vmem:[%s519] sm:$0xff]
        %v1655 = vld [vmem:[%s519 + $0x8] sm:$0xff]
        %v1656 = vld [vmem:[%s519 + $0x10] sm:$0xff]
        %v1657 = vld [vmem:[%s519 + $0x18] sm:$0xff]
        %v1658 = vld [vmem:[%s519 + $0x20] sm:$0xff]
        %v1659 = vld [vmem:[%s519 + $0x28] sm:$0xff]
        %v1660 = vld [vmem:[%s519 + $0x30] sm:$0xff]
        %v1661 = vld [vmem:[%s519 + $0x38] sm:$0xff]
        %v1662 = vld [vmem:[%s519 + $0x40] sm:$0xff]
        %v1663 = vld [vmem:[%s519 + $0x48] sm:$0xff]
        %v1664 = vld [vmem:[%s519 + $0x50] sm:$0xff]
        %v1665 = vld [vmem:[%s519 + $0x58] sm:$0xff]
        %v1666 = vld [vmem:[%s519 + $0x60] sm:$0xff]
        %v1667 = vld [vmem:[%s519 + $0x68] sm:$0xff]
        %v1668 = vld [vmem:[%s519 + $0x70] sm:$0xff]
        %v1669 = vld [vmem:[%s519 + $0x78] sm:$0xff]
        %v1670 = vld [vmem:[%s519 + $0x80] sm:$0xff]
        %v1671 = vld [vmem:[%s519 + $0x88] sm:$0xff]
        %v1672 = vld [vmem:[%s519 + $0x90] sm:$0xff]
        %v1673 = vld [vmem:[%s519 + $0x98] sm:$0xff]
        %v1674 = vld [vmem:[%s519 + $0xa0] sm:$0xff]
        %v1675 = vld [vmem:[%s519 + $0xa8] sm:$0xff]
        %v1676 = vld [vmem:[%s519 + $0xb0] sm:$0xff]
        %v1677 = vld [vmem:[%s519 + $0xb8] sm:$0xff]
        %v1678 = vld [vmem:[%s519 + $0xc0] sm:$0xff]
        %v1679 = vld [vmem:[%s519 + $0xc8] sm:$0xff]
        %v1680 = vld [vmem:[%s519 + $0xd0] sm:$0xff]
        %v1681 = vld [vmem:[%s519 + $0xd8] sm:$0xff]
        %v1682 = vld [vmem:[%s519 + $0xe0] sm:$0xff]
        %v1683 = vld [vmem:[%s519 + $0xe8] sm:$0xff]
        %v1684 = vld [vmem:[%s519 + $0xf0] sm:$0xff]
        %v1685 = vld [vmem:[%s519 + $0xf8] sm:$0xff]
        %v1686 = vlaneseq
        %v1687 = vshrl.u32 %v1686, 7
        %v1688 = vsub.s32 4, %v1687
        %v1689 = vrot.slane %v1397, %v1688
        %v1690 = vmul.f32 %v1654, %v1689
        %v1691 = vmul.f32 %v1655, %v1689
        %v1692 = vmul.f32 %v1656, %v1689
        %v1693 = vmul.f32 %v1657, %v1689
        %v1694 = vmul.f32 %v1658, %v1689
        %v1695 = vmul.f32 %v1659, %v1689
        %v1696 = vmul.f32 %v1660, %v1689
        %v1697 = vmul.f32 %v1661, %v1689
        %v1698 = vmul.f32 %v1662, %v1689
        %v1699 = vmul.f32 %v1663, %v1689
        %v1700 = vmul.f32 %v1664, %v1689
        %v1701 = vmul.f32 %v1665, %v1689
        %v1702 = vmul.f32 %v1666, %v1689
        %v1703 = vmul.f32 %v1667, %v1689
        %v1704 = vmul.f32 %v1668, %v1689
        %v1705 = vmul.f32 %v1669, %v1689
        %v1706 = vmul.f32 %v1670, %v1689
        %v1707 = vmul.f32 %v1671, %v1689
        %v1708 = vmul.f32 %v1672, %v1689
        %v1709 = vmul.f32 %v1673, %v1689
        %v1710 = vmul.f32 %v1674, %v1689
        %v1711 = vmul.f32 %v1675, %v1689
        %v1712 = vmul.f32 %v1676, %v1689
        %v1713 = vmul.f32 %v1677, %v1689
        %v1714 = vmul.f32 %v1678, %v1689
        %v1715 = vmul.f32 %v1679, %v1689
        %v1716 = vmul.f32 %v1680, %v1689
        %v1717 = vmul.f32 %v1681, %v1689
        %v1718 = vmul.f32 %v1682, %v1689
        %v1719 = vmul.f32 %v1683, %v1689
        %v1720 = vmul.f32 %v1684, %v1689
        %v1721 = vmul.f32 %v1685, %v1689
        %v1722 = vadd.f32 %v1622, %v1690
        %v1723 = vadd.f32 %v1623, %v1691
        %v1724 = vadd.f32 %v1624, %v1692
        %v1725 = vadd.f32 %v1625, %v1693
        %v1726 = vadd.f32 %v1626, %v1694
        %v1727 = vadd.f32 %v1627, %v1695
        %v1728 = vadd.f32 %v1628, %v1696
        %v1729 = vadd.f32 %v1629, %v1697
        %v1730 = vadd.f32 %v1630, %v1698
        %v1731 = vadd.f32 %v1631, %v1699
        %v1732 = vadd.f32 %v1632, %v1700
        %v1733 = vadd.f32 %v1633, %v1701
        %v1734 = vadd.f32 %v1634, %v1702
        %v1735 = vadd.f32 %v1635, %v1703
        %v1736 = vadd.f32 %v1636, %v1704
        %v1737 = vadd.f32 %v1637, %v1705
        %v1738 = vadd.f32 %v1638, %v1706
        %v1739 = vadd.f32 %v1639, %v1707
        %v1740 = vadd.f32 %v1640, %v1708
        %v1741 = vadd.f32 %v1641, %v1709
        %v1742 = vadd.f32 %v1642, %v1710
        %v1743 = vadd.f32 %v1643, %v1711
        %v1744 = vadd.f32 %v1644, %v1712
        %v1745 = vadd.f32 %v1645, %v1713
        %v1746 = vadd.f32 %v1646, %v1714
        %v1747 = vadd.f32 %v1647, %v1715
        %v1748 = vadd.f32 %v1648, %v1716
        %v1749 = vadd.f32 %v1649, %v1717
        %v1750 = vadd.f32 %v1650, %v1718
        %v1751 = vadd.f32 %v1651, %v1719
        %v1752 = vadd.f32 %v1652, %v1720
        %v1753 = vadd.f32 %v1653, %v1721
        %1754 = vst [vmem:[#allocation2] sm:$0xff] %v1722
        %1755 = vst [vmem:[#allocation2 + $0x8] sm:$0xff] %v1723
        %1756 = vst [vmem:[#allocation2 + $0x10] sm:$0xff] %v1724
        %1757 = vst [vmem:[#allocation2 + $0x18] sm:$0xff] %v1725
        %1758 = vst [vmem:[#allocation2 + $0x20] sm:$0xff] %v1726
        %1759 = vst [vmem:[#allocation2 + $0x28] sm:$0xff] %v1727
        %1760 = vst [vmem:[#allocation2 + $0x30] sm:$0xff] %v1728
        %1761 = vst [vmem:[#allocation2 + $0x38] sm:$0xff] %v1729
        %1762 = vst [vmem:[#allocation2 + $0x40] sm:$0xff] %v1730
        %1763 = vst [vmem:[#allocation2 + $0x48] sm:$0xff] %v1731
        %1764 = vst [vmem:[#allocation2 + $0x50] sm:$0xff] %v1732
        %1765 = vst [vmem:[#allocation2 + $0x58] sm:$0xff] %v1733
        %1766 = vst [vmem:[#allocation2 + $0x60] sm:$0xff] %v1734
        %1767 = vst [vmem:[#allocation2 + $0x68] sm:$0xff] %v1735
        %1768 = vst [vmem:[#allocation2 + $0x70] sm:$0xff] %v1736
        %1769 = vst [vmem:[#allocation2 + $0x78] sm:$0xff] %v1737
        %1770 = vst [vmem:[#allocation2 + $0x80] sm:$0xff] %v1738
        %1771 = vst [vmem:[#allocation2 + $0x88] sm:$0xff] %v1739
        %1772 = vst [vmem:[#allocation2 + $0x90] sm:$0xff] %v1740
        %1773 = vst [vmem:[#allocation2 + $0x98] sm:$0xff] %v1741
        %1774 = vst [vmem:[#allocation2 + $0xa0] sm:$0xff] %v1742
        %1775 = vst [vmem:[#allocation2 + $0xa8] sm:$0xff] %v1743
        %1776 = vst [vmem:[#allocation2 + $0xb0] sm:$0xff] %v1744
        %1777 = vst [vmem:[#allocation2 + $0xb8] sm:$0xff] %v1745
        %1778 = vst [vmem:[#allocation2 + $0xc0] sm:$0xff] %v1746
        %1779 = vst [vmem:[#allocation2 + $0xc8] sm:$0xff] %v1747
        %1780 = vst [vmem:[#allocation2 + $0xd0] sm:$0xff] %v1748
        %1781 = vst [vmem:[#allocation2 + $0xd8] sm:$0xff] %v1749
        %1782 = vst [vmem:[#allocation2 + $0xe0] sm:$0xff] %v1750
        %1783 = vst [vmem:[#allocation2 + $0xe8] sm:$0xff] %v1751
        %1784 = vst [vmem:[#allocation2 + $0xf0] sm:$0xff] %v1752
        %1785 = vst [vmem:[#allocation2 + $0xf8] sm:$0xff] %v1753
        %v1786 = vld [vmem:[#allocation2] sm:$0xf]
        %v1787 = vld [vmem:[#allocation2 + $0x10] sm:$0xf]
        %v1788 = vld [vmem:[#allocation2 + $0x20] sm:$0xf]
        %v1789 = vld [vmem:[#allocation2 + $0x30] sm:$0xf]
        %v1790 = vld [vmem:[#allocation2 + $0x40] sm:$0xf]
        %v1791 = vld [vmem:[#allocation2 + $0x50] sm:$0xf]
        %v1792 = vld [vmem:[#allocation2 + $0x60] sm:$0xf]
        %v1793 = vld [vmem:[#allocation2 + $0x70] sm:$0xf]
        %v1794 = vld [vmem:[#allocation2 + $0x80] sm:$0xf]
        %v1795 = vld [vmem:[#allocation2 + $0x90] sm:$0xf]
        %v1796 = vld [vmem:[#allocation2 + $0xa0] sm:$0xf]
        %v1797 = vld [vmem:[#allocation2 + $0xb0] sm:$0xf]
        %v1798 = vld [vmem:[#allocation2 + $0xc0] sm:$0xf]
        %v1799 = vld [vmem:[#allocation2 + $0xd0] sm:$0xf]
        %v1800 = vld [vmem:[#allocation2 + $0xe0] sm:$0xf]
        %v1801 = vld [vmem:[#allocation2 + $0xf0] sm:$0xf]
        %v1802 = vld [vmem:[%s519 + $0xc] sm:$0xf]
        %v1803 = vld [vmem:[%s519 + $0x1c] sm:$0xf]
        %v1804 = vld [vmem:[%s519 + $0x2c] sm:$0xf]
        %v1805 = vld [vmem:[%s519 + $0x3c] sm:$0xf]
        %v1806 = vld [vmem:[%s519 + $0x4c] sm:$0xf]
        %v1807 = vld [vmem:[%s519 + $0x5c] sm:$0xf]
        %v1808 = vld [vmem:[%s519 + $0x6c] sm:$0xf]
        %v1809 = vld [vmem:[%s519 + $0x7c] sm:$0xf]
        %v1810 = vld [vmem:[%s519 + $0x8c] sm:$0xf]
        %v1811 = vld [vmem:[%s519 + $0x9c] sm:$0xf]
        %v1812 = vld [vmem:[%s519 + $0xac] sm:$0xf]
        %v1813 = vld [vmem:[%s519 + $0xbc] sm:$0xf]
        %v1814 = vld [vmem:[%s519 + $0xcc] sm:$0xf]
        %v1815 = vld [vmem:[%s519 + $0xdc] sm:$0xf]
        %v1816 = vld [vmem:[%s519 + $0xec] sm:$0xf]
        %v1817 = vld [vmem:[%s519 + $0xfc] sm:$0xf]
        %v1818 = vlaneseq
        %v1819 = vshrl.u32 %v1818, 7
        %v1820 = vsub.s32 5, %v1819
        %v1821 = vrot.slane %v1397, %v1820
        %v1822 = vmul.f32 %v1802, %v1821
        %v1823 = vmul.f32 %v1803, %v1821
        %v1824 = vmul.f32 %v1804, %v1821
        %v1825 = vmul.f32 %v1805, %v1821
        %v1826 = vmul.f32 %v1806, %v1821
        %v1827 = vmul.f32 %v1807, %v1821
        %v1828 = vmul.f32 %v1808, %v1821
        %v1829 = vmul.f32 %v1809, %v1821
        %v1830 = vmul.f32 %v1810, %v1821
        %v1831 = vmul.f32 %v1811, %v1821
        %v1832 = vmul.f32 %v1812, %v1821
        %v1833 = vmul.f32 %v1813, %v1821
        %v1834 = vmul.f32 %v1814, %v1821
        %v1835 = vmul.f32 %v1815, %v1821
        %v1836 = vmul.f32 %v1816, %v1821
        %v1837 = vmul.f32 %v1817, %v1821
        %v1838 = vadd.f32 %v1786, %v1822
        %v1839 = vadd.f32 %v1787, %v1823
        %v1840 = vadd.f32 %v1788, %v1824
        %v1841 = vadd.f32 %v1789, %v1825
        %v1842 = vadd.f32 %v1790, %v1826
        %v1843 = vadd.f32 %v1791, %v1827
        %v1844 = vadd.f32 %v1792, %v1828
        %v1845 = vadd.f32 %v1793, %v1829
        %v1846 = vadd.f32 %v1794, %v1830
        %v1847 = vadd.f32 %v1795, %v1831
        %v1848 = vadd.f32 %v1796, %v1832
        %v1849 = vadd.f32 %v1797, %v1833
        %v1850 = vadd.f32 %v1798, %v1834
        %v1851 = vadd.f32 %v1799, %v1835
        %v1852 = vadd.f32 %v1800, %v1836
        %v1853 = vadd.f32 %v1801, %v1837
        %1854 = vst [vmem:[#allocation2] sm:$0xf] %v1838
        %1855 = vst [vmem:[#allocation2 + $0x10] sm:$0xf] %v1839
        %1856 = vst [vmem:[#allocation2 + $0x20] sm:$0xf] %v1840
        %1857 = vst [vmem:[#allocation2 + $0x30] sm:$0xf] %v1841
        %1858 = vst [vmem:[#allocation2 + $0x40] sm:$0xf] %v1842
        %1859 = vst [vmem:[#allocation2 + $0x50] sm:$0xf] %v1843
        %1860 = vst [vmem:[#allocation2 + $0x60] sm:$0xf] %v1844
        %1861 = vst [vmem:[#allocation2 + $0x70] sm:$0xf] %v1845
        %1862 = vst [vmem:[#allocation2 + $0x80] sm:$0xf] %v1846
        %1863 = vst [vmem:[#allocation2 + $0x90] sm:$0xf] %v1847
        %1864 = vst [vmem:[#allocation2 + $0xa0] sm:$0xf] %v1848
        %1865 = vst [vmem:[#allocation2 + $0xb0] sm:$0xf] %v1849
        %1866 = vst [vmem:[#allocation2 + $0xc0] sm:$0xf] %v1850
        %1867 = vst [vmem:[#allocation2 + $0xd0] sm:$0xf] %v1851
        %1868 = vst [vmem:[#allocation2 + $0xe0] sm:$0xf] %v1852
        %1869 = vst [vmem:[#allocation2 + $0xf0] sm:$0xf] %v1853
        %v1870 = vld [vmem:[#allocation2 + $0xc] sm:$0xf]
        %v1871 = vld [vmem:[#allocation2 + $0x1c] sm:$0xf]
        %v1872 = vld [vmem:[#allocation2 + $0x2c] sm:$0xf]
        %v1873 = vld [vmem:[#allocation2 + $0x3c] sm:$0xf]
        %s1874 = scalar_lea.vmem %s519, 192
        %v1875 = vld [vmem:[%s1874] sm:$0xf]
        %v1876 = vld [vmem:[%s1874 + $0x10] sm:$0xf]
        %v1877 = vld [vmem:[%s1874 + $0x20] sm:$0xf]
        %v1878 = vld [vmem:[%s1874 + $0x30] sm:$0xf]
        %v1879 = vlaneseq
        %v1880 = vshrl.u32 %v1879, 7
        %v1881 = vsub.s32 6, %v1880
        %v1882 = vrot.slane %v1397, %v1881
        %v1883 = vmul.f32 %v1875, %v1882
        %v1884 = vmul.f32 %v1876, %v1882
        %v1885 = vmul.f32 %v1877, %v1882
        %v1886 = vmul.f32 %v1878, %v1882
        %v1887 = vadd.f32 %v1870, %v1883
        %v1888 = vadd.f32 %v1871, %v1884
        %v1889 = vadd.f32 %v1872, %v1885
        %v1890 = vadd.f32 %v1873, %v1886
        %1891 = vst [vmem:[#allocation2 + $0xc] sm:$0xf] %v1887
        %1892 = vst [vmem:[#allocation2 + $0x1c] sm:$0xf] %v1888
        %1893 = vst [vmem:[#allocation2 + $0x2c] sm:$0xf] %v1889
        %1894 = vst [vmem:[#allocation2 + $0x3c] sm:$0xf] %v1890
        %v1895 = vld [vmem:[#allocation2] sm:$0xff]
        %v1896 = vld [vmem:[#allocation2 + $0x8] sm:$0xff]
        %v1897 = vld [vmem:[#allocation2 + $0x10] sm:$0xff]
        %v1898 = vld [vmem:[#allocation2 + $0x18] sm:$0xff]
        %v1899 = vld [vmem:[#allocation2 + $0x20] sm:$0xff]
        %v1900 = vld [vmem:[#allocation2 + $0x28] sm:$0xff]
        %v1901 = vld [vmem:[#allocation2 + $0x30] sm:$0xff]
        %v1902 = vld [vmem:[#allocation2 + $0x38] sm:$0xff]
        %v1903 = vld [vmem:[%s1874] sm:$0xff]
        %v1904 = vld [vmem:[%s1874 + $0x8] sm:$0xff]
        %v1905 = vld [vmem:[%s1874 + $0x10] sm:$0xff]
        %v1906 = vld [vmem:[%s1874 + $0x18] sm:$0xff]
        %v1907 = vld [vmem:[%s1874 + $0x20] sm:$0xff]
        %v1908 = vld [vmem:[%s1874 + $0x28] sm:$0xff]
        %v1909 = vld [vmem:[%s1874 + $0x30] sm:$0xff]
        %v1910 = vld [vmem:[%s1874 + $0x38] sm:$0xff]
        %v1911 = vlaneseq
        %v1912 = vshrl.u32 %v1911, 7
        %v1913 = vsub.s32 7, %v1912
        %v1914 = vrot.slane %v1397, %v1913
        %v1915 = vmul.f32 %v1903, %v1914
        %v1916 = vmul.f32 %v1904, %v1914
        %v1917 = vmul.f32 %v1905, %v1914
        %v1918 = vmul.f32 %v1906, %v1914
        %v1919 = vmul.f32 %v1907, %v1914
        %v1920 = vmul.f32 %v1908, %v1914
        %v1921 = vmul.f32 %v1909, %v1914
        %v1922 = vmul.f32 %v1910, %v1914
        %v1923 = vadd.f32 %v1895, %v1915
        %v1924 = vadd.f32 %v1896, %v1916
        %v1925 = vadd.f32 %v1897, %v1917
        %v1926 = vadd.f32 %v1898, %v1918
        %v1927 = vadd.f32 %v1899, %v1919
        %v1928 = vadd.f32 %v1900, %v1920
        %v1929 = vadd.f32 %v1901, %v1921
        %v1930 = vadd.f32 %v1902, %v1922
        %1931 = vst [vmem:[#allocation2] sm:$0xff] %v1923
        %1932 = vst [vmem:[#allocation2 + $0x8] sm:$0xff] %v1924
        %1933 = vst [vmem:[#allocation2 + $0x10] sm:$0xff] %v1925
        %1934 = vst [vmem:[#allocation2 + $0x18] sm:$0xff] %v1926
        %1935 = vst [vmem:[#allocation2 + $0x20] sm:$0xff] %v1927
        %1936 = vst [vmem:[#allocation2 + $0x28] sm:$0xff] %v1928
        %1937 = vst [vmem:[#allocation2 + $0x30] sm:$0xff] %v1929
        %1938 = vst [vmem:[#allocation2 + $0x38] sm:$0xff] %v1930
        %v1939 = vld [vmem:[#allocation2] sm:$0xf]
        %v1940 = vld [vmem:[#allocation2 + $0x10] sm:$0xf]
        %v1941 = vld [vmem:[#allocation2 + $0x20] sm:$0xf]
        %v1942 = vld [vmem:[#allocation2 + $0x30] sm:$0xf]
        %v1943 = vld [vmem:[%s1874 + $0xc] sm:$0xf]
        %v1944 = vld [vmem:[%s1874 + $0x1c] sm:$0xf]
        %v1945 = vld [vmem:[%s1874 + $0x2c] sm:$0xf]
        %v1946 = vld [vmem:[%s1874 + $0x3c] sm:$0xf]
        %v1947 = vlaneseq
        %v1948 = vshrl.u32 %v1947, 7
        %v1949 = vsub.s32 0, %v1948
        %v1950 = vrot.slane %v1398, %v1949
        %v1951 = vmul.f32 %v1943, %v1950
        %v1952 = vmul.f32 %v1944, %v1950
        %v1953 = vmul.f32 %v1945, %v1950
        %v1954 = vmul.f32 %v1946, %v1950
        %v1955 = vadd.f32 %v1939, %v1951
        %v1956 = vadd.f32 %v1940, %v1952
        %v1957 = vadd.f32 %v1941, %v1953
        %v1958 = vadd.f32 %v1942, %v1954
        %1959 = vst [vmem:[#allocation2] sm:$0xf] %v1955
        %1960 = vst [vmem:[#allocation2 + $0x10] sm:$0xf] %v1956
        %1961 = vst [vmem:[#allocation2 + $0x20] sm:$0xf] %v1957
        %1962 = vst [vmem:[#allocation2 + $0x30] sm:$0xf] %v1958
        %v1963 = vld [vmem:[#allocation2] sm:$0xff]
        %v1964 = vld [vmem:[#allocation2 + $0x8] sm:$0xff]
        %v1965 = vld [vmem:[#allocation2 + $0x10] sm:$0xff]
        %v1966 = vld [vmem:[#allocation2 + $0x18] sm:$0xff]
        %v1967 = vld [vmem:[#allocation2 + $0x20] sm:$0xff]
        %v1968 = vld [vmem:[#allocation2 + $0x28] sm:$0xff]
        %v1969 = vld [vmem:[#allocation2 + $0x30] sm:$0xff]
        %v1970 = vld [vmem:[#allocation2 + $0x38] sm:$0xff]
        %v1971 = vld [vmem:[#allocation2 + $0x40] sm:$0xff]
        %v1972 = vld [vmem:[#allocation2 + $0x48] sm:$0xff]
        %v1973 = vld [vmem:[#allocation2 + $0x50] sm:$0xff]
        %v1974 = vld [vmem:[#allocation2 + $0x58] sm:$0xff]
        %v1975 = vld [vmem:[#allocation2 + $0x60] sm:$0xff]
        %v1976 = vld [vmem:[#allocation2 + $0x68] sm:$0xff]
        %v1977 = vld [vmem:[#allocation2 + $0x70] sm:$0xff]
        %v1978 = vld [vmem:[#allocation2 + $0x78] sm:$0xff]
        %v1979 = vld [vmem:[#allocation2 + $0x80] sm:$0xff]
        %v1980 = vld [vmem:[#allocation2 + $0x88] sm:$0xff]
        %v1981 = vld [vmem:[#allocation2 + $0x90] sm:$0xff]
        %v1982 = vld [vmem:[#allocation2 + $0x98] sm:$0xff]
        %v1983 = vld [vmem:[#allocation2 + $0xa0] sm:$0xff]
        %v1984 = vld [vmem:[#allocation2 + $0xa8] sm:$0xff]
        %v1985 = vld [vmem:[#allocation2 + $0xb0] sm:$0xff]
        %v1986 = vld [vmem:[#allocation2 + $0xb8] sm:$0xff]
        %v1987 = vld [vmem:[#allocation2 + $0xc0] sm:$0xff]
        %v1988 = vld [vmem:[#allocation2 + $0xc8] sm:$0xff]
        %v1989 = vld [vmem:[#allocation2 + $0xd0] sm:$0xff]
        %v1990 = vld [vmem:[#allocation2 + $0xd8] sm:$0xff]
        %v1991 = vld [vmem:[#allocation2 + $0xe0] sm:$0xff]
        %v1992 = vld [vmem:[#allocation2 + $0xe8] sm:$0xff]
        %v1993 = vld [vmem:[#allocation2 + $0xf0] sm:$0xff]
        %v1994 = vld [vmem:[#allocation2 + $0xf8] sm:$0xff]
        %v1996 = vlaneseq
        %v1997 = vshrl.u32 %v1996, 7
        %v1998 = vsub.s32 0, %v1997
        %v1999 = vrot.slane %v1401, %v1998
        %v2001 = vmul.f32 %v1963, %v1999
        %v2002 = vmul.f32 %v1964, %v1999
        %v2003 = vmul.f32 %v1965, %v1999
        %v2004 = vmul.f32 %v1966, %v1999
        %v2005 = vmul.f32 %v1967, %v1999
        %v2006 = vmul.f32 %v1968, %v1999
        %v2007 = vmul.f32 %v1969, %v1999
        %v2008 = vmul.f32 %v1970, %v1999
        %v2009 = vmul.f32 %v1971, %v1999
        %v2010 = vmul.f32 %v1972, %v1999
        %v2011 = vmul.f32 %v1973, %v1999
        %v2012 = vmul.f32 %v1974, %v1999
        %v2013 = vmul.f32 %v1975, %v1999
        %v2014 = vmul.f32 %v1976, %v1999
        %v2015 = vmul.f32 %v1977, %v1999
        %v2016 = vmul.f32 %v1978, %v1999
        %v2017 = vmul.f32 %v1979, %v1999
        %v2018 = vmul.f32 %v1980, %v1999
        %v2019 = vmul.f32 %v1981, %v1999
        %v2020 = vmul.f32 %v1982, %v1999
        %v2021 = vmul.f32 %v1983, %v1999
        %v2022 = vmul.f32 %v1984, %v1999
        %v2023 = vmul.f32 %v1985, %v1999
        %v2024 = vmul.f32 %v1986, %v1999
        %v2025 = vmul.f32 %v1987, %v1999
        %v2026 = vmul.f32 %v1988, %v1999
        %v2027 = vmul.f32 %v1989, %v1999
        %v2028 = vmul.f32 %v1990, %v1999
        %v2029 = vmul.f32 %v1991, %v1999
        %v2030 = vmul.f32 %v1992, %v1999
        %v2031 = vmul.f32 %v1993, %v1999
        %v2032 = vmul.f32 %v1994, %v1999
        %v2034 = vlaneseq
        %v2035 = vshrl.u32 %v2034, 7
        %v2036 = vsub.s32 0, %v2035
        %v2037 = vrot.slane %v1404, %v2036
        %v2039 = vadd.f32 %v2001, %v2037
        %v2040 = vadd.f32 %v2002, %v2037
        %v2041 = vadd.f32 %v2003, %v2037
        %v2042 = vadd.f32 %v2004, %v2037
        %v2043 = vadd.f32 %v2005, %v2037
        %v2044 = vadd.f32 %v2006, %v2037
        %v2045 = vadd.f32 %v2007, %v2037
        %v2046 = vadd.f32 %v2008, %v2037
        %v2047 = vadd.f32 %v2009, %v2037
        %v2048 = vadd.f32 %v2010, %v2037
        %v2049 = vadd.f32 %v2011, %v2037
        %v2050 = vadd.f32 %v2012, %v2037
        %v2051 = vadd.f32 %v2013, %v2037
        %v2052 = vadd.f32 %v2014, %v2037
        %v2053 = vadd.f32 %v2015, %v2037
        %v2054 = vadd.f32 %v2016, %v2037
        %v2055 = vadd.f32 %v2017, %v2037
        %v2056 = vadd.f32 %v2018, %v2037
        %v2057 = vadd.f32 %v2019, %v2037
        %v2058 = vadd.f32 %v2020, %v2037
        %v2059 = vadd.f32 %v2021, %v2037
        %v2060 = vadd.f32 %v2022, %v2037
        %v2061 = vadd.f32 %v2023, %v2037
        %v2062 = vadd.f32 %v2024, %v2037
        %v2063 = vadd.f32 %v2025, %v2037
        %v2064 = vadd.f32 %v2026, %v2037
        %v2065 = vadd.f32 %v2027, %v2037
        %v2066 = vadd.f32 %v2028, %v2037
        %v2067 = vadd.f32 %v2029, %v2037
        %v2068 = vadd.f32 %v2030, %v2037
        %v2069 = vadd.f32 %v2031, %v2037
        %v2070 = vadd.f32 %v2032, %v2037
        %v2071 = vmax.f32 %v2039, 0.0
        %v2072 = vmax.f32 %v2040, 0.0
        %v2073 = vmax.f32 %v2041, 0.0
        %v2074 = vmax.f32 %v2042, 0.0
        %v2075 = vmax.f32 %v2043, 0.0
        %v2076 = vmax.f32 %v2044, 0.0
        %v2077 = vmax.f32 %v2045, 0.0
        %v2078 = vmax.f32 %v2046, 0.0
        %v2079 = vmax.f32 %v2047, 0.0
        %v2080 = vmax.f32 %v2048, 0.0
        %v2081 = vmax.f32 %v2049, 0.0
        %v2082 = vmax.f32 %v2050, 0.0
        %v2083 = vmax.f32 %v2051, 0.0
        %v2084 = vmax.f32 %v2052, 0.0
        %v2085 = vmax.f32 %v2053, 0.0
        %v2086 = vmax.f32 %v2054, 0.0
        %v2087 = vmax.f32 %v2055, 0.0
        %v2088 = vmax.f32 %v2056, 0.0
        %v2089 = vmax.f32 %v2057, 0.0
        %v2090 = vmax.f32 %v2058, 0.0
        %v2091 = vmax.f32 %v2059, 0.0
        %v2092 = vmax.f32 %v2060, 0.0
        %v2093 = vmax.f32 %v2061, 0.0
        %v2094 = vmax.f32 %v2062, 0.0
        %v2095 = vmax.f32 %v2063, 0.0
        %v2096 = vmax.f32 %v2064, 0.0
        %v2097 = vmax.f32 %v2065, 0.0
        %v2098 = vmax.f32 %v2066, 0.0
        %v2099 = vmax.f32 %v2067, 0.0
        %v2100 = vmax.f32 %v2068, 0.0
        %v2101 = vmax.f32 %v2069, 0.0
        %v2102 = vmax.f32 %v2070, 0.0
        %v2103 = vld [vmem:[%s10] sm:$0xff]
        %v2104 = vld [vmem:[%s10 + $0x8] sm:$0xff]
        %v2105 = vld [vmem:[%s10 + $0x10] sm:$0xff]
        %v2106 = vld [vmem:[%s10 + $0x18] sm:$0xff]
        %v2107 = vld [vmem:[%s10 + $0x20] sm:$0xff]
        %v2108 = vld [vmem:[%s10 + $0x28] sm:$0xff]
        %v2109 = vld [vmem:[%s10 + $0x30] sm:$0xff]
        %v2110 = vld [vmem:[%s10 + $0x38] sm:$0xff]
        %v2111 = vld [vmem:[%s10 + $0x40] sm:$0xff]
        %v2112 = vld [vmem:[%s10 + $0x48] sm:$0xff]
        %v2113 = vld [vmem:[%s10 + $0x50] sm:$0xff]
        %v2114 = vld [vmem:[%s10 + $0x58] sm:$0xff]
        %v2115 = vld [vmem:[%s10 + $0x60] sm:$0xff]
        %v2116 = vld [vmem:[%s10 + $0x68] sm:$0xff]
        %v2117 = vld [vmem:[%s10 + $0x70] sm:$0xff]
        %v2118 = vld [vmem:[%s10 + $0x78] sm:$0xff]
        %2119 = vmatprep.subr.mxu0 0.0
        %2120 = vmatpush1.msra.mxu0 %v2103
        %2121 = vmatprep.subr.mxu0 0.0
        %2122 = vmatpush1.msra.mxu0 %v2104
        %2123 = vmatprep.subr.mxu0 0.0
        %2124 = vmatpush1.msra.mxu0 %v2105
        %2125 = vmatprep.subr.mxu0 0.0
        %2126 = vmatpush1.msra.mxu0 %v2106
        %2127 = vmatprep.subr.mxu0 0.0
        %2128 = vmatpush1.msra.mxu0 %v2107
        %2129 = vmatprep.subr.mxu0 0.0
        %2130 = vmatpush1.msra.mxu0 %v2108
        %2131 = vmatprep.subr.mxu0 0.0
        %2132 = vmatpush1.msra.mxu0 %v2109
        %2133 = vmatprep.subr.mxu0 0.0
        %2134 = vmatpush1.msra.mxu0 %v2110
        %2135 = vmatprep.subr.mxu0 0.0
        %2136 = vmatpush1.msra.mxu0 %v2111
        %2137 = vmatprep.subr.mxu0 0.0
        %2138 = vmatpush1.msra.mxu0 %v2112
        %2139 = vmatprep.subr.mxu0 0.0
        %2140 = vmatpush1.msra.mxu0 %v2113
        %2141 = vmatprep.subr.mxu0 0.0
        %2142 = vmatpush1.msra.mxu0 %v2114
        %2143 = vmatprep.subr.mxu0 0.0
        %2144 = vmatpush1.msra.mxu0 %v2115
        %2145 = vmatprep.subr.mxu0 0.0
        %2146 = vmatpush1.msra.mxu0 %v2116
        %2147 = vmatprep.subr.mxu0 0.0
        %2148 = vmatpush1.msra.mxu0 %v2117
        %2149 = vmatprep.subr.mxu0 0.0
        %2150 = vmatpush1.msra.mxu0 %v2118
        %2151 = vmatprep.subr.mxu0 0.0
        %2152 = vmatpush1.msra.mxu0 0.0
        %2153 = vmatprep.subr.mxu0 0.0
        %2154 = vmatpush1.msra.mxu0 0.0
        %2155 = vmatprep.subr.mxu0 0.0
        %2156 = vmatpush1.msra.mxu0 0.0
        %2157 = vmatprep.subr.mxu0 0.0
        %2158 = vmatpush1.msra.mxu0 0.0
        %2159 = vmatprep.subr.mxu0 0.0
        %2160 = vmatpush1.msra.mxu0 0.0
        %2161 = vmatprep.subr.mxu0 0.0
        %2162 = vmatpush1.msra.mxu0 0.0
        %2163 = vmatprep.subr.mxu0 0.0
        %2164 = vmatpush1.msra.mxu0 0.0
        %2165 = vmatprep.subr.mxu0 0.0
        %2166 = vmatpush1.msra.mxu0 0.0
        %2167 = vmatprep.subr.mxu0 0.0
        %2168 = vmatpush1.msra.mxu0 0.0
        %2169 = vmatprep.subr.mxu0 0.0
        %2170 = vmatpush1.msra.mxu0 0.0
        %2171 = vmatprep.subr.mxu0 0.0
        %2172 = vmatpush1.msra.mxu0 0.0
        %2173 = vmatprep.subr.mxu0 0.0
        %2174 = vmatpush1.msra.mxu0 0.0
        %2175 = vmatprep.subr.mxu0 0.0
        %2176 = vmatpush1.msra.mxu0 0.0
        %2177 = vmatprep.subr.mxu0 0.0
        %2178 = vmatpush1.msra.mxu0 0.0
        %2179 = vmatprep.subr.mxu0 0.0
        %2180 = vmatpush1.msra.mxu0 0.0
        %2181 = vmatprep.subr.mxu0 0.0
        %2182 = vmatpush1.msra.mxu0 0.0
        %2183 = vmatprep.mubr.f32.mxu0 0.0
        %2184 = vmatmul.mubr.f32.gmra.mrb[0].mxu0 %v2071
        %v2185 = vpop.f32.mrb[0].mxu0
        %v2186 = vadd.f32 0.0, %v2185
        %v2187 = vpop.f32.mrb[0].mxu0
        %2188 = vmatprep.mubr.f32.mxu0 0.0
        %2189 = vmatmul.mubr.f32.gmra.mrb[0].mxu0 %v2072
        %v2190 = vpop.f32.mrb[0].mxu0
        %v2191 = vadd.f32 0.0, %v2190
        %v2192 = vpop.f32.mrb[0].mxu0
        %2193 = vmatprep.mubr.f32.mxu0 0.0
        %2194 = vmatmul.mubr.f32.gmra.mrb[0].mxu0 %v2073
        %v2195 = vpop.f32.mrb[0].mxu0
        %v2196 = vadd.f32 0.0, %v2195
        %v2197 = vpop.f32.mrb[0].mxu0
        %2198 = vmatprep.mubr.f32.mxu0 0.0
        %2199 = vmatmul.mubr.f32.gmra.mrb[0].mxu0 %v2074
        %v2200 = vpop.f32.mrb[0].mxu0
        %v2201 = vadd.f32 0.0, %v2200
        %v2202 = vpop.f32.mrb[0].mxu0
        %2203 = vmatprep.mubr.f32.mxu0 0.0
        %2204 = vmatmul.mubr.f32.gmra.mrb[0].mxu0 %v2075
        %v2205 = vpop.f32.mrb[0].mxu0
        %v2206 = vadd.f32 0.0, %v2205
        %v2207 = vpop.f32.mrb[0].mxu0
        %2208 = vmatprep.mubr.f32.mxu0 0.0
        %2209 = vmatmul.mubr.f32.gmra.mrb[0].mxu0 %v2076
        %v2210 = vpop.f32.mrb[0].mxu0
        %v2211 = vadd.f32 0.0, %v2210
        %v2212 = vpop.f32.mrb[0].mxu0
        %2213 = vmatprep.mubr.f32.mxu0 0.0
        %2214 = vmatmul.mubr.f32.gmra.mrb[0].mxu0 %v2077
        %v2215 = vpop.f32.mrb[0].mxu0
        %v2216 = vadd.f32 0.0, %v2215
        %v2217 = vpop.f32.mrb[0].mxu0
        %2218 = vmatprep.mubr.f32.mxu0 0.0
        %2219 = vmatmul.mubr.f32.gmra.mrb[0].mxu0 %v2078
        %v2220 = vpop.f32.mrb[0].mxu0
        %v2221 = vadd.f32 0.0, %v2220
        %v2222 = vpop.f32.mrb[0].mxu0
        %2223 = vmatprep.mubr.f32.mxu0 0.0
        %2224 = vmatmul.mubr.f32.gmra.mrb[0].mxu0 %v2079
        %v2225 = vpop.f32.mrb[0].mxu0
        %v2226 = vadd.f32 0.0, %v2225
        %v2227 = vpop.f32.mrb[0].mxu0
        %2228 = vmatprep.mubr.f32.mxu0 0.0
        %2229 = vmatmul.mubr.f32.gmra.mrb[0].mxu0 %v2080
        %v2230 = vpop.f32.mrb[0].mxu0
        %v2231 = vadd.f32 0.0, %v2230
        %v2232 = vpop.f32.mrb[0].mxu0
        %2233 = vmatprep.mubr.f32.mxu0 0.0
        %2234 = vmatmul.mubr.f32.gmra.mrb[0].mxu0 %v2081
        %v2235 = vpop.f32.mrb[0].mxu0
        %v2236 = vadd.f32 0.0, %v2235
        %v2237 = vpop.f32.mrb[0].mxu0
        %2238 = vmatprep.mubr.f32.mxu0 0.0
        %2239 = vmatmul.mubr.f32.gmra.mrb[0].mxu0 %v2082
        %v2240 = vpop.f32.mrb[0].mxu0
        %v2241 = vadd.f32 0.0, %v2240
        %v2242 = vpop.f32.mrb[0].mxu0
        %2243 = vmatprep.mubr.f32.mxu0 0.0
        %2244 = vmatmul.mubr.f32.gmra.mrb[0].mxu0 %v2083
        %v2245 = vpop.f32.mrb[0].mxu0
        %v2246 = vadd.f32 0.0, %v2245
        %v2247 = vpop.f32.mrb[0].mxu0
        %2248 = vmatprep.mubr.f32.mxu0 0.0
        %2249 = vmatmul.mubr.f32.gmra.mrb[0].mxu0 %v2084
        %v2250 = vpop.f32.mrb[0].mxu0
        %v2251 = vadd.f32 0.0, %v2250
        %v2252 = vpop.f32.mrb[0].mxu0
        %2253 = vmatprep.mubr.f32.mxu0 0.0
        %2254 = vmatmul.mubr.f32.gmra.mrb[0].mxu0 %v2085
        %v2255 = vpop.f32.mrb[0].mxu0
        %v2256 = vadd.f32 0.0, %v2255
        %v2257 = vpop.f32.mrb[0].mxu0
        %2258 = vmatprep.mubr.f32.mxu0 0.0
        %2259 = vmatmul.mubr.f32.gmra.mrb[0].mxu0 %v2086
        %v2260 = vpop.f32.mrb[0].mxu0
        %v2261 = vadd.f32 0.0, %v2260
        %v2262 = vpop.f32.mrb[0].mxu0
        %2263 = vmatprep.mubr.f32.mxu0 0.0
        %2264 = vmatmul.mubr.f32.gmra.mrb[0].mxu0 %v2087
        %v2265 = vpop.f32.mrb[0].mxu0
        %v2266 = vadd.f32 0.0, %v2265
        %v2267 = vpop.f32.mrb[0].mxu0
        %2268 = vmatprep.mubr.f32.mxu0 0.0
        %2269 = vmatmul.mubr.f32.gmra.mrb[0].mxu0 %v2088
        %v2270 = vpop.f32.mrb[0].mxu0
        %v2271 = vadd.f32 0.0, %v2270
        %v2272 = vpop.f32.mrb[0].mxu0
        %2273 = vmatprep.mubr.f32.mxu0 0.0
        %2274 = vmatmul.mubr.f32.gmra.mrb[0].mxu0 %v2089
        %v2275 = vpop.f32.mrb[0].mxu0
        %v2276 = vadd.f32 0.0, %v2275
        %v2277 = vpop.f32.mrb[0].mxu0
        %2278 = vmatprep.mubr.f32.mxu0 0.0
        %2279 = vmatmul.mubr.f32.gmra.mrb[0].mxu0 %v2090
        %v2280 = vpop.f32.mrb[0].mxu0
        %v2281 = vadd.f32 0.0, %v2280
        %v2282 = vpop.f32.mrb[0].mxu0
        %2283 = vmatprep.mubr.f32.mxu0 0.0
        %2284 = vmatmul.mubr.f32.gmra.mrb[0].mxu0 %v2091
        %v2285 = vpop.f32.mrb[0].mxu0
        %v2286 = vadd.f32 0.0, %v2285
        %v2287 = vpop.f32.mrb[0].mxu0
        %2288 = vmatprep.mubr.f32.mxu0 0.0
        %2289 = vmatmul.mubr.f32.gmra.mrb[0].mxu0 %v2092
        %v2290 = vpop.f32.mrb[0].mxu0
        %v2291 = vadd.f32 0.0, %v2290
        %v2292 = vpop.f32.mrb[0].mxu0
        %2293 = vmatprep.mubr.f32.mxu0 0.0
        %2294 = vmatmul.mubr.f32.gmra.mrb[0].mxu0 %v2093
        %v2295 = vpop.f32.mrb[0].mxu0
        %v2296 = vadd.f32 0.0, %v2295
        %v2297 = vpop.f32.mrb[0].mxu0
        %2298 = vmatprep.mubr.f32.mxu0 0.0
        %2299 = vmatmul.mubr.f32.gmra.mrb[0].mxu0 %v2094
        %v2300 = vpop.f32.mrb[0].mxu0
        %v2301 = vadd.f32 0.0, %v2300
        %v2302 = vpop.f32.mrb[0].mxu0
        %2303 = vmatprep.mubr.f32.mxu0 0.0
        %2304 = vmatmul.mubr.f32.gmra.mrb[0].mxu0 %v2095
        %v2305 = vpop.f32.mrb[0].mxu0
        %v2306 = vadd.f32 0.0, %v2305
        %v2307 = vpop.f32.mrb[0].mxu0
        %2308 = vmatprep.mubr.f32.mxu0 0.0
        %2309 = vmatmul.mubr.f32.gmra.mrb[0].mxu0 %v2096
        %v2310 = vpop.f32.mrb[0].mxu0
        %v2311 = vadd.f32 0.0, %v2310
        %v2312 = vpop.f32.mrb[0].mxu0
        %2313 = vmatprep.mubr.f32.mxu0 0.0
        %2314 = vmatmul.mubr.f32.gmra.mrb[0].mxu0 %v2097
        %v2315 = vpop.f32.mrb[0].mxu0
        %v2316 = vadd.f32 0.0, %v2315
        %v2317 = vpop.f32.mrb[0].mxu0
        %2318 = vmatprep.mubr.f32.mxu0 0.0
        %2319 = vmatmul.mubr.f32.gmra.mrb[0].mxu0 %v2098
        %v2320 = vpop.f32.mrb[0].mxu0
        %v2321 = vadd.f32 0.0, %v2320
        %v2322 = vpop.f32.mrb[0].mxu0
        %2323 = vmatprep.mubr.f32.mxu0 0.0
        %2324 = vmatmul.mubr.f32.gmra.mrb[0].mxu0 %v2099
        %v2325 = vpop.f32.mrb[0].mxu0
        %v2326 = vadd.f32 0.0, %v2325
        %v2327 = vpop.f32.mrb[0].mxu0
        %2328 = vmatprep.mubr.f32.mxu0 0.0
        %2329 = vmatmul.mubr.f32.gmra.mrb[0].mxu0 %v2100
        %v2330 = vpop.f32.mrb[0].mxu0
        %v2331 = vadd.f32 0.0, %v2330
        %v2332 = vpop.f32.mrb[0].mxu0
        %2333 = vmatprep.mubr.f32.mxu0 0.0
        %2334 = vmatmul.mubr.f32.gmra.mrb[0].mxu0 %v2101
        %v2335 = vpop.f32.mrb[0].mxu0
        %v2336 = vadd.f32 0.0, %v2335
        %v2337 = vpop.f32.mrb[0].mxu0
        %2338 = vmatprep.mubr.f32.mxu0 0.0
        %2339 = vmatmul.mubr.f32.gmra.mrb[0].mxu0 %v2102
        %v2340 = vpop.f32.mrb[0].mxu0
        %v2341 = vadd.f32 0.0, %v2340
        %v2342 = vpop.f32.mrb[0].mxu0
        %2343 = vdwg.mxu0
        %v2345 = vlaneseq
        %v2346 = vshrl.u32 %v2345, 7
        %v2347 = vsub.s32 0, %v2346
        %v2348 = vrot.slane %v1407, %v2347
        %v2350 = vmul.f32 %v2186, %v2348
        %v2351 = vmul.f32 %v2191, %v2348
        %v2352 = vmul.f32 %v2196, %v2348
        %v2353 = vmul.f32 %v2201, %v2348
        %v2354 = vmul.f32 %v2206, %v2348
        %v2355 = vmul.f32 %v2211, %v2348
        %v2356 = vmul.f32 %v2216, %v2348
        %v2357 = vmul.f32 %v2221, %v2348
        %v2358 = vmul.f32 %v2226, %v2348
        %v2359 = vmul.f32 %v2231, %v2348
        %v2360 = vmul.f32 %v2236, %v2348
        %v2361 = vmul.f32 %v2241, %v2348
        %v2362 = vmul.f32 %v2246, %v2348
        %v2363 = vmul.f32 %v2251, %v2348
        %v2364 = vmul.f32 %v2256, %v2348
        %v2365 = vmul.f32 %v2261, %v2348
        %v2366 = vmul.f32 %v2266, %v2348
        %v2367 = vmul.f32 %v2271, %v2348
        %v2368 = vmul.f32 %v2276, %v2348
        %v2369 = vmul.f32 %v2281, %v2348
        %v2370 = vmul.f32 %v2286, %v2348
        %v2371 = vmul.f32 %v2291, %v2348
        %v2372 = vmul.f32 %v2296, %v2348
        %v2373 = vmul.f32 %v2301, %v2348
        %v2374 = vmul.f32 %v2306, %v2348
        %v2375 = vmul.f32 %v2311, %v2348
        %v2376 = vmul.f32 %v2316, %v2348
        %v2377 = vmul.f32 %v2321, %v2348
        %v2378 = vmul.f32 %v2326, %v2348
        %v2379 = vmul.f32 %v2331, %v2348
        %v2380 = vmul.f32 %v2336, %v2348
        %v2381 = vmul.f32 %v2341, %v2348
        %v2383 = vlaneseq
        %v2384 = vshrl.u32 %v2383, 7
        %v2385 = vsub.s32 0, %v2384
        %v2386 = vrot.slane %v1410, %v2385
        %v2388 = vadd.f32 %v2350, %v2386
        %v2389 = vadd.f32 %v2351, %v2386
        %v2390 = vadd.f32 %v2352, %v2386
        %v2391 = vadd.f32 %v2353, %v2386
        %v2392 = vadd.f32 %v2354, %v2386
        %v2393 = vadd.f32 %v2355, %v2386
        %v2394 = vadd.f32 %v2356, %v2386
        %v2395 = vadd.f32 %v2357, %v2386
        %v2396 = vadd.f32 %v2358, %v2386
        %v2397 = vadd.f32 %v2359, %v2386
        %v2398 = vadd.f32 %v2360, %v2386
        %v2399 = vadd.f32 %v2361, %v2386
        %v2400 = vadd.f32 %v2362, %v2386
        %v2401 = vadd.f32 %v2363, %v2386
        %v2402 = vadd.f32 %v2364, %v2386
        %v2403 = vadd.f32 %v2365, %v2386
        %v2404 = vadd.f32 %v2366, %v2386
        %v2405 = vadd.f32 %v2367, %v2386
        %v2406 = vadd.f32 %v2368, %v2386
        %v2407 = vadd.f32 %v2369, %v2386
        %v2408 = vadd.f32 %v2370, %v2386
        %v2409 = vadd.f32 %v2371, %v2386
        %v2410 = vadd.f32 %v2372, %v2386
        %v2411 = vadd.f32 %v2373, %v2386
        %v2412 = vadd.f32 %v2374, %v2386
        %v2413 = vadd.f32 %v2375, %v2386
        %v2414 = vadd.f32 %v2376, %v2386
        %v2415 = vadd.f32 %v2377, %v2386
        %v2416 = vadd.f32 %v2378, %v2386
        %v2417 = vadd.f32 %v2379, %v2386
        %v2418 = vadd.f32 %v2380, %v2386
        %v2419 = vadd.f32 %v2381, %v2386
        %v2420 = vmax.f32 %v2388, 0.0
        %v2421 = vmax.f32 %v2389, 0.0
        %v2422 = vmax.f32 %v2390, 0.0
        %v2423 = vmax.f32 %v2391, 0.0
        %v2424 = vmax.f32 %v2392, 0.0
        %v2425 = vmax.f32 %v2393, 0.0
        %v2426 = vmax.f32 %v2394, 0.0
        %v2427 = vmax.f32 %v2395, 0.0
        %v2428 = vmax.f32 %v2396, 0.0
        %v2429 = vmax.f32 %v2397, 0.0
        %v2430 = vmax.f32 %v2398, 0.0
        %v2431 = vmax.f32 %v2399, 0.0
        %v2432 = vmax.f32 %v2400, 0.0
        %v2433 = vmax.f32 %v2401, 0.0
        %v2434 = vmax.f32 %v2402, 0.0
        %v2435 = vmax.f32 %v2403, 0.0
        %v2436 = vmax.f32 %v2404, 0.0
        %v2437 = vmax.f32 %v2405, 0.0
        %v2438 = vmax.f32 %v2406, 0.0
        %v2439 = vmax.f32 %v2407, 0.0
        %v2440 = vmax.f32 %v2408, 0.0
        %v2441 = vmax.f32 %v2409, 0.0
        %v2442 = vmax.f32 %v2410, 0.0
        %v2443 = vmax.f32 %v2411, 0.0
        %v2444 = vmax.f32 %v2412, 0.0
        %v2445 = vmax.f32 %v2413, 0.0
        %v2446 = vmax.f32 %v2414, 0.0
        %v2447 = vmax.f32 %v2415, 0.0
        %v2448 = vmax.f32 %v2416, 0.0
        %v2449 = vmax.f32 %v2417, 0.0
        %v2450 = vmax.f32 %v2418, 0.0
        %v2451 = vmax.f32 %v2419, 0.0
        %s2452 = scalar_lea.vmem %s13, 256
        %v2453 = vld [vmem:[%s2452] sm:$0xff]
        %v2454 = vld [vmem:[%s2452 + $0x8] sm:$0xff]
        %v2455 = vld [vmem:[%s2452 + $0x10] sm:$0xff]
        %v2456 = vld [vmem:[%s2452 + $0x18] sm:$0xff]
        %v2457 = vld [vmem:[%s2452 + $0x20] sm:$0xff]
        %v2458 = vld [vmem:[%s2452 + $0x28] sm:$0xff]
        %v2459 = vld [vmem:[%s2452 + $0x30] sm:$0xff]
        %v2460 = vld [vmem:[%s2452 + $0x38] sm:$0xff]
        %v2461 = vld [vmem:[%s2452 + $0x40] sm:$0xff]
        %v2462 = vld [vmem:[%s2452 + $0x48] sm:$0xff]
        %v2463 = vld [vmem:[%s2452 + $0x50] sm:$0xff]
        %v2464 = vld [vmem:[%s2452 + $0x58] sm:$0xff]
        %v2465 = vld [vmem:[%s2452 + $0x60] sm:$0xff]
        %v2466 = vld [vmem:[%s2452 + $0x68] sm:$0xff]
        %v2467 = vld [vmem:[%s2452 + $0x70] sm:$0xff]
        %v2468 = vld [vmem:[%s2452 + $0x78] sm:$0xff]
        %2469 = vmatprep.subr.mxu0 0.0
        %2470 = vmatpush1.msra.mxu0 %v2453
        %2471 = vmatprep.subr.mxu0 0.0
        %2472 = vmatpush1.msra.mxu0 %v2454
        %2473 = vmatprep.subr.mxu0 0.0
        %2474 = vmatpush1.msra.mxu0 %v2455
        %2475 = vmatprep.subr.mxu0 0.0
        %2476 = vmatpush1.msra.mxu0 %v2456
        %2477 = vmatprep.subr.mxu0 0.0
        %2478 = vmatpush1.msra.mxu0 %v2457
        %2479 = vmatprep.subr.mxu0 0.0
        %2480 = vmatpush1.msra.mxu0 %v2458
        %2481 = vmatprep.subr.mxu0 0.0
        %2482 = vmatpush1.msra.mxu0 %v2459
        %2483 = vmatprep.subr.mxu0 0.0
        %2484 = vmatpush1.msra.mxu0 %v2460
        %2485 = vmatprep.subr.mxu0 0.0
        %2486 = vmatpush1.msra.mxu0 %v2461
        %2487 = vmatprep.subr.mxu0 0.0
        %2488 = vmatpush1.msra.mxu0 %v2462
        %2489 = vmatprep.subr.mxu0 0.0
        %2490 = vmatpush1.msra.mxu0 %v2463
        %2491 = vmatprep.subr.mxu0 0.0
        %2492 = vmatpush1.msra.mxu0 %v2464
        %2493 = vmatprep.subr.mxu0 0.0
        %2494 = vmatpush1.msra.mxu0 %v2465
        %2495 = vmatprep.subr.mxu0 0.0
        %2496 = vmatpush1.msra.mxu0 %v2466
        %2497 = vmatprep.subr.mxu0 0.0
        %2498 = vmatpush1.msra.mxu0 %v2467
        %2499 = vmatprep.subr.mxu0 0.0
        %2500 = vmatpush1.msra.mxu0 %v2468
        %2501 = vmatprep.subr.mxu0 0.0
        %2502 = vmatpush1.msra.mxu0 0.0
        %2503 = vmatprep.subr.mxu0 0.0
        %2504 = vmatpush1.msra.mxu0 0.0
        %2505 = vmatprep.subr.mxu0 0.0
        %2506 = vmatpush1.msra.mxu0 0.0
        %2507 = vmatprep.subr.mxu0 0.0
        %2508 = vmatpush1.msra.mxu0 0.0
        %2509 = vmatprep.subr.mxu0 0.0
        %2510 = vmatpush1.msra.mxu0 0.0
        %2511 = vmatprep.subr.mxu0 0.0
        %2512 = vmatpush1.msra.mxu0 0.0
        %2513 = vmatprep.subr.mxu0 0.0
        %2514 = vmatpush1.msra.mxu0 0.0
        %2515 = vmatprep.subr.mxu0 0.0
        %2516 = vmatpush1.msra.mxu0 0.0
        %2517 = vmatprep.subr.mxu0 0.0
        %2518 = vmatpush1.msra.mxu0 0.0
        %2519 = vmatprep.subr.mxu0 0.0
        %2520 = vmatpush1.msra.mxu0 0.0
        %2521 = vmatprep.subr.mxu0 0.0
        %2522 = vmatpush1.msra.mxu0 0.0
        %2523 = vmatprep.subr.mxu0 0.0
        %2524 = vmatpush1.msra.mxu0 0.0
        %2525 = vmatprep.subr.mxu0 0.0
        %2526 = vmatpush1.msra.mxu0 0.0
        %2527 = vmatprep.subr.mxu0 0.0
        %2528 = vmatpush1.msra.mxu0 0.0
        %2529 = vmatprep.subr.mxu0 0.0
        %2530 = vmatpush1.msra.mxu0 0.0
        %2531 = vmatprep.subr.mxu0 0.0
        %2532 = vmatpush1.msra.mxu0 0.0
        %2533 = vmatprep.mubr.f32.mxu0 0.0
        %2534 = vmatmul.mubr.f32.gmra.mrb[0].mxu0 %v2420
        %v2535 = vpop.f32.mrb[0].mxu0
        %v2536 = vadd.f32 0.0, %v2535
        %v2537 = vpop.f32.mrb[0].mxu0
        %2538 = vmatprep.mubr.f32.mxu0 0.0
        %2539 = vmatmul.mubr.f32.gmra.mrb[0].mxu0 %v2421
        %v2540 = vpop.f32.mrb[0].mxu0
        %v2541 = vadd.f32 0.0, %v2540
        %v2542 = vpop.f32.mrb[0].mxu0
        %2543 = vmatprep.mubr.f32.mxu0 0.0
        %2544 = vmatmul.mubr.f32.gmra.mrb[0].mxu0 %v2422
        %v2545 = vpop.f32.mrb[0].mxu0
        %v2546 = vadd.f32 0.0, %v2545
        %v2547 = vpop.f32.mrb[0].mxu0
        %2548 = vmatprep.mubr.f32.mxu0 0.0
        %2549 = vmatmul.mubr.f32.gmra.mrb[0].mxu0 %v2423
        %v2550 = vpop.f32.mrb[0].mxu0
        %v2551 = vadd.f32 0.0, %v2550
        %v2552 = vpop.f32.mrb[0].mxu0
        %2553 = vmatprep.mubr.f32.mxu0 0.0
        %2554 = vmatmul.mubr.f32.gmra.mrb[0].mxu0 %v2424
        %v2555 = vpop.f32.mrb[0].mxu0
        %v2556 = vadd.f32 0.0, %v2555
        %v2557 = vpop.f32.mrb[0].mxu0
        %2558 = vmatprep.mubr.f32.mxu0 0.0
        %2559 = vmatmul.mubr.f32.gmra.mrb[0].mxu0 %v2425
        %v2560 = vpop.f32.mrb[0].mxu0
        %v2561 = vadd.f32 0.0, %v2560
        %v2562 = vpop.f32.mrb[0].mxu0
        %2563 = vmatprep.mubr.f32.mxu0 0.0
        %2564 = vmatmul.mubr.f32.gmra.mrb[0].mxu0 %v2426
        %v2565 = vpop.f32.mrb[0].mxu0
        %v2566 = vadd.f32 0.0, %v2565
        %v2567 = vpop.f32.mrb[0].mxu0
        %2568 = vmatprep.mubr.f32.mxu0 0.0
        %2569 = vmatmul.mubr.f32.gmra.mrb[0].mxu0 %v2427
        %v2570 = vpop.f32.mrb[0].mxu0
        %v2571 = vadd.f32 0.0, %v2570
        %v2572 = vpop.f32.mrb[0].mxu0
        %2573 = vmatprep.mubr.f32.mxu0 0.0
        %2574 = vmatmul.mubr.f32.gmra.mrb[0].mxu0 %v2428
        %v2575 = vpop.f32.mrb[0].mxu0
        %v2576 = vadd.f32 0.0, %v2575
        %v2577 = vpop.f32.mrb[0].mxu0
        %2578 = vmatprep.mubr.f32.mxu0 0.0
        %2579 = vmatmul.mubr.f32.gmra.mrb[0].mxu0 %v2429
        %v2580 = vpop.f32.mrb[0].mxu0
        %v2581 = vadd.f32 0.0, %v2580
        %v2582 = vpop.f32.mrb[0].mxu0
        %2583 = vmatprep.mubr.f32.mxu0 0.0
        %2584 = vmatmul.mubr.f32.gmra.mrb[0].mxu0 %v2430
        %v2585 = vpop.f32.mrb[0].mxu0
        %v2586 = vadd.f32 0.0, %v2585
        %v2587 = vpop.f32.mrb[0].mxu0
        %2588 = vmatprep.mubr.f32.mxu0 0.0
        %2589 = vmatmul.mubr.f32.gmra.mrb[0].mxu0 %v2431
        %v2590 = vpop.f32.mrb[0].mxu0
        %v2591 = vadd.f32 0.0, %v2590
        %v2592 = vpop.f32.mrb[0].mxu0
        %2593 = vmatprep.mubr.f32.mxu0 0.0
        %2594 = vmatmul.mubr.f32.gmra.mrb[0].mxu0 %v2432
        %v2595 = vpop.f32.mrb[0].mxu0
        %v2596 = vadd.f32 0.0, %v2595
        %v2597 = vpop.f32.mrb[0].mxu0
        %2598 = vmatprep.mubr.f32.mxu0 0.0
        %2599 = vmatmul.mubr.f32.gmra.mrb[0].mxu0 %v2433
        %v2600 = vpop.f32.mrb[0].mxu0
        %v2601 = vadd.f32 0.0, %v2600
        %v2602 = vpop.f32.mrb[0].mxu0
        %2603 = vmatprep.mubr.f32.mxu0 0.0
        %2604 = vmatmul.mubr.f32.gmra.mrb[0].mxu0 %v2434
        %v2605 = vpop.f32.mrb[0].mxu0
        %v2606 = vadd.f32 0.0, %v2605
        %v2607 = vpop.f32.mrb[0].mxu0
        %2608 = vmatprep.mubr.f32.mxu0 0.0
        %2609 = vmatmul.mubr.f32.gmra.mrb[0].mxu0 %v2435
        %v2610 = vpop.f32.mrb[0].mxu0
        %v2611 = vadd.f32 0.0, %v2610
        %v2612 = vpop.f32.mrb[0].mxu0
        %2613 = vmatprep.mubr.f32.mxu0 0.0
        %2614 = vmatmul.mubr.f32.gmra.mrb[0].mxu0 %v2436
        %v2615 = vpop.f32.mrb[0].mxu0
        %v2616 = vadd.f32 0.0, %v2615
        %v2617 = vpop.f32.mrb[0].mxu0
        %2618 = vmatprep.mubr.f32.mxu0 0.0
        %2619 = vmatmul.mubr.f32.gmra.mrb[0].mxu0 %v2437
        %v2620 = vpop.f32.mrb[0].mxu0
        %v2621 = vadd.f32 0.0, %v2620
        %v2622 = vpop.f32.mrb[0].mxu0
        %2623 = vmatprep.mubr.f32.mxu0 0.0
        %2624 = vmatmul.mubr.f32.gmra.mrb[0].mxu0 %v2438
        %v2625 = vpop.f32.mrb[0].mxu0
        %v2626 = vadd.f32 0.0, %v2625
        %v2627 = vpop.f32.mrb[0].mxu0
        %2628 = vmatprep.mubr.f32.mxu0 0.0
        %2629 = vmatmul.mubr.f32.gmra.mrb[0].mxu0 %v2439
        %v2630 = vpop.f32.mrb[0].mxu0
        %v2631 = vadd.f32 0.0, %v2630
        %v2632 = vpop.f32.mrb[0].mxu0
        %2633 = vmatprep.mubr.f32.mxu0 0.0
        %2634 = vmatmul.mubr.f32.gmra.mrb[0].mxu0 %v2440
        %v2635 = vpop.f32.mrb[0].mxu0
        %v2636 = vadd.f32 0.0, %v2635
        %v2637 = vpop.f32.mrb[0].mxu0
        %2638 = vmatprep.mubr.f32.mxu0 0.0
        %2639 = vmatmul.mubr.f32.gmra.mrb[0].mxu0 %v2441
        %v2640 = vpop.f32.mrb[0].mxu0
        %v2641 = vadd.f32 0.0, %v2640
        %v2642 = vpop.f32.mrb[0].mxu0
        %2643 = vmatprep.mubr.f32.mxu0 0.0
        %2644 = vmatmul.mubr.f32.gmra.mrb[0].mxu0 %v2442
        %v2645 = vpop.f32.mrb[0].mxu0
        %v2646 = vadd.f32 0.0, %v2645
        %v2647 = vpop.f32.mrb[0].mxu0
        %2648 = vmatprep.mubr.f32.mxu0 0.0
        %2649 = vmatmul.mubr.f32.gmra.mrb[0].mxu0 %v2443
        %v2650 = vpop.f32.mrb[0].mxu0
        %v2651 = vadd.f32 0.0, %v2650
        %v2652 = vpop.f32.mrb[0].mxu0
        %2653 = vmatprep.mubr.f32.mxu0 0.0
        %2654 = vmatmul.mubr.f32.gmra.mrb[0].mxu0 %v2444
        %v2655 = vpop.f32.mrb[0].mxu0
        %v2656 = vadd.f32 0.0, %v2655
        %v2657 = vpop.f32.mrb[0].mxu0
        %2658 = vmatprep.mubr.f32.mxu0 0.0
        %2659 = vmatmul.mubr.f32.gmra.mrb[0].mxu0 %v2445
        %v2660 = vpop.f32.mrb[0].mxu0
        %v2661 = vadd.f32 0.0, %v2660
        %v2662 = vpop.f32.mrb[0].mxu0
        %2663 = vmatprep.mubr.f32.mxu0 0.0
        %2664 = vmatmul.mubr.f32.gmra.mrb[0].mxu0 %v2446
        %v2665 = vpop.f32.mrb[0].mxu0
        %v2666 = vadd.f32 0.0, %v2665
        %v2667 = vpop.f32.mrb[0].mxu0
        %2668 = vmatprep.mubr.f32.mxu0 0.0
        %2669 = vmatmul.mubr.f32.gmra.mrb[0].mxu0 %v2447
        %v2670 = vpop.f32.mrb[0].mxu0
        %v2671 = vadd.f32 0.0, %v2670
        %v2672 = vpop.f32.mrb[0].mxu0
        %2673 = vmatprep.mubr.f32.mxu0 0.0
        %2674 = vmatmul.mubr.f32.gmra.mrb[0].mxu0 %v2448
        %v2675 = vpop.f32.mrb[0].mxu0
        %v2676 = vadd.f32 0.0, %v2675
        %v2677 = vpop.f32.mrb[0].mxu0
        %2678 = vmatprep.mubr.f32.mxu0 0.0
        %2679 = vmatmul.mubr.f32.gmra.mrb[0].mxu0 %v2449
        %v2680 = vpop.f32.mrb[0].mxu0
        %v2681 = vadd.f32 0.0, %v2680
        %v2682 = vpop.f32.mrb[0].mxu0
        %2683 = vmatprep.mubr.f32.mxu0 0.0
        %2684 = vmatmul.mubr.f32.gmra.mrb[0].mxu0 %v2450
        %v2685 = vpop.f32.mrb[0].mxu0
        %v2686 = vadd.f32 0.0, %v2685
        %v2687 = vpop.f32.mrb[0].mxu0
        %2688 = vmatprep.mubr.f32.mxu0 0.0
        %2689 = vmatmul.mubr.f32.gmra.mrb[0].mxu0 %v2451
        %v2690 = vpop.f32.mrb[0].mxu0
        %v2691 = vadd.f32 0.0, %v2690
        %v2692 = vpop.f32.mrb[0].mxu0
        %2693 = vdwg.mxu0
        %v2694 = vadd.f32 %v1365, %v2536
        %v2695 = vadd.f32 %v1366, %v2541
        %v2696 = vadd.f32 %v1367, %v2546
        %v2697 = vadd.f32 %v1368, %v2551
        %v2698 = vadd.f32 %v1369, %v2556
        %v2699 = vadd.f32 %v1370, %v2561
        %v2700 = vadd.f32 %v1371, %v2566
        %v2701 = vadd.f32 %v1372, %v2571
        %v2702 = vadd.f32 %v1373, %v2576
        %v2703 = vadd.f32 %v1374, %v2581
        %v2704 = vadd.f32 %v1375, %v2586
        %v2705 = vadd.f32 %v1376, %v2591
        %v2706 = vadd.f32 %v1377, %v2596
        %v2707 = vadd.f32 %v1378, %v2601
        %v2708 = vadd.f32 %v1379, %v2606
        %v2709 = vadd.f32 %v1380, %v2611
        %v2710 = vadd.f32 %v1381, %v2616
        %v2711 = vadd.f32 %v1382, %v2621
        %v2712 = vadd.f32 %v1383, %v2626
        %v2713 = vadd.f32 %v1384, %v2631
        %v2714 = vadd.f32 %v1385, %v2636
        %v2715 = vadd.f32 %v1386, %v2641
        %v2716 = vadd.f32 %v1387, %v2646
        %v2717 = vadd.f32 %v1388, %v2651
        %v2718 = vadd.f32 %v1389, %v2656
        %v2719 = vadd.f32 %v1390, %v2661
        %v2720 = vadd.f32 %v1391, %v2666
        %v2721 = vadd.f32 %v1392, %v2671
        %v2722 = vadd.f32 %v1393, %v2676
        %v2723 = vadd.f32 %v1394, %v2681
        %v2724 = vadd.f32 %v1395, %v2686
        %v2725 = vadd.f32 %v1396, %v2691
        %2726 = vst [vmem:[#allocation2] sm:$0xff] 0.0
        %2727 = vst [vmem:[#allocation2 + $0x8] sm:$0xff] 0.0
        %2728 = vst [vmem:[#allocation2 + $0x10] sm:$0xff] 0.0
        %2729 = vst [vmem:[#allocation2 + $0x18] sm:$0xff] 0.0
        %2730 = vst [vmem:[#allocation2 + $0x20] sm:$0xff] 0.0
        %2731 = vst [vmem:[#allocation2 + $0x28] sm:$0xff] 0.0
        %2732 = vst [vmem:[#allocation2 + $0x30] sm:$0xff] 0.0
        %2733 = vst [vmem:[#allocation2 + $0x38] sm:$0xff] 0.0
        %2734 = vst [vmem:[#allocation2 + $0x40] sm:$0xff] 0.0
        %2735 = vst [vmem:[#allocation2 + $0x48] sm:$0xff] 0.0
        %2736 = vst [vmem:[#allocation2 + $0x50] sm:$0xff] 0.0
        %2737 = vst [vmem:[#allocation2 + $0x58] sm:$0xff] 0.0
        %2738 = vst [vmem:[#allocation2 + $0x60] sm:$0xff] 0.0
        %2739 = vst [vmem:[#allocation2 + $0x68] sm:$0xff] 0.0
        %2740 = vst [vmem:[#allocation2 + $0x70] sm:$0xff] 0.0
        %2741 = vst [vmem:[#allocation2 + $0x78] sm:$0xff] 0.0
        %2742 = vst [vmem:[#allocation2 + $0x80] sm:$0xff] 0.0
        %2743 = vst [vmem:[#allocation2 + $0x88] sm:$0xff] 0.0
        %2744 = vst [vmem:[#allocation2 + $0x90] sm:$0xff] 0.0
        %2745 = vst [vmem:[#allocation2 + $0x98] sm:$0xff] 0.0
        %2746 = vst [vmem:[#allocation2 + $0xa0] sm:$0xff] 0.0
        %2747 = vst [vmem:[#allocation2 + $0xa8] sm:$0xff] 0.0
        %2748 = vst [vmem:[#allocation2 + $0xb0] sm:$0xff] 0.0
        %2749 = vst [vmem:[#allocation2 + $0xb8] sm:$0xff] 0.0
        %2750 = vst [vmem:[#allocation2 + $0xc0] sm:$0xff] 0.0
        %2751 = vst [vmem:[#allocation2 + $0xc8] sm:$0xff] 0.0
        %2752 = vst [vmem:[#allocation2 + $0xd0] sm:$0xff] 0.0
        %2753 = vst [vmem:[#allocation2 + $0xd8] sm:$0xff] 0.0
        %2754 = vst [vmem:[#allocation2 + $0xe0] sm:$0xff] 0.0
        %2755 = vst [vmem:[#allocation2 + $0xe8] sm:$0xff] 0.0
        %2756 = vst [vmem:[#allocation2 + $0xf0] sm:$0xff] 0.0
        %2757 = vst [vmem:[#allocation2 + $0xf8] sm:$0xff] 0.0
        %v2758 = vld [vmem:[#allocation2] sm:$0xff]
        %v2759 = vld [vmem:[#allocation2 + $0x8] sm:$0xff]
        %v2760 = vld [vmem:[#allocation2 + $0x10] sm:$0xff]
        %v2761 = vld [vmem:[#allocation2 + $0x18] sm:$0xff]
        %v2762 = vld [vmem:[#allocation2 + $0x20] sm:$0xff]
        %v2763 = vld [vmem:[#allocation2 + $0x28] sm:$0xff]
        %v2764 = vld [vmem:[#allocation2 + $0x30] sm:$0xff]
        %v2765 = vld [vmem:[#allocation2 + $0x38] sm:$0xff]
        %v2766 = vld [vmem:[#allocation2 + $0x40] sm:$0xff]
        %v2767 = vld [vmem:[#allocation2 + $0x48] sm:$0xff]
        %v2768 = vld [vmem:[#allocation2 + $0x50] sm:$0xff]
        %v2769 = vld [vmem:[#allocation2 + $0x58] sm:$0xff]
        %v2770 = vld [vmem:[#allocation2 + $0x60] sm:$0xff]
        %v2771 = vld [vmem:[#allocation2 + $0x68] sm:$0xff]
        %v2772 = vld [vmem:[#allocation2 + $0x70] sm:$0xff]
        %v2773 = vld [vmem:[#allocation2 + $0x78] sm:$0xff]
        %v2774 = vld [vmem:[#allocation2 + $0x80] sm:$0xff]
        %v2775 = vld [vmem:[#allocation2 + $0x88] sm:$0xff]
        %v2776 = vld [vmem:[#allocation2 + $0x90] sm:$0xff]
        %v2777 = vld [vmem:[#allocation2 + $0x98] sm:$0xff]
        %v2778 = vld [vmem:[#allocation2 + $0xa0] sm:$0xff]
        %v2779 = vld [vmem:[#allocation2 + $0xa8] sm:$0xff]
        %v2780 = vld [vmem:[#allocation2 + $0xb0] sm:$0xff]
        %v2781 = vld [vmem:[#allocation2 + $0xb8] sm:$0xff]
        %v2782 = vld [vmem:[#allocation2 + $0xc0] sm:$0xff]
        %v2783 = vld [vmem:[#allocation2 + $0xc8] sm:$0xff]
        %v2784 = vld [vmem:[#allocation2 + $0xd0] sm:$0xff]
        %v2785 = vld [vmem:[#allocation2 + $0xd8] sm:$0xff]
        %v2786 = vld [vmem:[#allocation2 + $0xe0] sm:$0xff]
        %v2787 = vld [vmem:[#allocation2 + $0xe8] sm:$0xff]
        %v2788 = vld [vmem:[#allocation2 + $0xf0] sm:$0xff]
        %v2789 = vld [vmem:[#allocation2 + $0xf8] sm:$0xff]
        %v2790 = vld [vmem:[%s519] sm:$0xff]
        %v2791 = vld [vmem:[%s519 + $0x8] sm:$0xff]
        %v2792 = vld [vmem:[%s519 + $0x10] sm:$0xff]
        %v2793 = vld [vmem:[%s519 + $0x18] sm:$0xff]
        %v2794 = vld [vmem:[%s519 + $0x20] sm:$0xff]
        %v2795 = vld [vmem:[%s519 + $0x28] sm:$0xff]
        %v2796 = vld [vmem:[%s519 + $0x30] sm:$0xff]
        %v2797 = vld [vmem:[%s519 + $0x38] sm:$0xff]
        %v2798 = vld [vmem:[%s519 + $0x40] sm:$0xff]
        %v2799 = vld [vmem:[%s519 + $0x48] sm:$0xff]
        %v2800 = vld [vmem:[%s519 + $0x50] sm:$0xff]
        %v2801 = vld [vmem:[%s519 + $0x58] sm:$0xff]
        %v2802 = vld [vmem:[%s519 + $0x60] sm:$0xff]
        %v2803 = vld [vmem:[%s519 + $0x68] sm:$0xff]
        %v2804 = vld [vmem:[%s519 + $0x70] sm:$0xff]
        %v2805 = vld [vmem:[%s519 + $0x78] sm:$0xff]
        %v2806 = vld [vmem:[%s519 + $0x80] sm:$0xff]
        %v2807 = vld [vmem:[%s519 + $0x88] sm:$0xff]
        %v2808 = vld [vmem:[%s519 + $0x90] sm:$0xff]
        %v2809 = vld [vmem:[%s519 + $0x98] sm:$0xff]
        %v2810 = vld [vmem:[%s519 + $0xa0] sm:$0xff]
        %v2811 = vld [vmem:[%s519 + $0xa8] sm:$0xff]
        %v2812 = vld [vmem:[%s519 + $0xb0] sm:$0xff]
        %v2813 = vld [vmem:[%s519 + $0xb8] sm:$0xff]
        %v2814 = vld [vmem:[%s519 + $0xc0] sm:$0xff]
        %v2815 = vld [vmem:[%s519 + $0xc8] sm:$0xff]
        %v2816 = vld [vmem:[%s519 + $0xd0] sm:$0xff]
        %v2817 = vld [vmem:[%s519 + $0xd8] sm:$0xff]
        %v2818 = vld [vmem:[%s519 + $0xe0] sm:$0xff]
        %v2819 = vld [vmem:[%s519 + $0xe8] sm:$0xff]
        %v2820 = vld [vmem:[%s519 + $0xf0] sm:$0xff]
        %v2821 = vld [vmem:[%s519 + $0xf8] sm:$0xff]
        %v2822 = vlaneseq
        %v2823 = vshrl.u32 %v2822, 7
        %v2824 = vsub.s32 4, %v2823
        %v2825 = vrot.slane %v1399, %v2824
        %v2826 = vmul.f32 %v2790, %v2825
        %v2827 = vmul.f32 %v2791, %v2825
        %v2828 = vmul.f32 %v2792, %v2825
        %v2829 = vmul.f32 %v2793, %v2825
        %v2830 = vmul.f32 %v2794, %v2825
        %v2831 = vmul.f32 %v2795, %v2825
        %v2832 = vmul.f32 %v2796, %v2825
        %v2833 = vmul.f32 %v2797, %v2825
        %v2834 = vmul.f32 %v2798, %v2825
        %v2835 = vmul.f32 %v2799, %v2825
        %v2836 = vmul.f32 %v2800, %v2825
        %v2837 = vmul.f32 %v2801, %v2825
        %v2838 = vmul.f32 %v2802, %v2825
        %v2839 = vmul.f32 %v2803, %v2825
        %v2840 = vmul.f32 %v2804, %v2825
        %v2841 = vmul.f32 %v2805, %v2825
        %v2842 = vmul.f32 %v2806, %v2825
        %v2843 = vmul.f32 %v2807, %v2825
        %v2844 = vmul.f32 %v2808, %v2825
        %v2845 = vmul.f32 %v2809, %v2825
        %v2846 = vmul.f32 %v2810, %v2825
        %v2847 = vmul.f32 %v2811, %v2825
        %v2848 = vmul.f32 %v2812, %v2825
        %v2849 = vmul.f32 %v2813, %v2825
        %v2850 = vmul.f32 %v2814, %v2825
        %v2851 = vmul.f32 %v2815, %v2825
        %v2852 = vmul.f32 %v2816, %v2825
        %v2853 = vmul.f32 %v2817, %v2825
        %v2854 = vmul.f32 %v2818, %v2825
        %v2855 = vmul.f32 %v2819, %v2825
        %v2856 = vmul.f32 %v2820, %v2825
        %v2857 = vmul.f32 %v2821, %v2825
        %v2858 = vadd.f32 %v2758, %v2826
        %v2859 = vadd.f32 %v2759, %v2827
        %v2860 = vadd.f32 %v2760, %v2828
        %v2861 = vadd.f32 %v2761, %v2829
        %v2862 = vadd.f32 %v2762, %v2830
        %v2863 = vadd.f32 %v2763, %v2831
        %v2864 = vadd.f32 %v2764, %v2832
        %v2865 = vadd.f32 %v2765, %v2833
        %v2866 = vadd.f32 %v2766, %v2834
        %v2867 = vadd.f32 %v2767, %v2835
        %v2868 = vadd.f32 %v2768, %v2836
        %v2869 = vadd.f32 %v2769, %v2837
        %v2870 = vadd.f32 %v2770, %v2838
        %v2871 = vadd.f32 %v2771, %v2839
        %v2872 = vadd.f32 %v2772, %v2840
        %v2873 = vadd.f32 %v2773, %v2841
        %v2874 = vadd.f32 %v2774, %v2842
        %v2875 = vadd.f32 %v2775, %v2843
        %v2876 = vadd.f32 %v2776, %v2844
        %v2877 = vadd.f32 %v2777, %v2845
        %v2878 = vadd.f32 %v2778, %v2846
        %v2879 = vadd.f32 %v2779, %v2847
        %v2880 = vadd.f32 %v2780, %v2848
        %v2881 = vadd.f32 %v2781, %v2849
        %v2882 = vadd.f32 %v2782, %v2850
        %v2883 = vadd.f32 %v2783, %v2851
        %v2884 = vadd.f32 %v2784, %v2852
        %v2885 = vadd.f32 %v2785, %v2853
        %v2886 = vadd.f32 %v2786, %v2854
        %v2887 = vadd.f32 %v2787, %v2855
        %v2888 = vadd.f32 %v2788, %v2856
        %v2889 = vadd.f32 %v2789, %v2857
        %2890 = vst [vmem:[#allocation2] sm:$0xff] %v2858
        %2891 = vst [vmem:[#allocation2 + $0x8] sm:$0xff] %v2859
        %2892 = vst [vmem:[#allocation2 + $0x10] sm:$0xff] %v2860
        %2893 = vst [vmem:[#allocation2 + $0x18] sm:$0xff] %v2861
        %2894 = vst [vmem:[#allocation2 + $0x20] sm:$0xff] %v2862
        %2895 = vst [vmem:[#allocation2 + $0x28] sm:$0xff] %v2863
        %2896 = vst [vmem:[#allocation2 + $0x30] sm:$0xff] %v2864
        %2897 = vst [vmem:[#allocation2 + $0x38] sm:$0xff] %v2865
        %2898 = vst [vmem:[#allocation2 + $0x40] sm:$0xff] %v2866
        %2899 = vst [vmem:[#allocation2 + $0x48] sm:$0xff] %v2867
        %2900 = vst [vmem:[#allocation2 + $0x50] sm:$0xff] %v2868
        %2901 = vst [vmem:[#allocation2 + $0x58] sm:$0xff] %v2869
        %2902 = vst [vmem:[#allocation2 + $0x60] sm:$0xff] %v2870
        %2903 = vst [vmem:[#allocation2 + $0x68] sm:$0xff] %v2871
        %2904 = vst [vmem:[#allocation2 + $0x70] sm:$0xff] %v2872
        %2905 = vst [vmem:[#allocation2 + $0x78] sm:$0xff] %v2873
        %2906 = vst [vmem:[#allocation2 + $0x80] sm:$0xff] %v2874
        %2907 = vst [vmem:[#allocation2 + $0x88] sm:$0xff] %v2875
        %2908 = vst [vmem:[#allocation2 + $0x90] sm:$0xff] %v2876
        %2909 = vst [vmem:[#allocation2 + $0x98] sm:$0xff] %v2877
        %2910 = vst [vmem:[#allocation2 + $0xa0] sm:$0xff] %v2878
        %2911 = vst [vmem:[#allocation2 + $0xa8] sm:$0xff] %v2879
        %2912 = vst [vmem:[#allocation2 + $0xb0] sm:$0xff] %v2880
        %2913 = vst [vmem:[#allocation2 + $0xb8] sm:$0xff] %v2881
        %2914 = vst [vmem:[#allocation2 + $0xc0] sm:$0xff] %v2882
        %2915 = vst [vmem:[#allocation2 + $0xc8] sm:$0xff] %v2883
        %2916 = vst [vmem:[#allocation2 + $0xd0] sm:$0xff] %v2884
        %2917 = vst [vmem:[#allocation2 + $0xd8] sm:$0xff] %v2885
        %2918 = vst [vmem:[#allocation2 + $0xe0] sm:$0xff] %v2886
        %2919 = vst [vmem:[#allocation2 + $0xe8] sm:$0xff] %v2887
        %2920 = vst [vmem:[#allocation2 + $0xf0] sm:$0xff] %v2888
        %2921 = vst [vmem:[#allocation2 + $0xf8] sm:$0xff] %v2889
        %v2922 = vld [vmem:[#allocation2] sm:$0xff]
        %v2923 = vld [vmem:[#allocation2 + $0x8] sm:$0xff]
        %v2924 = vld [vmem:[#allocation2 + $0x10] sm:$0xff]
        %v2925 = vld [vmem:[#allocation2 + $0x18] sm:$0xff]
        %v2926 = vld [vmem:[#allocation2 + $0x20] sm:$0xff]
        %v2927 = vld [vmem:[#allocation2 + $0x28] sm:$0xff]
        %v2928 = vld [vmem:[#allocation2 + $0x30] sm:$0xff]
        %v2929 = vld [vmem:[#allocation2 + $0x38] sm:$0xff]
        %v2930 = vld [vmem:[#allocation2 + $0x40] sm:$0xff]
        %v2931 = vld [vmem:[#allocation2 + $0x48] sm:$0xff]
        %v2932 = vld [vmem:[#allocation2 + $0x50] sm:$0xff]
        %v2933 = vld [vmem:[#allocation2 + $0x58] sm:$0xff]
        %v2934 = vld [vmem:[#allocation2 + $0x60] sm:$0xff]
        %v2935 = vld [vmem:[#allocation2 + $0x68] sm:$0xff]
        %v2936 = vld [vmem:[#allocation2 + $0x70] sm:$0xff]
        %v2937 = vld [vmem:[#allocation2 + $0x78] sm:$0xff]
        %v2938 = vld [vmem:[#allocation2 + $0x80] sm:$0xff]
        %v2939 = vld [vmem:[#allocation2 + $0x88] sm:$0xff]
        %v2940 = vld [vmem:[#allocation2 + $0x90] sm:$0xff]
        %v2941 = vld [vmem:[#allocation2 + $0x98] sm:$0xff]
        %v2942 = vld [vmem:[#allocation2 + $0xa0] sm:$0xff]
        %v2943 = vld [vmem:[#allocation2 + $0xa8] sm:$0xff]
        %v2944 = vld [vmem:[#allocation2 + $0xb0] sm:$0xff]
        %v2945 = vld [vmem:[#allocation2 + $0xb8] sm:$0xff]
        %v2946 = vld [vmem:[#allocation2 + $0xc0] sm:$0xff]
        %v2947 = vld [vmem:[#allocation2 + $0xc8] sm:$0xff]
        %v2948 = vld [vmem:[#allocation2 + $0xd0] sm:$0xff]
        %v2949 = vld [vmem:[#allocation2 + $0xd8] sm:$0xff]
        %v2950 = vld [vmem:[#allocation2 + $0xe0] sm:$0xff]
        %v2951 = vld [vmem:[#allocation2 + $0xe8] sm:$0xff]
        %v2952 = vld [vmem:[#allocation2 + $0xf0] sm:$0xff]
        %v2953 = vld [vmem:[#allocation2 + $0xf8] sm:$0xff]
        %v2955 = vlaneseq
        %v2956 = vshrl.u32 %v2955, 7
        %v2957 = vsub.s32 0, %v2956
        %v2958 = vrot.slane %v1402, %v2957
        %v2960 = vmul.f32 %v2922, %v2958
        %v2961 = vmul.f32 %v2923, %v2958
        %v2962 = vmul.f32 %v2924, %v2958
        %v2963 = vmul.f32 %v2925, %v2958
        %v2964 = vmul.f32 %v2926, %v2958
        %v2965 = vmul.f32 %v2927, %v2958
        %v2966 = vmul.f32 %v2928, %v2958
        %v2967 = vmul.f32 %v2929, %v2958
        %v2968 = vmul.f32 %v2930, %v2958
        %v2969 = vmul.f32 %v2931, %v2958
        %v2970 = vmul.f32 %v2932, %v2958
        %v2971 = vmul.f32 %v2933, %v2958
        %v2972 = vmul.f32 %v2934, %v2958
        %v2973 = vmul.f32 %v2935, %v2958
        %v2974 = vmul.f32 %v2936, %v2958
        %v2975 = vmul.f32 %v2937, %v2958
        %v2976 = vmul.f32 %v2938, %v2958
        %v2977 = vmul.f32 %v2939, %v2958
        %v2978 = vmul.f32 %v2940, %v2958
        %v2979 = vmul.f32 %v2941, %v2958
        %v2980 = vmul.f32 %v2942, %v2958
        %v2981 = vmul.f32 %v2943, %v2958
        %v2982 = vmul.f32 %v2944, %v2958
        %v2983 = vmul.f32 %v2945, %v2958
        %v2984 = vmul.f32 %v2946, %v2958
        %v2985 = vmul.f32 %v2947, %v2958
        %v2986 = vmul.f32 %v2948, %v2958
        %v2987 = vmul.f32 %v2949, %v2958
        %v2988 = vmul.f32 %v2950, %v2958
        %v2989 = vmul.f32 %v2951, %v2958
        %v2990 = vmul.f32 %v2952, %v2958
        %v2991 = vmul.f32 %v2953, %v2958
        %v2993 = vlaneseq
        %v2994 = vshrl.u32 %v2993, 7
        %v2995 = vsub.s32 0, %v2994
        %v2996 = vrot.slane %v1405, %v2995
        %v2998 = vadd.f32 %v2960, %v2996
        %v2999 = vadd.f32 %v2961, %v2996
        %v3000 = vadd.f32 %v2962, %v2996
        %v3001 = vadd.f32 %v2963, %v2996
        %v3002 = vadd.f32 %v2964, %v2996
        %v3003 = vadd.f32 %v2965, %v2996
        %v3004 = vadd.f32 %v2966, %v2996
        %v3005 = vadd.f32 %v2967, %v2996
        %v3006 = vadd.f32 %v2968, %v2996
        %v3007 = vadd.f32 %v2969, %v2996
        %v3008 = vadd.f32 %v2970, %v2996
        %v3009 = vadd.f32 %v2971, %v2996
        %v3010 = vadd.f32 %v2972, %v2996
        %v3011 = vadd.f32 %v2973, %v2996
        %v3012 = vadd.f32 %v2974, %v2996
        %v3013 = vadd.f32 %v2975, %v2996
        %v3014 = vadd.f32 %v2976, %v2996
        %v3015 = vadd.f32 %v2977, %v2996
        %v3016 = vadd.f32 %v2978, %v2996
        %v3017 = vadd.f32 %v2979, %v2996
        %v3018 = vadd.f32 %v2980, %v2996
        %v3019 = vadd.f32 %v2981, %v2996
        %v3020 = vadd.f32 %v2982, %v2996
        %v3021 = vadd.f32 %v2983, %v2996
        %v3022 = vadd.f32 %v2984, %v2996
        %v3023 = vadd.f32 %v2985, %v2996
        %v3024 = vadd.f32 %v2986, %v2996
        %v3025 = vadd.f32 %v2987, %v2996
        %v3026 = vadd.f32 %v2988, %v2996
        %v3027 = vadd.f32 %v2989, %v2996
        %v3028 = vadd.f32 %v2990, %v2996
        %v3029 = vadd.f32 %v2991, %v2996
        %v3030 = vmax.f32 %v2998, 0.0
        %v3031 = vmax.f32 %v2999, 0.0
        %v3032 = vmax.f32 %v3000, 0.0
        %v3033 = vmax.f32 %v3001, 0.0
        %v3034 = vmax.f32 %v3002, 0.0
        %v3035 = vmax.f32 %v3003, 0.0
        %v3036 = vmax.f32 %v3004, 0.0
        %v3037 = vmax.f32 %v3005, 0.0
        %v3038 = vmax.f32 %v3006, 0.0
        %v3039 = vmax.f32 %v3007, 0.0
        %v3040 = vmax.f32 %v3008, 0.0
        %v3041 = vmax.f32 %v3009, 0.0
        %v3042 = vmax.f32 %v3010, 0.0
        %v3043 = vmax.f32 %v3011, 0.0
        %v3044 = vmax.f32 %v3012, 0.0
        %v3045 = vmax.f32 %v3013, 0.0
        %v3046 = vmax.f32 %v3014, 0.0
        %v3047 = vmax.f32 %v3015, 0.0
        %v3048 = vmax.f32 %v3016, 0.0
        %v3049 = vmax.f32 %v3017, 0.0
        %v3050 = vmax.f32 %v3018, 0.0
        %v3051 = vmax.f32 %v3019, 0.0
        %v3052 = vmax.f32 %v3020, 0.0
        %v3053 = vmax.f32 %v3021, 0.0
        %v3054 = vmax.f32 %v3022, 0.0
        %v3055 = vmax.f32 %v3023, 0.0
        %v3056 = vmax.f32 %v3024, 0.0
        %v3057 = vmax.f32 %v3025, 0.0
        %v3058 = vmax.f32 %v3026, 0.0
        %v3059 = vmax.f32 %v3027, 0.0
        %v3060 = vmax.f32 %v3028, 0.0
        %v3061 = vmax.f32 %v3029, 0.0
        %s3062 = scalar_lea.vmem %s10, 128
        %v3063 = vld [vmem:[%s3062] sm:$0xff]
        %v3064 = vld [vmem:[%s3062 + $0x8] sm:$0xff]
        %v3065 = vld [vmem:[%s3062 + $0x10] sm:$0xff]
        %v3066 = vld [vmem:[%s3062 + $0x18] sm:$0xff]
        %v3067 = vld [vmem:[%s3062 + $0x20] sm:$0xff]
        %v3068 = vld [vmem:[%s3062 + $0x28] sm:$0xff]
        %v3069 = vld [vmem:[%s3062 + $0x30] sm:$0xff]
        %v3070 = vld [vmem:[%s3062 + $0x38] sm:$0xff]
        %v3071 = vld [vmem:[%s3062 + $0x40] sm:$0xff]
        %v3072 = vld [vmem:[%s3062 + $0x48] sm:$0xff]
        %v3073 = vld [vmem:[%s3062 + $0x50] sm:$0xff]
        %v3074 = vld [vmem:[%s3062 + $0x58] sm:$0xff]
        %v3075 = vld [vmem:[%s3062 + $0x60] sm:$0xff]
        %v3076 = vld [vmem:[%s3062 + $0x68] sm:$0xff]
        %v3077 = vld [vmem:[%s3062 + $0x70] sm:$0xff]
        %v3078 = vld [vmem:[%s3062 + $0x78] sm:$0xff]
        %3079 = vmatprep.subr.mxu0 0.0
        %3080 = vmatpush1.msra.mxu0 %v3063
        %3081 = vmatprep.subr.mxu0 0.0
        %3082 = vmatpush1.msra.mxu0 %v3064
        %3083 = vmatprep.subr.mxu0 0.0
        %3084 = vmatpush1.msra.mxu0 %v3065
        %3085 = vmatprep.subr.mxu0 0.0
        %3086 = vmatpush1.msra.mxu0 %v3066
        %3087 = vmatprep.subr.mxu0 0.0
        %3088 = vmatpush1.msra.mxu0 %v3067
        %3089 = vmatprep.subr.mxu0 0.0
        %3090 = vmatpush1.msra.mxu0 %v3068
        %3091 = vmatprep.subr.mxu0 0.0
        %3092 = vmatpush1.msra.mxu0 %v3069
        %3093 = vmatprep.subr.mxu0 0.0
        %3094 = vmatpush1.msra.mxu0 %v3070
        %3095 = vmatprep.subr.mxu0 0.0
        %3096 = vmatpush1.msra.mxu0 %v3071
        %3097 = vmatprep.subr.mxu0 0.0
        %3098 = vmatpush1.msra.mxu0 %v3072
        %3099 = vmatprep.subr.mxu0 0.0
        %3100 = vmatpush1.msra.mxu0 %v3073
        %3101 = vmatprep.subr.mxu0 0.0
        %3102 = vmatpush1.msra.mxu0 %v3074
        %3103 = vmatprep.subr.mxu0 0.0
        %3104 = vmatpush1.msra.mxu0 %v3075
        %3105 = vmatprep.subr.mxu0 0.0
        %3106 = vmatpush1.msra.mxu0 %v3076
        %3107 = vmatprep.subr.mxu0 0.0
        %3108 = vmatpush1.msra.mxu0 %v3077
        %3109 = vmatprep.subr.mxu0 0.0
        %3110 = vmatpush1.msra.mxu0 %v3078
        %3111 = vmatprep.subr.mxu0 0.0
        %3112 = vmatpush1.msra.mxu0 0.0
        %3113 = vmatprep.subr.mxu0 0.0
        %3114 = vmatpush1.msra.mxu0 0.0
        %3115 = vmatprep.subr.mxu0 0.0
        %3116 = vmatpush1.msra.mxu0 0.0
        %3117 = vmatprep.subr.mxu0 0.0
        %3118 = vmatpush1.msra.mxu0 0.0
        %3119 = vmatprep.subr.mxu0 0.0
        %3120 = vmatpush1.msra.mxu0 0.0
        %3121 = vmatprep.subr.mxu0 0.0
        %3122 = vmatpush1.msra.mxu0 0.0
        %3123 = vmatprep.subr.mxu0 0.0
        %3124 = vmatpush1.msra.mxu0 0.0
        %3125 = vmatprep.subr.mxu0 0.0
        %3126 = vmatpush1.msra.mxu0 0.0
        %3127 = vmatprep.subr.mxu0 0.0
        %3128 = vmatpush1.msra.mxu0 0.0
        %3129 = vmatprep.subr.mxu0 0.0
        %3130 = vmatpush1.msra.mxu0 0.0
        %3131 = vmatprep.subr.mxu0 0.0
        %3132 = vmatpush1.msra.mxu0 0.0
        %3133 = vmatprep.subr.mxu0 0.0
        %3134 = vmatpush1.msra.mxu0 0.0
        %3135 = vmatprep.subr.mxu0 0.0
        %3136 = vmatpush1.msra.mxu0 0.0
        %3137 = vmatprep.subr.mxu0 0.0
        %3138 = vmatpush1.msra.mxu0 0.0
        %3139 = vmatprep.subr.mxu0 0.0
        %3140 = vmatpush1.msra.mxu0 0.0
        %3141 = vmatprep.subr.mxu0 0.0
        %3142 = vmatpush1.msra.mxu0 0.0
        %3143 = vmatprep.mubr.f32.mxu0 0.0
        %3144 = vmatmul.mubr.f32.gmra.mrb[0].mxu0 %v3030
        %v3145 = vpop.f32.mrb[0].mxu0
        %v3146 = vadd.f32 0.0, %v3145
        %v3147 = vpop.f32.mrb[0].mxu0
        %3148 = vmatprep.mubr.f32.mxu0 0.0
        %3149 = vmatmul.mubr.f32.gmra.mrb[0].mxu0 %v3031
        %v3150 = vpop.f32.mrb[0].mxu0
        %v3151 = vadd.f32 0.0, %v3150
        %v3152 = vpop.f32.mrb[0].mxu0
        %3153 = vmatprep.mubr.f32.mxu0 0.0
        %3154 = vmatmul.mubr.f32.gmra.mrb[0].mxu0 %v3032
        %v3155 = vpop.f32.mrb[0].mxu0
        %v3156 = vadd.f32 0.0, %v3155
        %v3157 = vpop.f32.mrb[0].mxu0
        %3158 = vmatprep.mubr.f32.mxu0 0.0
        %3159 = vmatmul.mubr.f32.gmra.mrb[0].mxu0 %v3033
        %v3160 = vpop.f32.mrb[0].mxu0
        %v3161 = vadd.f32 0.0, %v3160
        %v3162 = vpop.f32.mrb[0].mxu0
        %3163 = vmatprep.mubr.f32.mxu0 0.0
        %3164 = vmatmul.mubr.f32.gmra.mrb[0].mxu0 %v3034
        %v3165 = vpop.f32.mrb[0].mxu0
        %v3166 = vadd.f32 0.0, %v3165
        %v3167 = vpop.f32.mrb[0].mxu0
        %3168 = vmatprep.mubr.f32.mxu0 0.0
        %3169 = vmatmul.mubr.f32.gmra.mrb[0].mxu0 %v3035
        %v3170 = vpop.f32.mrb[0].mxu0
        %v3171 = vadd.f32 0.0, %v3170
        %v3172 = vpop.f32.mrb[0].mxu0
        %3173 = vmatprep.mubr.f32.mxu0 0.0
        %3174 = vmatmul.mubr.f32.gmra.mrb[0].mxu0 %v3036
        %v3175 = vpop.f32.mrb[0].mxu0
        %v3176 = vadd.f32 0.0, %v3175
        %v3177 = vpop.f32.mrb[0].mxu0
        %3178 = vmatprep.mubr.f32.mxu0 0.0
        %3179 = vmatmul.mubr.f32.gmra.mrb[0].mxu0 %v3037
        %v3180 = vpop.f32.mrb[0].mxu0
        %v3181 = vadd.f32 0.0, %v3180
        %v3182 = vpop.f32.mrb[0].mxu0
        %3183 = vmatprep.mubr.f32.mxu0 0.0
        %3184 = vmatmul.mubr.f32.gmra.mrb[0].mxu0 %v3038
        %v3185 = vpop.f32.mrb[0].mxu0
        %v3186 = vadd.f32 0.0, %v3185
        %v3187 = vpop.f32.mrb[0].mxu0
        %3188 = vmatprep.mubr.f32.mxu0 0.0
        %3189 = vmatmul.mubr.f32.gmra.mrb[0].mxu0 %v3039
        %v3190 = vpop.f32.mrb[0].mxu0
        %v3191 = vadd.f32 0.0, %v3190
        %v3192 = vpop.f32.mrb[0].mxu0
        %3193 = vmatprep.mubr.f32.mxu0 0.0
        %3194 = vmatmul.mubr.f32.gmra.mrb[0].mxu0 %v3040
        %v3195 = vpop.f32.mrb[0].mxu0
        %v3196 = vadd.f32 0.0, %v3195
        %v3197 = vpop.f32.mrb[0].mxu0
        %3198 = vmatprep.mubr.f32.mxu0 0.0
        %3199 = vmatmul.mubr.f32.gmra.mrb[0].mxu0 %v3041
        %v3200 = vpop.f32.mrb[0].mxu0
        %v3201 = vadd.f32 0.0, %v3200
        %v3202 = vpop.f32.mrb[0].mxu0
        %3203 = vmatprep.mubr.f32.mxu0 0.0
        %3204 = vmatmul.mubr.f32.gmra.mrb[0].mxu0 %v3042
        %v3205 = vpop.f32.mrb[0].mxu0
        %v3206 = vadd.f32 0.0, %v3205
        %v3207 = vpop.f32.mrb[0].mxu0
        %3208 = vmatprep.mubr.f32.mxu0 0.0
        %3209 = vmatmul.mubr.f32.gmra.mrb[0].mxu0 %v3043
        %v3210 = vpop.f32.mrb[0].mxu0
        %v3211 = vadd.f32 0.0, %v3210
        %v3212 = vpop.f32.mrb[0].mxu0
        %3213 = vmatprep.mubr.f32.mxu0 0.0
        %3214 = vmatmul.mubr.f32.gmra.mrb[0].mxu0 %v3044
        %v3215 = vpop.f32.mrb[0].mxu0
        %v3216 = vadd.f32 0.0, %v3215
        %v3217 = vpop.f32.mrb[0].mxu0
        %3218 = vmatprep.mubr.f32.mxu0 0.0
        %3219 = vmatmul.mubr.f32.gmra.mrb[0].mxu0 %v3045
        %v3220 = vpop.f32.mrb[0].mxu0
        %v3221 = vadd.f32 0.0, %v3220
        %v3222 = vpop.f32.mrb[0].mxu0
        %3223 = vmatprep.mubr.f32.mxu0 0.0
        %3224 = vmatmul.mubr.f32.gmra.mrb[0].mxu0 %v3046
        %v3225 = vpop.f32.mrb[0].mxu0
        %v3226 = vadd.f32 0.0, %v3225
        %v3227 = vpop.f32.mrb[0].mxu0
        %3228 = vmatprep.mubr.f32.mxu0 0.0
        %3229 = vmatmul.mubr.f32.gmra.mrb[0].mxu0 %v3047
        %v3230 = vpop.f32.mrb[0].mxu0
        %v3231 = vadd.f32 0.0, %v3230
        %v3232 = vpop.f32.mrb[0].mxu0
        %3233 = vmatprep.mubr.f32.mxu0 0.0
        %3234 = vmatmul.mubr.f32.gmra.mrb[0].mxu0 %v3048
        %v3235 = vpop.f32.mrb[0].mxu0
        %v3236 = vadd.f32 0.0, %v3235
        %v3237 = vpop.f32.mrb[0].mxu0
        %3238 = vmatprep.mubr.f32.mxu0 0.0
        %3239 = vmatmul.mubr.f32.gmra.mrb[0].mxu0 %v3049
        %v3240 = vpop.f32.mrb[0].mxu0
        %v3241 = vadd.f32 0.0, %v3240
        %v3242 = vpop.f32.mrb[0].mxu0
        %3243 = vmatprep.mubr.f32.mxu0 0.0
        %3244 = vmatmul.mubr.f32.gmra.mrb[0].mxu0 %v3050
        %v3245 = vpop.f32.mrb[0].mxu0
        %v3246 = vadd.f32 0.0, %v3245
        %v3247 = vpop.f32.mrb[0].mxu0
        %3248 = vmatprep.mubr.f32.mxu0 0.0
        %3249 = vmatmul.mubr.f32.gmra.mrb[0].mxu0 %v3051
        %v3250 = vpop.f32.mrb[0].mxu0
        %v3251 = vadd.f32 0.0, %v3250
        %v3252 = vpop.f32.mrb[0].mxu0
        %3253 = vmatprep.mubr.f32.mxu0 0.0
        %3254 = vmatmul.mubr.f32.gmra.mrb[0].mxu0 %v3052
        %v3255 = vpop.f32.mrb[0].mxu0
        %v3256 = vadd.f32 0.0, %v3255
        %v3257 = vpop.f32.mrb[0].mxu0
        %3258 = vmatprep.mubr.f32.mxu0 0.0
        %3259 = vmatmul.mubr.f32.gmra.mrb[0].mxu0 %v3053
        %v3260 = vpop.f32.mrb[0].mxu0
        %v3261 = vadd.f32 0.0, %v3260
        %v3262 = vpop.f32.mrb[0].mxu0
        %3263 = vmatprep.mubr.f32.mxu0 0.0
        %3264 = vmatmul.mubr.f32.gmra.mrb[0].mxu0 %v3054
        %v3265 = vpop.f32.mrb[0].mxu0
        %v3266 = vadd.f32 0.0, %v3265
        %v3267 = vpop.f32.mrb[0].mxu0
        %3268 = vmatprep.mubr.f32.mxu0 0.0
        %3269 = vmatmul.mubr.f32.gmra.mrb[0].mxu0 %v3055
        %v3270 = vpop.f32.mrb[0].mxu0
        %v3271 = vadd.f32 0.0, %v3270
        %v3272 = vpop.f32.mrb[0].mxu0
        %3273 = vmatprep.mubr.f32.mxu0 0.0
        %3274 = vmatmul.mubr.f32.gmra.mrb[0].mxu0 %v3056
        %v3275 = vpop.f32.mrb[0].mxu0
        %v3276 = vadd.f32 0.0, %v3275
        %v3277 = vpop.f32.mrb[0].mxu0
        %3278 = vmatprep.mubr.f32.mxu0 0.0
        %3279 = vmatmul.mubr.f32.gmra.mrb[0].mxu0 %v3057
        %v3280 = vpop.f32.mrb[0].mxu0
        %v3281 = vadd.f32 0.0, %v3280
        %v3282 = vpop.f32.mrb[0].mxu0
        %3283 = vmatprep.mubr.f32.mxu0 0.0
        %3284 = vmatmul.mubr.f32.gmra.mrb[0].mxu0 %v3058
        %v3285 = vpop.f32.mrb[0].mxu0
        %v3286 = vadd.f32 0.0, %v3285
        %v3287 = vpop.f32.mrb[0].mxu0
        %3288 = vmatprep.mubr.f32.mxu0 0.0
        %3289 = vmatmul.mubr.f32.gmra.mrb[0].mxu0 %v3059
        %v3290 = vpop.f32.mrb[0].mxu0
        %v3291 = vadd.f32 0.0, %v3290
        %v3292 = vpop.f32.mrb[0].mxu0
        %3293 = vmatprep.mubr.f32.mxu0 0.0
        %3294 = vmatmul.mubr.f32.gmra.mrb[0].mxu0 %v3060
        %v3295 = vpop.f32.mrb[0].mxu0
        %v3296 = vadd.f32 0.0, %v3295
        %v3297 = vpop.f32.mrb[0].mxu0
        %3298 = vmatprep.mubr.f32.mxu0 0.0
        %3299 = vmatmul.mubr.f32.gmra.mrb[0].mxu0 %v3061
        %v3300 = vpop.f32.mrb[0].mxu0
        %v3301 = vadd.f32 0.0, %v3300
        %v3302 = vpop.f32.mrb[0].mxu0
        %3303 = vdwg.mxu0
        %v3305 = vlaneseq
        %v3306 = vshrl.u32 %v3305, 7
        %v3307 = vsub.s32 0, %v3306
        %v3308 = vrot.slane %v1408, %v3307
        %v3310 = vmul.f32 %v3146, %v3308
        %v3311 = vmul.f32 %v3151, %v3308
        %v3312 = vmul.f32 %v3156, %v3308
        %v3313 = vmul.f32 %v3161, %v3308
        %v3314 = vmul.f32 %v3166, %v3308
        %v3315 = vmul.f32 %v3171, %v3308
        %v3316 = vmul.f32 %v3176, %v3308
        %v3317 = vmul.f32 %v3181, %v3308
        %v3318 = vmul.f32 %v3186, %v3308
        %v3319 = vmul.f32 %v3191, %v3308
        %v3320 = vmul.f32 %v3196, %v3308
        %v3321 = vmul.f32 %v3201, %v3308
        %v3322 = vmul.f32 %v3206, %v3308
        %v3323 = vmul.f32 %v3211, %v3308
        %v3324 = vmul.f32 %v3216, %v3308
        %v3325 = vmul.f32 %v3221, %v3308
        %v3326 = vmul.f32 %v3226, %v3308
        %v3327 = vmul.f32 %v3231, %v3308
        %v3328 = vmul.f32 %v3236, %v3308
        %v3329 = vmul.f32 %v3241, %v3308
        %v3330 = vmul.f32 %v3246, %v3308
        %v3331 = vmul.f32 %v3251, %v3308
        %v3332 = vmul.f32 %v3256, %v3308
        %v3333 = vmul.f32 %v3261, %v3308
        %v3334 = vmul.f32 %v3266, %v3308
        %v3335 = vmul.f32 %v3271, %v3308
        %v3336 = vmul.f32 %v3276, %v3308
        %v3337 = vmul.f32 %v3281, %v3308
        %v3338 = vmul.f32 %v3286, %v3308
        %v3339 = vmul.f32 %v3291, %v3308
        %v3340 = vmul.f32 %v3296, %v3308
        %v3341 = vmul.f32 %v3301, %v3308
        %v3343 = vlaneseq
        %v3344 = vshrl.u32 %v3343, 7
        %v3345 = vsub.s32 0, %v3344
        %v3346 = vrot.slane %v1411, %v3345
        %v3348 = vadd.f32 %v3310, %v3346
        %v3349 = vadd.f32 %v3311, %v3346
        %v3350 = vadd.f32 %v3312, %v3346
        %v3351 = vadd.f32 %v3313, %v3346
        %v3352 = vadd.f32 %v3314, %v3346
        %v3353 = vadd.f32 %v3315, %v3346
        %v3354 = vadd.f32 %v3316, %v3346
        %v3355 = vadd.f32 %v3317, %v3346
        %v3356 = vadd.f32 %v3318, %v3346
        %v3357 = vadd.f32 %v3319, %v3346
        %v3358 = vadd.f32 %v3320, %v3346
        %v3359 = vadd.f32 %v3321, %v3346
        %v3360 = vadd.f32 %v3322, %v3346
        %v3361 = vadd.f32 %v3323, %v3346
        %v3362 = vadd.f32 %v3324, %v3346
        %v3363 = vadd.f32 %v3325, %v3346
        %v3364 = vadd.f32 %v3326, %v3346
        %v3365 = vadd.f32 %v3327, %v3346
        %v3366 = vadd.f32 %v3328, %v3346
        %v3367 = vadd.f32 %v3329, %v3346
        %v3368 = vadd.f32 %v3330, %v3346
        %v3369 = vadd.f32 %v3331, %v3346
        %v3370 = vadd.f32 %v3332, %v3346
        %v3371 = vadd.f32 %v3333, %v3346
        %v3372 = vadd.f32 %v3334, %v3346
        %v3373 = vadd.f32 %v3335, %v3346
        %v3374 = vadd.f32 %v3336, %v3346
        %v3375 = vadd.f32 %v3337, %v3346
        %v3376 = vadd.f32 %v3338, %v3346
        %v3377 = vadd.f32 %v3339, %v3346
        %v3378 = vadd.f32 %v3340, %v3346
        %v3379 = vadd.f32 %v3341, %v3346
        %v3380 = vmax.f32 %v3348, 0.0
        %v3381 = vmax.f32 %v3349, 0.0
        %v3382 = vmax.f32 %v3350, 0.0
        %v3383 = vmax.f32 %v3351, 0.0
        %v3384 = vmax.f32 %v3352, 0.0
        %v3385 = vmax.f32 %v3353, 0.0
        %v3386 = vmax.f32 %v3354, 0.0
        %v3387 = vmax.f32 %v3355, 0.0
        %v3388 = vmax.f32 %v3356, 0.0
        %v3389 = vmax.f32 %v3357, 0.0
        %v3390 = vmax.f32 %v3358, 0.0
        %v3391 = vmax.f32 %v3359, 0.0
        %v3392 = vmax.f32 %v3360, 0.0
        %v3393 = vmax.f32 %v3361, 0.0
        %v3394 = vmax.f32 %v3362, 0.0
        %v3395 = vmax.f32 %v3363, 0.0
        %v3396 = vmax.f32 %v3364, 0.0
        %v3397 = vmax.f32 %v3365, 0.0
        %v3398 = vmax.f32 %v3366, 0.0
        %v3399 = vmax.f32 %v3367, 0.0
        %v3400 = vmax.f32 %v3368, 0.0
        %v3401 = vmax.f32 %v3369, 0.0
        %v3402 = vmax.f32 %v3370, 0.0
        %v3403 = vmax.f32 %v3371, 0.0
        %v3404 = vmax.f32 %v3372, 0.0
        %v3405 = vmax.f32 %v3373, 0.0
        %v3406 = vmax.f32 %v3374, 0.0
        %v3407 = vmax.f32 %v3375, 0.0
        %v3408 = vmax.f32 %v3376, 0.0
        %v3409 = vmax.f32 %v3377, 0.0
        %v3410 = vmax.f32 %v3378, 0.0
        %v3411 = vmax.f32 %v3379, 0.0
        %s3412 = scalar_lea.vmem %s13, 384
        %v3413 = vld [vmem:[%s3412] sm:$0xff]
        %v3414 = vld [vmem:[%s3412 + $0x8] sm:$0xff]
        %v3415 = vld [vmem:[%s3412 + $0x10] sm:$0xff]
        %v3416 = vld [vmem:[%s3412 + $0x18] sm:$0xff]
        %v3417 = vld [vmem:[%s3412 + $0x20] sm:$0xff]
        %v3418 = vld [vmem:[%s3412 + $0x28] sm:$0xff]
        %v3419 = vld [vmem:[%s3412 + $0x30] sm:$0xff]
        %v3420 = vld [vmem:[%s3412 + $0x38] sm:$0xff]
        %v3421 = vld [vmem:[%s3412 + $0x40] sm:$0xff]
        %v3422 = vld [vmem:[%s3412 + $0x48] sm:$0xff]
        %v3423 = vld [vmem:[%s3412 + $0x50] sm:$0xff]
        %v3424 = vld [vmem:[%s3412 + $0x58] sm:$0xff]
        %v3425 = vld [vmem:[%s3412 + $0x60] sm:$0xff]
        %v3426 = vld [vmem:[%s3412 + $0x68] sm:$0xff]
        %v3427 = vld [vmem:[%s3412 + $0x70] sm:$0xff]
        %v3428 = vld [vmem:[%s3412 + $0x78] sm:$0xff]
        %3429 = vmatprep.subr.mxu0 0.0
        %3430 = vmatpush1.msra.mxu0 %v3413
        %3431 = vmatprep.subr.mxu0 0.0
        %3432 = vmatpush1.msra.mxu0 %v3414
        %3433 = vmatprep.subr.mxu0 0.0
        %3434 = vmatpush1.msra.mxu0 %v3415
        %3435 = vmatprep.subr.mxu0 0.0
        %3436 = vmatpush1.msra.mxu0 %v3416
        %3437 = vmatprep.subr.mxu0 0.0
        %3438 = vmatpush1.msra.mxu0 %v3417
        %3439 = vmatprep.subr.mxu0 0.0
        %3440 = vmatpush1.msra.mxu0 %v3418
        %3441 = vmatprep.subr.mxu0 0.0
        %3442 = vmatpush1.msra.mxu0 %v3419
        %3443 = vmatprep.subr.mxu0 0.0
        %3444 = vmatpush1.msra.mxu0 %v3420
        %3445 = vmatprep.subr.mxu0 0.0
        %3446 = vmatpush1.msra.mxu0 %v3421
        %3447 = vmatprep.subr.mxu0 0.0
        %3448 = vmatpush1.msra.mxu0 %v3422
        %3449 = vmatprep.subr.mxu0 0.0
        %3450 = vmatpush1.msra.mxu0 %v3423
        %3451 = vmatprep.subr.mxu0 0.0
        %3452 = vmatpush1.msra.mxu0 %v3424
        %3453 = vmatprep.subr.mxu0 0.0
        %3454 = vmatpush1.msra.mxu0 %v3425
        %3455 = vmatprep.subr.mxu0 0.0
        %3456 = vmatpush1.msra.mxu0 %v3426
        %3457 = vmatprep.subr.mxu0 0.0
        %3458 = vmatpush1.msra.mxu0 %v3427
        %3459 = vmatprep.subr.mxu0 0.0
        %3460 = vmatpush1.msra.mxu0 %v3428
        %3461 = vmatprep.subr.mxu0 0.0
        %3462 = vmatpush1.msra.mxu0 0.0
        %3463 = vmatprep.subr.mxu0 0.0
        %3464 = vmatpush1.msra.mxu0 0.0
        %3465 = vmatprep.subr.mxu0 0.0
        %3466 = vmatpush1.msra.mxu0 0.0
        %3467 = vmatprep.subr.mxu0 0.0
        %3468 = vmatpush1.msra.mxu0 0.0
        %3469 = vmatprep.subr.mxu0 0.0
        %3470 = vmatpush1.msra.mxu0 0.0
        %3471 = vmatprep.subr.mxu0 0.0
        %3472 = vmatpush1.msra.mxu0 0.0
        %3473 = vmatprep.subr.mxu0 0.0
        %3474 = vmatpush1.msra.mxu0 0.0
        %3475 = vmatprep.subr.mxu0 0.0
        %3476 = vmatpush1.msra.mxu0 0.0
        %3477 = vmatprep.subr.mxu0 0.0
        %3478 = vmatpush1.msra.mxu0 0.0
        %3479 = vmatprep.subr.mxu0 0.0
        %3480 = vmatpush1.msra.mxu0 0.0
        %3481 = vmatprep.subr.mxu0 0.0
        %3482 = vmatpush1.msra.mxu0 0.0
        %3483 = vmatprep.subr.mxu0 0.0
        %3484 = vmatpush1.msra.mxu0 0.0
        %3485 = vmatprep.subr.mxu0 0.0
        %3486 = vmatpush1.msra.mxu0 0.0
        %3487 = vmatprep.subr.mxu0 0.0
        %3488 = vmatpush1.msra.mxu0 0.0
        %3489 = vmatprep.subr.mxu0 0.0
        %3490 = vmatpush1.msra.mxu0 0.0
        %3491 = vmatprep.subr.mxu0 0.0
        %3492 = vmatpush1.msra.mxu0 0.0
        %3493 = vmatprep.mubr.f32.mxu0 0.0
        %3494 = vmatmul.mubr.f32.gmra.mrb[0].mxu0 %v3380
        %v3495 = vpop.f32.mrb[0].mxu0
        %v3496 = vadd.f32 0.0, %v3495
        %v3497 = vpop.f32.mrb[0].mxu0
        %3498 = vmatprep.mubr.f32.mxu0 0.0
        %3499 = vmatmul.mubr.f32.gmra.mrb[0].mxu0 %v3381
        %v3500 = vpop.f32.mrb[0].mxu0
        %v3501 = vadd.f32 0.0, %v3500
        %v3502 = vpop.f32.mrb[0].mxu0
        %3503 = vmatprep.mubr.f32.mxu0 0.0
        %3504 = vmatmul.mubr.f32.gmra.mrb[0].mxu0 %v3382
        %v3505 = vpop.f32.mrb[0].mxu0
        %v3506 = vadd.f32 0.0, %v3505
        %v3507 = vpop.f32.mrb[0].mxu0
        %3508 = vmatprep.mubr.f32.mxu0 0.0
        %3509 = vmatmul.mubr.f32.gmra.mrb[0].mxu0 %v3383
        %v3510 = vpop.f32.mrb[0].mxu0
        %v3511 = vadd.f32 0.0, %v3510
        %v3512 = vpop.f32.mrb[0].mxu0
        %3513 = vmatprep.mubr.f32.mxu0 0.0
        %3514 = vmatmul.mubr.f32.gmra.mrb[0].mxu0 %v3384
        %v3515 = vpop.f32.mrb[0].mxu0
        %v3516 = vadd.f32 0.0, %v3515
        %v3517 = vpop.f32.mrb[0].mxu0
        %3518 = vmatprep.mubr.f32.mxu0 0.0
        %3519 = vmatmul.mubr.f32.gmra.mrb[0].mxu0 %v3385
        %v3520 = vpop.f32.mrb[0].mxu0
        %v3521 = vadd.f32 0.0, %v3520
        %v3522 = vpop.f32.mrb[0].mxu0
        %3523 = vmatprep.mubr.f32.mxu0 0.0
        %3524 = vmatmul.mubr.f32.gmra.mrb[0].mxu0 %v3386
        %v3525 = vpop.f32.mrb[0].mxu0
        %v3526 = vadd.f32 0.0, %v3525
        %v3527 = vpop.f32.mrb[0].mxu0
        %3528 = vmatprep.mubr.f32.mxu0 0.0
        %3529 = vmatmul.mubr.f32.gmra.mrb[0].mxu0 %v3387
        %v3530 = vpop.f32.mrb[0].mxu0
        %v3531 = vadd.f32 0.0, %v3530
        %v3532 = vpop.f32.mrb[0].mxu0
        %3533 = vmatprep.mubr.f32.mxu0 0.0
        %3534 = vmatmul.mubr.f32.gmra.mrb[0].mxu0 %v3388
        %v3535 = vpop.f32.mrb[0].mxu0
        %v3536 = vadd.f32 0.0, %v3535
        %v3537 = vpop.f32.mrb[0].mxu0
        %3538 = vmatprep.mubr.f32.mxu0 0.0
        %3539 = vmatmul.mubr.f32.gmra.mrb[0].mxu0 %v3389
        %v3540 = vpop.f32.mrb[0].mxu0
        %v3541 = vadd.f32 0.0, %v3540
        %v3542 = vpop.f32.mrb[0].mxu0
        %3543 = vmatprep.mubr.f32.mxu0 0.0
        %3544 = vmatmul.mubr.f32.gmra.mrb[0].mxu0 %v3390
        %v3545 = vpop.f32.mrb[0].mxu0
        %v3546 = vadd.f32 0.0, %v3545
        %v3547 = vpop.f32.mrb[0].mxu0
        %3548 = vmatprep.mubr.f32.mxu0 0.0
        %3549 = vmatmul.mubr.f32.gmra.mrb[0].mxu0 %v3391
        %v3550 = vpop.f32.mrb[0].mxu0
        %v3551 = vadd.f32 0.0, %v3550
        %v3552 = vpop.f32.mrb[0].mxu0
        %3553 = vmatprep.mubr.f32.mxu0 0.0
        %3554 = vmatmul.mubr.f32.gmra.mrb[0].mxu0 %v3392
        %v3555 = vpop.f32.mrb[0].mxu0
        %v3556 = vadd.f32 0.0, %v3555
        %v3557 = vpop.f32.mrb[0].mxu0
        %3558 = vmatprep.mubr.f32.mxu0 0.0
        %3559 = vmatmul.mubr.f32.gmra.mrb[0].mxu0 %v3393
        %v3560 = vpop.f32.mrb[0].mxu0
        %v3561 = vadd.f32 0.0, %v3560
        %v3562 = vpop.f32.mrb[0].mxu0
        %3563 = vmatprep.mubr.f32.mxu0 0.0
        %3564 = vmatmul.mubr.f32.gmra.mrb[0].mxu0 %v3394
        %v3565 = vpop.f32.mrb[0].mxu0
        %v3566 = vadd.f32 0.0, %v3565
        %v3567 = vpop.f32.mrb[0].mxu0
        %3568 = vmatprep.mubr.f32.mxu0 0.0
        %3569 = vmatmul.mubr.f32.gmra.mrb[0].mxu0 %v3395
        %v3570 = vpop.f32.mrb[0].mxu0
        %v3571 = vadd.f32 0.0, %v3570
        %v3572 = vpop.f32.mrb[0].mxu0
        %3573 = vmatprep.mubr.f32.mxu0 0.0
        %3574 = vmatmul.mubr.f32.gmra.mrb[0].mxu0 %v3396
        %v3575 = vpop.f32.mrb[0].mxu0
        %v3576 = vadd.f32 0.0, %v3575
        %v3577 = vpop.f32.mrb[0].mxu0
        %3578 = vmatprep.mubr.f32.mxu0 0.0
        %3579 = vmatmul.mubr.f32.gmra.mrb[0].mxu0 %v3397
        %v3580 = vpop.f32.mrb[0].mxu0
        %v3581 = vadd.f32 0.0, %v3580
        %v3582 = vpop.f32.mrb[0].mxu0
        %3583 = vmatprep.mubr.f32.mxu0 0.0
        %3584 = vmatmul.mubr.f32.gmra.mrb[0].mxu0 %v3398
        %v3585 = vpop.f32.mrb[0].mxu0
        %v3586 = vadd.f32 0.0, %v3585
        %v3587 = vpop.f32.mrb[0].mxu0
        %3588 = vmatprep.mubr.f32.mxu0 0.0
        %3589 = vmatmul.mubr.f32.gmra.mrb[0].mxu0 %v3399
        %v3590 = vpop.f32.mrb[0].mxu0
        %v3591 = vadd.f32 0.0, %v3590
        %v3592 = vpop.f32.mrb[0].mxu0
        %3593 = vmatprep.mubr.f32.mxu0 0.0
        %3594 = vmatmul.mubr.f32.gmra.mrb[0].mxu0 %v3400
        %v3595 = vpop.f32.mrb[0].mxu0
        %v3596 = vadd.f32 0.0, %v3595
        %v3597 = vpop.f32.mrb[0].mxu0
        %3598 = vmatprep.mubr.f32.mxu0 0.0
        %3599 = vmatmul.mubr.f32.gmra.mrb[0].mxu0 %v3401
        %v3600 = vpop.f32.mrb[0].mxu0
        %v3601 = vadd.f32 0.0, %v3600
        %v3602 = vpop.f32.mrb[0].mxu0
        %3603 = vmatprep.mubr.f32.mxu0 0.0
        %3604 = vmatmul.mubr.f32.gmra.mrb[0].mxu0 %v3402
        %v3605 = vpop.f32.mrb[0].mxu0
        %v3606 = vadd.f32 0.0, %v3605
        %v3607 = vpop.f32.mrb[0].mxu0
        %3608 = vmatprep.mubr.f32.mxu0 0.0
        %3609 = vmatmul.mubr.f32.gmra.mrb[0].mxu0 %v3403
        %v3610 = vpop.f32.mrb[0].mxu0
        %v3611 = vadd.f32 0.0, %v3610
        %v3612 = vpop.f32.mrb[0].mxu0
        %3613 = vmatprep.mubr.f32.mxu0 0.0
        %3614 = vmatmul.mubr.f32.gmra.mrb[0].mxu0 %v3404
        %v3615 = vpop.f32.mrb[0].mxu0
        %v3616 = vadd.f32 0.0, %v3615
        %v3617 = vpop.f32.mrb[0].mxu0
        %3618 = vmatprep.mubr.f32.mxu0 0.0
        %3619 = vmatmul.mubr.f32.gmra.mrb[0].mxu0 %v3405
        %v3620 = vpop.f32.mrb[0].mxu0
        %v3621 = vadd.f32 0.0, %v3620
        %v3622 = vpop.f32.mrb[0].mxu0
        %3623 = vmatprep.mubr.f32.mxu0 0.0
        %3624 = vmatmul.mubr.f32.gmra.mrb[0].mxu0 %v3406
        %v3625 = vpop.f32.mrb[0].mxu0
        %v3626 = vadd.f32 0.0, %v3625
        %v3627 = vpop.f32.mrb[0].mxu0
        %3628 = vmatprep.mubr.f32.mxu0 0.0
        %3629 = vmatmul.mubr.f32.gmra.mrb[0].mxu0 %v3407
        %v3630 = vpop.f32.mrb[0].mxu0
        %v3631 = vadd.f32 0.0, %v3630
        %v3632 = vpop.f32.mrb[0].mxu0
        %3633 = vmatprep.mubr.f32.mxu0 0.0
        %3634 = vmatmul.mubr.f32.gmra.mrb[0].mxu0 %v3408
        %v3635 = vpop.f32.mrb[0].mxu0
        %v3636 = vadd.f32 0.0, %v3635
        %v3637 = vpop.f32.mrb[0].mxu0
        %3638 = vmatprep.mubr.f32.mxu0 0.0
        %3639 = vmatmul.mubr.f32.gmra.mrb[0].mxu0 %v3409
        %v3640 = vpop.f32.mrb[0].mxu0
        %v3641 = vadd.f32 0.0, %v3640
        %v3642 = vpop.f32.mrb[0].mxu0
        %3643 = vmatprep.mubr.f32.mxu0 0.0
        %3644 = vmatmul.mubr.f32.gmra.mrb[0].mxu0 %v3410
        %v3645 = vpop.f32.mrb[0].mxu0
        %v3646 = vadd.f32 0.0, %v3645
        %v3647 = vpop.f32.mrb[0].mxu0
        %3648 = vmatprep.mubr.f32.mxu0 0.0
        %3649 = vmatmul.mubr.f32.gmra.mrb[0].mxu0 %v3411
        %v3650 = vpop.f32.mrb[0].mxu0
        %v3651 = vadd.f32 0.0, %v3650
        %v3652 = vpop.f32.mrb[0].mxu0
        %3653 = vdwg.mxu0
        %v3654 = vadd.f32 %v2694, %v3496
        %v3655 = vadd.f32 %v2695, %v3501
        %v3656 = vadd.f32 %v2696, %v3506
        %v3657 = vadd.f32 %v2697, %v3511
        %v3658 = vadd.f32 %v2698, %v3516
        %v3659 = vadd.f32 %v2699, %v3521
        %v3660 = vadd.f32 %v2700, %v3526
        %v3661 = vadd.f32 %v2701, %v3531
        %v3662 = vadd.f32 %v2702, %v3536
        %v3663 = vadd.f32 %v2703, %v3541
        %v3664 = vadd.f32 %v2704, %v3546
        %v3665 = vadd.f32 %v2705, %v3551
        %v3666 = vadd.f32 %v2706, %v3556
        %v3667 = vadd.f32 %v2707, %v3561
        %v3668 = vadd.f32 %v2708, %v3566
        %v3669 = vadd.f32 %v2709, %v3571
        %v3670 = vadd.f32 %v2710, %v3576
        %v3671 = vadd.f32 %v2711, %v3581
        %v3672 = vadd.f32 %v2712, %v3586
        %v3673 = vadd.f32 %v2713, %v3591
        %v3674 = vadd.f32 %v2714, %v3596
        %v3675 = vadd.f32 %v2715, %v3601
        %v3676 = vadd.f32 %v2716, %v3606
        %v3677 = vadd.f32 %v2717, %v3611
        %v3678 = vadd.f32 %v2718, %v3616
        %v3679 = vadd.f32 %v2719, %v3621
        %v3680 = vadd.f32 %v2720, %v3626
        %v3681 = vadd.f32 %v2721, %v3631
        %v3682 = vadd.f32 %v2722, %v3636
        %v3683 = vadd.f32 %v2723, %v3641
        %v3684 = vadd.f32 %v2724, %v3646
        %v3685 = vadd.f32 %v2725, %v3651
        %3686 = vst [vmem:[#allocation2] sm:$0xff] 0.0
        %3687 = vst [vmem:[#allocation2 + $0x8] sm:$0xff] 0.0
        %3688 = vst [vmem:[#allocation2 + $0x10] sm:$0xff] 0.0
        %3689 = vst [vmem:[#allocation2 + $0x18] sm:$0xff] 0.0
        %3690 = vst [vmem:[#allocation2 + $0x20] sm:$0xff] 0.0
        %3691 = vst [vmem:[#allocation2 + $0x28] sm:$0xff] 0.0
        %3692 = vst [vmem:[#allocation2 + $0x30] sm:$0xff] 0.0
        %3693 = vst [vmem:[#allocation2 + $0x38] sm:$0xff] 0.0
        %3694 = vst [vmem:[#allocation2 + $0x40] sm:$0xff] 0.0
        %3695 = vst [vmem:[#allocation2 + $0x48] sm:$0xff] 0.0
        %3696 = vst [vmem:[#allocation2 + $0x50] sm:$0xff] 0.0
        %3697 = vst [vmem:[#allocation2 + $0x58] sm:$0xff] 0.0
        %3698 = vst [vmem:[#allocation2 + $0x60] sm:$0xff] 0.0
        %3699 = vst [vmem:[#allocation2 + $0x68] sm:$0xff] 0.0
        %3700 = vst [vmem:[#allocation2 + $0x70] sm:$0xff] 0.0
        %3701 = vst [vmem:[#allocation2 + $0x78] sm:$0xff] 0.0
        %3702 = vst [vmem:[#allocation2 + $0x80] sm:$0xff] 0.0
        %3703 = vst [vmem:[#allocation2 + $0x88] sm:$0xff] 0.0
        %3704 = vst [vmem:[#allocation2 + $0x90] sm:$0xff] 0.0
        %3705 = vst [vmem:[#allocation2 + $0x98] sm:$0xff] 0.0
        %3706 = vst [vmem:[#allocation2 + $0xa0] sm:$0xff] 0.0
        %3707 = vst [vmem:[#allocation2 + $0xa8] sm:$0xff] 0.0
        %3708 = vst [vmem:[#allocation2 + $0xb0] sm:$0xff] 0.0
        %3709 = vst [vmem:[#allocation2 + $0xb8] sm:$0xff] 0.0
        %3710 = vst [vmem:[#allocation2 + $0xc0] sm:$0xff] 0.0
        %3711 = vst [vmem:[#allocation2 + $0xc8] sm:$0xff] 0.0
        %3712 = vst [vmem:[#allocation2 + $0xd0] sm:$0xff] 0.0
        %3713 = vst [vmem:[#allocation2 + $0xd8] sm:$0xff] 0.0
        %3714 = vst [vmem:[#allocation2 + $0xe0] sm:$0xff] 0.0
        %3715 = vst [vmem:[#allocation2 + $0xe8] sm:$0xff] 0.0
        %3716 = vst [vmem:[#allocation2 + $0xf0] sm:$0xff] 0.0
        %3717 = vst [vmem:[#allocation2 + $0xf8] sm:$0xff] 0.0
        %v3718 = vld [vmem:[#allocation2] sm:$0xff]
        %v3719 = vld [vmem:[#allocation2 + $0x8] sm:$0xff]
        %v3720 = vld [vmem:[#allocation2 + $0x10] sm:$0xff]
        %v3721 = vld [vmem:[#allocation2 + $0x18] sm:$0xff]
        %v3722 = vld [vmem:[#allocation2 + $0x20] sm:$0xff]
        %v3723 = vld [vmem:[#allocation2 + $0x28] sm:$0xff]
        %v3724 = vld [vmem:[#allocation2 + $0x30] sm:$0xff]
        %v3725 = vld [vmem:[#allocation2 + $0x38] sm:$0xff]
        %v3726 = vld [vmem:[#allocation2 + $0x40] sm:$0xff]
        %v3727 = vld [vmem:[#allocation2 + $0x48] sm:$0xff]
        %v3728 = vld [vmem:[#allocation2 + $0x50] sm:$0xff]
        %v3729 = vld [vmem:[#allocation2 + $0x58] sm:$0xff]
        %v3730 = vld [vmem:[#allocation2 + $0x60] sm:$0xff]
        %v3731 = vld [vmem:[#allocation2 + $0x68] sm:$0xff]
        %v3732 = vld [vmem:[#allocation2 + $0x70] sm:$0xff]
        %v3733 = vld [vmem:[#allocation2 + $0x78] sm:$0xff]
        %v3734 = vld [vmem:[#allocation2 + $0x80] sm:$0xff]
        %v3735 = vld [vmem:[#allocation2 + $0x88] sm:$0xff]
        %v3736 = vld [vmem:[#allocation2 + $0x90] sm:$0xff]
        %v3737 = vld [vmem:[#allocation2 + $0x98] sm:$0xff]
        %v3738 = vld [vmem:[#allocation2 + $0xa0] sm:$0xff]
        %v3739 = vld [vmem:[#allocation2 + $0xa8] sm:$0xff]
        %v3740 = vld [vmem:[#allocation2 + $0xb0] sm:$0xff]
        %v3741 = vld [vmem:[#allocation2 + $0xb8] sm:$0xff]
        %v3742 = vld [vmem:[#allocation2 + $0xc0] sm:$0xff]
        %v3743 = vld [vmem:[#allocation2 + $0xc8] sm:$0xff]
        %v3744 = vld [vmem:[#allocation2 + $0xd0] sm:$0xff]
        %v3745 = vld [vmem:[#allocation2 + $0xd8] sm:$0xff]
        %v3746 = vld [vmem:[#allocation2 + $0xe0] sm:$0xff]
        %v3747 = vld [vmem:[#allocation2 + $0xe8] sm:$0xff]
        %v3748 = vld [vmem:[#allocation2 + $0xf0] sm:$0xff]
        %v3749 = vld [vmem:[#allocation2 + $0xf8] sm:$0xff]
        %v3750 = vld [vmem:[%s519] sm:$0xff]
        %v3751 = vld [vmem:[%s519 + $0x8] sm:$0xff]
        %v3752 = vld [vmem:[%s519 + $0x10] sm:$0xff]
        %v3753 = vld [vmem:[%s519 + $0x18] sm:$0xff]
        %v3754 = vld [vmem:[%s519 + $0x20] sm:$0xff]
        %v3755 = vld [vmem:[%s519 + $0x28] sm:$0xff]
        %v3756 = vld [vmem:[%s519 + $0x30] sm:$0xff]
        %v3757 = vld [vmem:[%s519 + $0x38] sm:$0xff]
        %v3758 = vld [vmem:[%s519 + $0x40] sm:$0xff]
        %v3759 = vld [vmem:[%s519 + $0x48] sm:$0xff]
        %v3760 = vld [vmem:[%s519 + $0x50] sm:$0xff]
        %v3761 = vld [vmem:[%s519 + $0x58] sm:$0xff]
        %v3762 = vld [vmem:[%s519 + $0x60] sm:$0xff]
        %v3763 = vld [vmem:[%s519 + $0x68] sm:$0xff]
        %v3764 = vld [vmem:[%s519 + $0x70] sm:$0xff]
        %v3765 = vld [vmem:[%s519 + $0x78] sm:$0xff]
        %v3766 = vld [vmem:[%s519 + $0x80] sm:$0xff]
        %v3767 = vld [vmem:[%s519 + $0x88] sm:$0xff]
        %v3768 = vld [vmem:[%s519 + $0x90] sm:$0xff]
        %v3769 = vld [vmem:[%s519 + $0x98] sm:$0xff]
        %v3770 = vld [vmem:[%s519 + $0xa0] sm:$0xff]
        %v3771 = vld [vmem:[%s519 + $0xa8] sm:$0xff]
        %v3772 = vld [vmem:[%s519 + $0xb0] sm:$0xff]
        %v3773 = vld [vmem:[%s519 + $0xb8] sm:$0xff]
        %v3774 = vld [vmem:[%s519 + $0xc0] sm:$0xff]
        %v3775 = vld [vmem:[%s519 + $0xc8] sm:$0xff]
        %v3776 = vld [vmem:[%s519 + $0xd0] sm:$0xff]
        %v3777 = vld [vmem:[%s519 + $0xd8] sm:$0xff]
        %v3778 = vld [vmem:[%s519 + $0xe0] sm:$0xff]
        %v3779 = vld [vmem:[%s519 + $0xe8] sm:$0xff]
        %v3780 = vld [vmem:[%s519 + $0xf0] sm:$0xff]
        %v3781 = vld [vmem:[%s519 + $0xf8] sm:$0xff]
        %v3782 = vlaneseq
        %v3783 = vshrl.u32 %v3782, 7
        %v3784 = vsub.s32 4, %v3783
        %v3785 = vrot.slane %v1400, %v3784
        %v3786 = vmul.f32 %v3750, %v3785
        %v3787 = vmul.f32 %v3751, %v3785
        %v3788 = vmul.f32 %v3752, %v3785
        %v3789 = vmul.f32 %v3753, %v3785
        %v3790 = vmul.f32 %v3754, %v3785
        %v3791 = vmul.f32 %v3755, %v3785
        %v3792 = vmul.f32 %v3756, %v3785
        %v3793 = vmul.f32 %v3757, %v3785
        %v3794 = vmul.f32 %v3758, %v3785
        %v3795 = vmul.f32 %v3759, %v3785
        %v3796 = vmul.f32 %v3760, %v3785
        %v3797 = vmul.f32 %v3761, %v3785
        %v3798 = vmul.f32 %v3762, %v3785
        %v3799 = vmul.f32 %v3763, %v3785
        %v3800 = vmul.f32 %v3764, %v3785
        %v3801 = vmul.f32 %v3765, %v3785
        %v3802 = vmul.f32 %v3766, %v3785
        %v3803 = vmul.f32 %v3767, %v3785
        %v3804 = vmul.f32 %v3768, %v3785
        %v3805 = vmul.f32 %v3769, %v3785
        %v3806 = vmul.f32 %v3770, %v3785
        %v3807 = vmul.f32 %v3771, %v3785
        %v3808 = vmul.f32 %v3772, %v3785
        %v3809 = vmul.f32 %v3773, %v3785
        %v3810 = vmul.f32 %v3774, %v3785
        %v3811 = vmul.f32 %v3775, %v3785
        %v3812 = vmul.f32 %v3776, %v3785
        %v3813 = vmul.f32 %v3777, %v3785
        %v3814 = vmul.f32 %v3778, %v3785
        %v3815 = vmul.f32 %v3779, %v3785
        %v3816 = vmul.f32 %v3780, %v3785
        %v3817 = vmul.f32 %v3781, %v3785
        %v3818 = vadd.f32 %v3718, %v3786
        %v3819 = vadd.f32 %v3719, %v3787
        %v3820 = vadd.f32 %v3720, %v3788
        %v3821 = vadd.f32 %v3721, %v3789
        %v3822 = vadd.f32 %v3722, %v3790
        %v3823 = vadd.f32 %v3723, %v3791
        %v3824 = vadd.f32 %v3724, %v3792
        %v3825 = vadd.f32 %v3725, %v3793
        %v3826 = vadd.f32 %v3726, %v3794
        %v3827 = vadd.f32 %v3727, %v3795
        %v3828 = vadd.f32 %v3728, %v3796
        %v3829 = vadd.f32 %v3729, %v3797
        %v3830 = vadd.f32 %v3730, %v3798
        %v3831 = vadd.f32 %v3731, %v3799
        %v3832 = vadd.f32 %v3732, %v3800
        %v3833 = vadd.f32 %v3733, %v3801
        %v3834 = vadd.f32 %v3734, %v3802
        %v3835 = vadd.f32 %v3735, %v3803
        %v3836 = vadd.f32 %v3736, %v3804
        %v3837 = vadd.f32 %v3737, %v3805
        %v3838 = vadd.f32 %v3738, %v3806
        %v3839 = vadd.f32 %v3739, %v3807
        %v3840 = vadd.f32 %v3740, %v3808
        %v3841 = vadd.f32 %v3741, %v3809
        %v3842 = vadd.f32 %v3742, %v3810
        %v3843 = vadd.f32 %v3743, %v3811
        %v3844 = vadd.f32 %v3744, %v3812
        %v3845 = vadd.f32 %v3745, %v3813
        %v3846 = vadd.f32 %v3746, %v3814
        %v3847 = vadd.f32 %v3747, %v3815
        %v3848 = vadd.f32 %v3748, %v3816
        %v3849 = vadd.f32 %v3749, %v3817
        %3850 = vst [vmem:[#allocation2] sm:$0xff] %v3818
        %3851 = vst [vmem:[#allocation2 + $0x8] sm:$0xff] %v3819
        %3852 = vst [vmem:[#allocation2 + $0x10] sm:$0xff] %v3820
        %3853 = vst [vmem:[#allocation2 + $0x18] sm:$0xff] %v3821
        %3854 = vst [vmem:[#allocation2 + $0x20] sm:$0xff] %v3822
        %3855 = vst [vmem:[#allocation2 + $0x28] sm:$0xff] %v3823
        %3856 = vst [vmem:[#allocation2 + $0x30] sm:$0xff] %v3824
        %3857 = vst [vmem:[#allocation2 + $0x38] sm:$0xff] %v3825
        %3858 = vst [vmem:[#allocation2 + $0x40] sm:$0xff] %v3826
        %3859 = vst [vmem:[#allocation2 + $0x48] sm:$0xff] %v3827
        %3860 = vst [vmem:[#allocation2 + $0x50] sm:$0xff] %v3828
        %3861 = vst [vmem:[#allocation2 + $0x58] sm:$0xff] %v3829
        %3862 = vst [vmem:[#allocation2 + $0x60] sm:$0xff] %v3830
        %3863 = vst [vmem:[#allocation2 + $0x68] sm:$0xff] %v3831
        %3864 = vst [vmem:[#allocation2 + $0x70] sm:$0xff] %v3832
        %3865 = vst [vmem:[#allocation2 + $0x78] sm:$0xff] %v3833
        %3866 = vst [vmem:[#allocation2 + $0x80] sm:$0xff] %v3834
        %3867 = vst [vmem:[#allocation2 + $0x88] sm:$0xff] %v3835
        %3868 = vst [vmem:[#allocation2 + $0x90] sm:$0xff] %v3836
        %3869 = vst [vmem:[#allocation2 + $0x98] sm:$0xff] %v3837
        %3870 = vst [vmem:[#allocation2 + $0xa0] sm:$0xff] %v3838
        %3871 = vst [vmem:[#allocation2 + $0xa8] sm:$0xff] %v3839
        %3872 = vst [vmem:[#allocation2 + $0xb0] sm:$0xff] %v3840
        %3873 = vst [vmem:[#allocation2 + $0xb8] sm:$0xff] %v3841
        %3874 = vst [vmem:[#allocation2 + $0xc0] sm:$0xff] %v3842
        %3875 = vst [vmem:[#allocation2 + $0xc8] sm:$0xff] %v3843
        %3876 = vst [vmem:[#allocation2 + $0xd0] sm:$0xff] %v3844
        %3877 = vst [vmem:[#allocation2 + $0xd8] sm:$0xff] %v3845
        %3878 = vst [vmem:[#allocation2 + $0xe0] sm:$0xff] %v3846
        %3879 = vst [vmem:[#allocation2 + $0xe8] sm:$0xff] %v3847
        %3880 = vst [vmem:[#allocation2 + $0xf0] sm:$0xff] %v3848
        %3881 = vst [vmem:[#allocation2 + $0xf8] sm:$0xff] %v3849
        %v3882 = vld [vmem:[#allocation2] sm:$0xff]
        %v3883 = vld [vmem:[#allocation2 + $0x8] sm:$0xff]
        %v3884 = vld [vmem:[#allocation2 + $0x10] sm:$0xff]
        %v3885 = vld [vmem:[#allocation2 + $0x18] sm:$0xff]
        %v3886 = vld [vmem:[#allocation2 + $0x20] sm:$0xff]
        %v3887 = vld [vmem:[#allocation2 + $0x28] sm:$0xff]
        %v3888 = vld [vmem:[#allocation2 + $0x30] sm:$0xff]
        %v3889 = vld [vmem:[#allocation2 + $0x38] sm:$0xff]
        %v3890 = vld [vmem:[#allocation2 + $0x40] sm:$0xff]
        %v3891 = vld [vmem:[#allocation2 + $0x48] sm:$0xff]
        %v3892 = vld [vmem:[#allocation2 + $0x50] sm:$0xff]
        %v3893 = vld [vmem:[#allocation2 + $0x58] sm:$0xff]
        %v3894 = vld [vmem:[#allocation2 + $0x60] sm:$0xff]
        %v3895 = vld [vmem:[#allocation2 + $0x68] sm:$0xff]
        %v3896 = vld [vmem:[#allocation2 + $0x70] sm:$0xff]
        %v3897 = vld [vmem:[#allocation2 + $0x78] sm:$0xff]
        %v3898 = vld [vmem:[#allocation2 + $0x80] sm:$0xff]
        %v3899 = vld [vmem:[#allocation2 + $0x88] sm:$0xff]
        %v3900 = vld [vmem:[#allocation2 + $0x90] sm:$0xff]
        %v3901 = vld [vmem:[#allocation2 + $0x98] sm:$0xff]
        %v3902 = vld [vmem:[#allocation2 + $0xa0] sm:$0xff]
        %v3903 = vld [vmem:[#allocation2 + $0xa8] sm:$0xff]
        %v3904 = vld [vmem:[#allocation2 + $0xb0] sm:$0xff]
        %v3905 = vld [vmem:[#allocation2 + $0xb8] sm:$0xff]
        %v3906 = vld [vmem:[#allocation2 + $0xc0] sm:$0xff]
        %v3907 = vld [vmem:[#allocation2 + $0xc8] sm:$0xff]
        %v3908 = vld [vmem:[#allocation2 + $0xd0] sm:$0xff]
        %v3909 = vld [vmem:[#allocation2 + $0xd8] sm:$0xff]
        %v3910 = vld [vmem:[#allocation2 + $0xe0] sm:$0xff]
        %v3911 = vld [vmem:[#allocation2 + $0xe8] sm:$0xff]
        %v3912 = vld [vmem:[#allocation2 + $0xf0] sm:$0xff]
        %v3913 = vld [vmem:[#allocation2 + $0xf8] sm:$0xff]
        %v3915 = vlaneseq
        %v3916 = vshrl.u32 %v3915, 7
        %v3917 = vsub.s32 0, %v3916
        %v3918 = vrot.slane %v1403, %v3917
        %v3920 = vmul.f32 %v3882, %v3918
        %v3921 = vmul.f32 %v3883, %v3918
        %v3922 = vmul.f32 %v3884, %v3918
        %v3923 = vmul.f32 %v3885, %v3918
        %v3924 = vmul.f32 %v3886, %v3918
        %v3925 = vmul.f32 %v3887, %v3918
        %v3926 = vmul.f32 %v3888, %v3918
        %v3927 = vmul.f32 %v3889, %v3918
        %v3928 = vmul.f32 %v3890, %v3918
        %v3929 = vmul.f32 %v3891, %v3918
        %v3930 = vmul.f32 %v3892, %v3918
        %v3931 = vmul.f32 %v3893, %v3918
        %v3932 = vmul.f32 %v3894, %v3918
        %v3933 = vmul.f32 %v3895, %v3918
        %v3934 = vmul.f32 %v3896, %v3918
        %v3935 = vmul.f32 %v3897, %v3918
        %v3936 = vmul.f32 %v3898, %v3918
        %v3937 = vmul.f32 %v3899, %v3918
        %v3938 = vmul.f32 %v3900, %v3918
        %v3939 = vmul.f32 %v3901, %v3918
        %v3940 = vmul.f32 %v3902, %v3918
        %v3941 = vmul.f32 %v3903, %v3918
        %v3942 = vmul.f32 %v3904, %v3918
        %v3943 = vmul.f32 %v3905, %v3918
        %v3944 = vmul.f32 %v3906, %v3918
        %v3945 = vmul.f32 %v3907, %v3918
        %v3946 = vmul.f32 %v3908, %v3918
        %v3947 = vmul.f32 %v3909, %v3918
        %v3948 = vmul.f32 %v3910, %v3918
        %v3949 = vmul.f32 %v3911, %v3918
        %v3950 = vmul.f32 %v3912, %v3918
        %v3951 = vmul.f32 %v3913, %v3918
        %v3953 = vlaneseq
        %v3954 = vshrl.u32 %v3953, 7
        %v3955 = vsub.s32 0, %v3954
        %v3956 = vrot.slane %v1406, %v3955
        %v3958 = vadd.f32 %v3920, %v3956
        %v3959 = vadd.f32 %v3921, %v3956
        %v3960 = vadd.f32 %v3922, %v3956
        %v3961 = vadd.f32 %v3923, %v3956
        %v3962 = vadd.f32 %v3924, %v3956
        %v3963 = vadd.f32 %v3925, %v3956
        %v3964 = vadd.f32 %v3926, %v3956
        %v3965 = vadd.f32 %v3927, %v3956
        %v3966 = vadd.f32 %v3928, %v3956
        %v3967 = vadd.f32 %v3929, %v3956
        %v3968 = vadd.f32 %v3930, %v3956
        %v3969 = vadd.f32 %v3931, %v3956
        %v3970 = vadd.f32 %v3932, %v3956
        %v3971 = vadd.f32 %v3933, %v3956
        %v3972 = vadd.f32 %v3934, %v3956
        %v3973 = vadd.f32 %v3935, %v3956
        %v3974 = vadd.f32 %v3936, %v3956
        %v3975 = vadd.f32 %v3937, %v3956
        %v3976 = vadd.f32 %v3938, %v3956
        %v3977 = vadd.f32 %v3939, %v3956
        %v3978 = vadd.f32 %v3940, %v3956
        %v3979 = vadd.f32 %v3941, %v3956
        %v3980 = vadd.f32 %v3942, %v3956
        %v3981 = vadd.f32 %v3943, %v3956
        %v3982 = vadd.f32 %v3944, %v3956
        %v3983 = vadd.f32 %v3945, %v3956
        %v3984 = vadd.f32 %v3946, %v3956
        %v3985 = vadd.f32 %v3947, %v3956
        %v3986 = vadd.f32 %v3948, %v3956
        %v3987 = vadd.f32 %v3949, %v3956
        %v3988 = vadd.f32 %v3950, %v3956
        %v3989 = vadd.f32 %v3951, %v3956
        %v3990 = vmax.f32 %v3958, 0.0
        %v3991 = vmax.f32 %v3959, 0.0
        %v3992 = vmax.f32 %v3960, 0.0
        %v3993 = vmax.f32 %v3961, 0.0
        %v3994 = vmax.f32 %v3962, 0.0
        %v3995 = vmax.f32 %v3963, 0.0
        %v3996 = vmax.f32 %v3964, 0.0
        %v3997 = vmax.f32 %v3965, 0.0
        %v3998 = vmax.f32 %v3966, 0.0
        %v3999 = vmax.f32 %v3967, 0.0
        %v4000 = vmax.f32 %v3968, 0.0
        %v4001 = vmax.f32 %v3969, 0.0
        %v4002 = vmax.f32 %v3970, 0.0
        %v4003 = vmax.f32 %v3971, 0.0
        %v4004 = vmax.f32 %v3972, 0.0
        %v4005 = vmax.f32 %v3973, 0.0
        %v4006 = vmax.f32 %v3974, 0.0
        %v4007 = vmax.f32 %v3975, 0.0
        %v4008 = vmax.f32 %v3976, 0.0
        %v4009 = vmax.f32 %v3977, 0.0
        %v4010 = vmax.f32 %v3978, 0.0
        %v4011 = vmax.f32 %v3979, 0.0
        %v4012 = vmax.f32 %v3980, 0.0
        %v4013 = vmax.f32 %v3981, 0.0
        %v4014 = vmax.f32 %v3982, 0.0
        %v4015 = vmax.f32 %v3983, 0.0
        %v4016 = vmax.f32 %v3984, 0.0
        %v4017 = vmax.f32 %v3985, 0.0
        %v4018 = vmax.f32 %v3986, 0.0
        %v4019 = vmax.f32 %v3987, 0.0
        %v4020 = vmax.f32 %v3988, 0.0
        %v4021 = vmax.f32 %v3989, 0.0
        %s4022 = scalar_lea.vmem %s10, 256
        %v4023 = vld [vmem:[%s4022] sm:$0xff]
        %v4024 = vld [vmem:[%s4022 + $0x8] sm:$0xff]
        %v4025 = vld [vmem:[%s4022 + $0x10] sm:$0xff]
        %v4026 = vld [vmem:[%s4022 + $0x18] sm:$0xff]
        %v4027 = vld [vmem:[%s4022 + $0x20] sm:$0xff]
        %v4028 = vld [vmem:[%s4022 + $0x28] sm:$0xff]
        %v4029 = vld [vmem:[%s4022 + $0x30] sm:$0xff]
        %v4030 = vld [vmem:[%s4022 + $0x38] sm:$0xff]
        %v4031 = vld [vmem:[%s4022 + $0x40] sm:$0xff]
        %v4032 = vld [vmem:[%s4022 + $0x48] sm:$0xff]
        %v4033 = vld [vmem:[%s4022 + $0x50] sm:$0xff]
        %v4034 = vld [vmem:[%s4022 + $0x58] sm:$0xff]
        %v4035 = vld [vmem:[%s4022 + $0x60] sm:$0xff]
        %v4036 = vld [vmem:[%s4022 + $0x68] sm:$0xff]
        %v4037 = vld [vmem:[%s4022 + $0x70] sm:$0xff]
        %v4038 = vld [vmem:[%s4022 + $0x78] sm:$0xff]
        %4039 = vmatprep.subr.mxu0 0.0
        %4040 = vmatpush1.msra.mxu0 %v4023
        %4041 = vmatprep.subr.mxu0 0.0
        %4042 = vmatpush1.msra.mxu0 %v4024
        %4043 = vmatprep.subr.mxu0 0.0
        %4044 = vmatpush1.msra.mxu0 %v4025
        %4045 = vmatprep.subr.mxu0 0.0
        %4046 = vmatpush1.msra.mxu0 %v4026
        %4047 = vmatprep.subr.mxu0 0.0
        %4048 = vmatpush1.msra.mxu0 %v4027
        %4049 = vmatprep.subr.mxu0 0.0
        %4050 = vmatpush1.msra.mxu0 %v4028
        %4051 = vmatprep.subr.mxu0 0.0
        %4052 = vmatpush1.msra.mxu0 %v4029
        %4053 = vmatprep.subr.mxu0 0.0
        %4054 = vmatpush1.msra.mxu0 %v4030
        %4055 = vmatprep.subr.mxu0 0.0
        %4056 = vmatpush1.msra.mxu0 %v4031
        %4057 = vmatprep.subr.mxu0 0.0
        %4058 = vmatpush1.msra.mxu0 %v4032
        %4059 = vmatprep.subr.mxu0 0.0
        %4060 = vmatpush1.msra.mxu0 %v4033
        %4061 = vmatprep.subr.mxu0 0.0
        %4062 = vmatpush1.msra.mxu0 %v4034
        %4063 = vmatprep.subr.mxu0 0.0
        %4064 = vmatpush1.msra.mxu0 %v4035
        %4065 = vmatprep.subr.mxu0 0.0
        %4066 = vmatpush1.msra.mxu0 %v4036
        %4067 = vmatprep.subr.mxu0 0.0
        %4068 = vmatpush1.msra.mxu0 %v4037
        %4069 = vmatprep.subr.mxu0 0.0
        %4070 = vmatpush1.msra.mxu0 %v4038
        %4071 = vmatprep.subr.mxu0 0.0
        %4072 = vmatpush1.msra.mxu0 0.0
        %4073 = vmatprep.subr.mxu0 0.0
        %4074 = vmatpush1.msra.mxu0 0.0
        %4075 = vmatprep.subr.mxu0 0.0
        %4076 = vmatpush1.msra.mxu0 0.0
        %4077 = vmatprep.subr.mxu0 0.0
        %4078 = vmatpush1.msra.mxu0 0.0
        %4079 = vmatprep.subr.mxu0 0.0
        %4080 = vmatpush1.msra.mxu0 0.0
        %4081 = vmatprep.subr.mxu0 0.0
        %4082 = vmatpush1.msra.mxu0 0.0
        %4083 = vmatprep.subr.mxu0 0.0
        %4084 = vmatpush1.msra.mxu0 0.0
        %4085 = vmatprep.subr.mxu0 0.0
        %4086 = vmatpush1.msra.mxu0 0.0
        %4087 = vmatprep.subr.mxu0 0.0
        %4088 = vmatpush1.msra.mxu0 0.0
        %4089 = vmatprep.subr.mxu0 0.0
        %4090 = vmatpush1.msra.mxu0 0.0
        %4091 = vmatprep.subr.mxu0 0.0
        %4092 = vmatpush1.msra.mxu0 0.0
        %4093 = vmatprep.subr.mxu0 0.0
        %4094 = vmatpush1.msra.mxu0 0.0
        %4095 = vmatprep.subr.mxu0 0.0
        %4096 = vmatpush1.msra.mxu0 0.0
        %4097 = vmatprep.subr.mxu0 0.0
        %4098 = vmatpush1.msra.mxu0 0.0
        %4099 = vmatprep.subr.mxu0 0.0
        %4100 = vmatpush1.msra.mxu0 0.0
        %4101 = vmatprep.subr.mxu0 0.0
        %4102 = vmatpush1.msra.mxu0 0.0
        %4103 = vmatprep.mubr.f32.mxu0 0.0
        %4104 = vmatmul.mubr.f32.gmra.mrb[0].mxu0 %v3990
        %v4105 = vpop.f32.mrb[0].mxu0
        %v4106 = vadd.f32 0.0, %v4105
        %v4107 = vpop.f32.mrb[0].mxu0
        %4108 = vmatprep.mubr.f32.mxu0 0.0
        %4109 = vmatmul.mubr.f32.gmra.mrb[0].mxu0 %v3991
        %v4110 = vpop.f32.mrb[0].mxu0
        %v4111 = vadd.f32 0.0, %v4110
        %v4112 = vpop.f32.mrb[0].mxu0
        %4113 = vmatprep.mubr.f32.mxu0 0.0
        %4114 = vmatmul.mubr.f32.gmra.mrb[0].mxu0 %v3992
        %v4115 = vpop.f32.mrb[0].mxu0
        %v4116 = vadd.f32 0.0, %v4115
        %v4117 = vpop.f32.mrb[0].mxu0
        %4118 = vmatprep.mubr.f32.mxu0 0.0
        %4119 = vmatmul.mubr.f32.gmra.mrb[0].mxu0 %v3993
        %v4120 = vpop.f32.mrb[0].mxu0
        %v4121 = vadd.f32 0.0, %v4120
        %v4122 = vpop.f32.mrb[0].mxu0
        %4123 = vmatprep.mubr.f32.mxu0 0.0
        %4124 = vmatmul.mubr.f32.gmra.mrb[0].mxu0 %v3994
        %v4125 = vpop.f32.mrb[0].mxu0
        %v4126 = vadd.f32 0.0, %v4125
        %v4127 = vpop.f32.mrb[0].mxu0
        %4128 = vmatprep.mubr.f32.mxu0 0.0
        %4129 = vmatmul.mubr.f32.gmra.mrb[0].mxu0 %v3995
        %v4130 = vpop.f32.mrb[0].mxu0
        %v4131 = vadd.f32 0.0, %v4130
        %v4132 = vpop.f32.mrb[0].mxu0
        %4133 = vmatprep.mubr.f32.mxu0 0.0
        %4134 = vmatmul.mubr.f32.gmra.mrb[0].mxu0 %v3996
        %v4135 = vpop.f32.mrb[0].mxu0
        %v4136 = vadd.f32 0.0, %v4135
        %v4137 = vpop.f32.mrb[0].mxu0
        %4138 = vmatprep.mubr.f32.mxu0 0.0
        %4139 = vmatmul.mubr.f32.gmra.mrb[0].mxu0 %v3997
        %v4140 = vpop.f32.mrb[0].mxu0
        %v4141 = vadd.f32 0.0, %v4140
        %v4142 = vpop.f32.mrb[0].mxu0
        %4143 = vmatprep.mubr.f32.mxu0 0.0
        %4144 = vmatmul.mubr.f32.gmra.mrb[0].mxu0 %v3998
        %v4145 = vpop.f32.mrb[0].mxu0
        %v4146 = vadd.f32 0.0, %v4145
        %v4147 = vpop.f32.mrb[0].mxu0
        %4148 = vmatprep.mubr.f32.mxu0 0.0
        %4149 = vmatmul.mubr.f32.gmra.mrb[0].mxu0 %v3999
        %v4150 = vpop.f32.mrb[0].mxu0
        %v4151 = vadd.f32 0.0, %v4150
        %v4152 = vpop.f32.mrb[0].mxu0
        %4153 = vmatprep.mubr.f32.mxu0 0.0
        %4154 = vmatmul.mubr.f32.gmra.mrb[0].mxu0 %v4000
        %v4155 = vpop.f32.mrb[0].mxu0
        %v4156 = vadd.f32 0.0, %v4155
        %v4157 = vpop.f32.mrb[0].mxu0
        %4158 = vmatprep.mubr.f32.mxu0 0.0
        %4159 = vmatmul.mubr.f32.gmra.mrb[0].mxu0 %v4001
        %v4160 = vpop.f32.mrb[0].mxu0
        %v4161 = vadd.f32 0.0, %v4160
        %v4162 = vpop.f32.mrb[0].mxu0
        %4163 = vmatprep.mubr.f32.mxu0 0.0
        %4164 = vmatmul.mubr.f32.gmra.mrb[0].mxu0 %v4002
        %v4165 = vpop.f32.mrb[0].mxu0
        %v4166 = vadd.f32 0.0, %v4165
        %v4167 = vpop.f32.mrb[0].mxu0
        %4168 = vmatprep.mubr.f32.mxu0 0.0
        %4169 = vmatmul.mubr.f32.gmra.mrb[0].mxu0 %v4003
        %v4170 = vpop.f32.mrb[0].mxu0
        %v4171 = vadd.f32 0.0, %v4170
        %v4172 = vpop.f32.mrb[0].mxu0
        %4173 = vmatprep.mubr.f32.mxu0 0.0
        %4174 = vmatmul.mubr.f32.gmra.mrb[0].mxu0 %v4004
        %v4175 = vpop.f32.mrb[0].mxu0
        %v4176 = vadd.f32 0.0, %v4175
        %v4177 = vpop.f32.mrb[0].mxu0
        %4178 = vmatprep.mubr.f32.mxu0 0.0
        %4179 = vmatmul.mubr.f32.gmra.mrb[0].mxu0 %v4005
        %v4180 = vpop.f32.mrb[0].mxu0
        %v4181 = vadd.f32 0.0, %v4180
        %v4182 = vpop.f32.mrb[0].mxu0
        %4183 = vmatprep.mubr.f32.mxu0 0.0
        %4184 = vmatmul.mubr.f32.gmra.mrb[0].mxu0 %v4006
        %v4185 = vpop.f32.mrb[0].mxu0
        %v4186 = vadd.f32 0.0, %v4185
        %v4187 = vpop.f32.mrb[0].mxu0
        %4188 = vmatprep.mubr.f32.mxu0 0.0
        %4189 = vmatmul.mubr.f32.gmra.mrb[0].mxu0 %v4007
        %v4190 = vpop.f32.mrb[0].mxu0
        %v4191 = vadd.f32 0.0, %v4190
        %v4192 = vpop.f32.mrb[0].mxu0
        %4193 = vmatprep.mubr.f32.mxu0 0.0
        %4194 = vmatmul.mubr.f32.gmra.mrb[0].mxu0 %v4008
        %v4195 = vpop.f32.mrb[0].mxu0
        %v4196 = vadd.f32 0.0, %v4195
        %v4197 = vpop.f32.mrb[0].mxu0
        %4198 = vmatprep.mubr.f32.mxu0 0.0
        %4199 = vmatmul.mubr.f32.gmra.mrb[0].mxu0 %v4009
        %v4200 = vpop.f32.mrb[0].mxu0
        %v4201 = vadd.f32 0.0, %v4200
        %v4202 = vpop.f32.mrb[0].mxu0
        %4203 = vmatprep.mubr.f32.mxu0 0.0
        %4204 = vmatmul.mubr.f32.gmra.mrb[0].mxu0 %v4010
        %v4205 = vpop.f32.mrb[0].mxu0
        %v4206 = vadd.f32 0.0, %v4205
        %v4207 = vpop.f32.mrb[0].mxu0
        %4208 = vmatprep.mubr.f32.mxu0 0.0
        %4209 = vmatmul.mubr.f32.gmra.mrb[0].mxu0 %v4011
        %v4210 = vpop.f32.mrb[0].mxu0
        %v4211 = vadd.f32 0.0, %v4210
        %v4212 = vpop.f32.mrb[0].mxu0
        %4213 = vmatprep.mubr.f32.mxu0 0.0
        %4214 = vmatmul.mubr.f32.gmra.mrb[0].mxu0 %v4012
        %v4215 = vpop.f32.mrb[0].mxu0
        %v4216 = vadd.f32 0.0, %v4215
        %v4217 = vpop.f32.mrb[0].mxu0
        %4218 = vmatprep.mubr.f32.mxu0 0.0
        %4219 = vmatmul.mubr.f32.gmra.mrb[0].mxu0 %v4013
        %v4220 = vpop.f32.mrb[0].mxu0
        %v4221 = vadd.f32 0.0, %v4220
        %v4222 = vpop.f32.mrb[0].mxu0
        %4223 = vmatprep.mubr.f32.mxu0 0.0
        %4224 = vmatmul.mubr.f32.gmra.mrb[0].mxu0 %v4014
        %v4225 = vpop.f32.mrb[0].mxu0
        %v4226 = vadd.f32 0.0, %v4225
        %v4227 = vpop.f32.mrb[0].mxu0
        %4228 = vmatprep.mubr.f32.mxu0 0.0
        %4229 = vmatmul.mubr.f32.gmra.mrb[0].mxu0 %v4015
        %v4230 = vpop.f32.mrb[0].mxu0
        %v4231 = vadd.f32 0.0, %v4230
        %v4232 = vpop.f32.mrb[0].mxu0
        %4233 = vmatprep.mubr.f32.mxu0 0.0
        %4234 = vmatmul.mubr.f32.gmra.mrb[0].mxu0 %v4016
        %v4235 = vpop.f32.mrb[0].mxu0
        %v4236 = vadd.f32 0.0, %v4235
        %v4237 = vpop.f32.mrb[0].mxu0
        %4238 = vmatprep.mubr.f32.mxu0 0.0
        %4239 = vmatmul.mubr.f32.gmra.mrb[0].mxu0 %v4017
        %v4240 = vpop.f32.mrb[0].mxu0
        %v4241 = vadd.f32 0.0, %v4240
        %v4242 = vpop.f32.mrb[0].mxu0
        %4243 = vmatprep.mubr.f32.mxu0 0.0
        %4244 = vmatmul.mubr.f32.gmra.mrb[0].mxu0 %v4018
        %v4245 = vpop.f32.mrb[0].mxu0
        %v4246 = vadd.f32 0.0, %v4245
        %v4247 = vpop.f32.mrb[0].mxu0
        %4248 = vmatprep.mubr.f32.mxu0 0.0
        %4249 = vmatmul.mubr.f32.gmra.mrb[0].mxu0 %v4019
        %v4250 = vpop.f32.mrb[0].mxu0
        %v4251 = vadd.f32 0.0, %v4250
        %v4252 = vpop.f32.mrb[0].mxu0
        %4253 = vmatprep.mubr.f32.mxu0 0.0
        %4254 = vmatmul.mubr.f32.gmra.mrb[0].mxu0 %v4020
        %v4255 = vpop.f32.mrb[0].mxu0
        %v4256 = vadd.f32 0.0, %v4255
        %v4257 = vpop.f32.mrb[0].mxu0
        %4258 = vmatprep.mubr.f32.mxu0 0.0
        %4259 = vmatmul.mubr.f32.gmra.mrb[0].mxu0 %v4021
        %v4260 = vpop.f32.mrb[0].mxu0
        %v4261 = vadd.f32 0.0, %v4260
        %v4262 = vpop.f32.mrb[0].mxu0
        %4263 = vdwg.mxu0
        %v4265 = vlaneseq
        %v4266 = vshrl.u32 %v4265, 7
        %v4267 = vsub.s32 0, %v4266
        %v4268 = vrot.slane %v1409, %v4267
        %v4270 = vmul.f32 %v4106, %v4268
        %v4271 = vmul.f32 %v4111, %v4268
        %v4272 = vmul.f32 %v4116, %v4268
        %v4273 = vmul.f32 %v4121, %v4268
        %v4274 = vmul.f32 %v4126, %v4268
        %v4275 = vmul.f32 %v4131, %v4268
        %v4276 = vmul.f32 %v4136, %v4268
        %v4277 = vmul.f32 %v4141, %v4268
        %v4278 = vmul.f32 %v4146, %v4268
        %v4279 = vmul.f32 %v4151, %v4268
        %v4280 = vmul.f32 %v4156, %v4268
        %v4281 = vmul.f32 %v4161, %v4268
        %v4282 = vmul.f32 %v4166, %v4268
        %v4283 = vmul.f32 %v4171, %v4268
        %v4284 = vmul.f32 %v4176, %v4268
        %v4285 = vmul.f32 %v4181, %v4268
        %v4286 = vmul.f32 %v4186, %v4268
        %v4287 = vmul.f32 %v4191, %v4268
        %v4288 = vmul.f32 %v4196, %v4268
        %v4289 = vmul.f32 %v4201, %v4268
        %v4290 = vmul.f32 %v4206, %v4268
        %v4291 = vmul.f32 %v4211, %v4268
        %v4292 = vmul.f32 %v4216, %v4268
        %v4293 = vmul.f32 %v4221, %v4268
        %v4294 = vmul.f32 %v4226, %v4268
        %v4295 = vmul.f32 %v4231, %v4268
        %v4296 = vmul.f32 %v4236, %v4268
        %v4297 = vmul.f32 %v4241, %v4268
        %v4298 = vmul.f32 %v4246, %v4268
        %v4299 = vmul.f32 %v4251, %v4268
        %v4300 = vmul.f32 %v4256, %v4268
        %v4301 = vmul.f32 %v4261, %v4268
        %v4303 = vlaneseq
        %v4304 = vshrl.u32 %v4303, 7
        %v4305 = vsub.s32 0, %v4304
        %v4306 = vrot.slane %v1412, %v4305
        %v4308 = vadd.f32 %v4270, %v4306
        %v4309 = vadd.f32 %v4271, %v4306
        %v4310 = vadd.f32 %v4272, %v4306
        %v4311 = vadd.f32 %v4273, %v4306
        %v4312 = vadd.f32 %v4274, %v4306
        %v4313 = vadd.f32 %v4275, %v4306
        %v4314 = vadd.f32 %v4276, %v4306
        %v4315 = vadd.f32 %v4277, %v4306
        %v4316 = vadd.f32 %v4278, %v4306
        %v4317 = vadd.f32 %v4279, %v4306
        %v4318 = vadd.f32 %v4280, %v4306
        %v4319 = vadd.f32 %v4281, %v4306
        %v4320 = vadd.f32 %v4282, %v4306
        %v4321 = vadd.f32 %v4283, %v4306
        %v4322 = vadd.f32 %v4284, %v4306
        %v4323 = vadd.f32 %v4285, %v4306
        %v4324 = vadd.f32 %v4286, %v4306
        %v4325 = vadd.f32 %v4287, %v4306
        %v4326 = vadd.f32 %v4288, %v4306
        %v4327 = vadd.f32 %v4289, %v4306
        %v4328 = vadd.f32 %v4290, %v4306
        %v4329 = vadd.f32 %v4291, %v4306
        %v4330 = vadd.f32 %v4292, %v4306
        %v4331 = vadd.f32 %v4293, %v4306
        %v4332 = vadd.f32 %v4294, %v4306
        %v4333 = vadd.f32 %v4295, %v4306
        %v4334 = vadd.f32 %v4296, %v4306
        %v4335 = vadd.f32 %v4297, %v4306
        %v4336 = vadd.f32 %v4298, %v4306
        %v4337 = vadd.f32 %v4299, %v4306
        %v4338 = vadd.f32 %v4300, %v4306
        %v4339 = vadd.f32 %v4301, %v4306
        %v4340 = vmax.f32 %v4308, 0.0
        %v4341 = vmax.f32 %v4309, 0.0
        %v4342 = vmax.f32 %v4310, 0.0
        %v4343 = vmax.f32 %v4311, 0.0
        %v4344 = vmax.f32 %v4312, 0.0
        %v4345 = vmax.f32 %v4313, 0.0
        %v4346 = vmax.f32 %v4314, 0.0
        %v4347 = vmax.f32 %v4315, 0.0
        %v4348 = vmax.f32 %v4316, 0.0
        %v4349 = vmax.f32 %v4317, 0.0
        %v4350 = vmax.f32 %v4318, 0.0
        %v4351 = vmax.f32 %v4319, 0.0
        %v4352 = vmax.f32 %v4320, 0.0
        %v4353 = vmax.f32 %v4321, 0.0
        %v4354 = vmax.f32 %v4322, 0.0
        %v4355 = vmax.f32 %v4323, 0.0
        %v4356 = vmax.f32 %v4324, 0.0
        %v4357 = vmax.f32 %v4325, 0.0
        %v4358 = vmax.f32 %v4326, 0.0
        %v4359 = vmax.f32 %v4327, 0.0
        %v4360 = vmax.f32 %v4328, 0.0
        %v4361 = vmax.f32 %v4329, 0.0
        %v4362 = vmax.f32 %v4330, 0.0
        %v4363 = vmax.f32 %v4331, 0.0
        %v4364 = vmax.f32 %v4332, 0.0
        %v4365 = vmax.f32 %v4333, 0.0
        %v4366 = vmax.f32 %v4334, 0.0
        %v4367 = vmax.f32 %v4335, 0.0
        %v4368 = vmax.f32 %v4336, 0.0
        %v4369 = vmax.f32 %v4337, 0.0
        %v4370 = vmax.f32 %v4338, 0.0
        %v4371 = vmax.f32 %v4339, 0.0
        %s4372 = scalar_lea.vmem %s13, 512
        %v4373 = vld [vmem:[%s4372] sm:$0xff]
        %v4374 = vld [vmem:[%s4372 + $0x8] sm:$0xff]
        %v4375 = vld [vmem:[%s4372 + $0x10] sm:$0xff]
        %v4376 = vld [vmem:[%s4372 + $0x18] sm:$0xff]
        %v4377 = vld [vmem:[%s4372 + $0x20] sm:$0xff]
        %v4378 = vld [vmem:[%s4372 + $0x28] sm:$0xff]
        %v4379 = vld [vmem:[%s4372 + $0x30] sm:$0xff]
        %v4380 = vld [vmem:[%s4372 + $0x38] sm:$0xff]
        %v4381 = vld [vmem:[%s4372 + $0x40] sm:$0xff]
        %v4382 = vld [vmem:[%s4372 + $0x48] sm:$0xff]
        %v4383 = vld [vmem:[%s4372 + $0x50] sm:$0xff]
        %v4384 = vld [vmem:[%s4372 + $0x58] sm:$0xff]
        %v4385 = vld [vmem:[%s4372 + $0x60] sm:$0xff]
        %v4386 = vld [vmem:[%s4372 + $0x68] sm:$0xff]
        %v4387 = vld [vmem:[%s4372 + $0x70] sm:$0xff]
        %v4388 = vld [vmem:[%s4372 + $0x78] sm:$0xff]
        %4389 = vmatprep.subr.mxu0 0.0
        %4390 = vmatpush1.msra.mxu0 %v4373
        %4391 = vmatprep.subr.mxu0 0.0
        %4392 = vmatpush1.msra.mxu0 %v4374
        %4393 = vmatprep.subr.mxu0 0.0
        %4394 = vmatpush1.msra.mxu0 %v4375
        %4395 = vmatprep.subr.mxu0 0.0
        %4396 = vmatpush1.msra.mxu0 %v4376
        %4397 = vmatprep.subr.mxu0 0.0
        %4398 = vmatpush1.msra.mxu0 %v4377
        %4399 = vmatprep.subr.mxu0 0.0
        %4400 = vmatpush1.msra.mxu0 %v4378
        %4401 = vmatprep.subr.mxu0 0.0
        %4402 = vmatpush1.msra.mxu0 %v4379
        %4403 = vmatprep.subr.mxu0 0.0
        %4404 = vmatpush1.msra.mxu0 %v4380
        %4405 = vmatprep.subr.mxu0 0.0
        %4406 = vmatpush1.msra.mxu0 %v4381
        %4407 = vmatprep.subr.mxu0 0.0
        %4408 = vmatpush1.msra.mxu0 %v4382
        %4409 = vmatprep.subr.mxu0 0.0
        %4410 = vmatpush1.msra.mxu0 %v4383
        %4411 = vmatprep.subr.mxu0 0.0
        %4412 = vmatpush1.msra.mxu0 %v4384
        %4413 = vmatprep.subr.mxu0 0.0
        %4414 = vmatpush1.msra.mxu0 %v4385
        %4415 = vmatprep.subr.mxu0 0.0
        %4416 = vmatpush1.msra.mxu0 %v4386
        %4417 = vmatprep.subr.mxu0 0.0
        %4418 = vmatpush1.msra.mxu0 %v4387
        %4419 = vmatprep.subr.mxu0 0.0
        %4420 = vmatpush1.msra.mxu0 %v4388
        %4421 = vmatprep.subr.mxu0 0.0
        %4422 = vmatpush1.msra.mxu0 0.0
        %4423 = vmatprep.subr.mxu0 0.0
        %4424 = vmatpush1.msra.mxu0 0.0
        %4425 = vmatprep.subr.mxu0 0.0
        %4426 = vmatpush1.msra.mxu0 0.0
        %4427 = vmatprep.subr.mxu0 0.0
        %4428 = vmatpush1.msra.mxu0 0.0
        %4429 = vmatprep.subr.mxu0 0.0
        %4430 = vmatpush1.msra.mxu0 0.0
        %4431 = vmatprep.subr.mxu0 0.0
        %4432 = vmatpush1.msra.mxu0 0.0
        %4433 = vmatprep.subr.mxu0 0.0
        %4434 = vmatpush1.msra.mxu0 0.0
        %4435 = vmatprep.subr.mxu0 0.0
        %4436 = vmatpush1.msra.mxu0 0.0
        %4437 = vmatprep.subr.mxu0 0.0
        %4438 = vmatpush1.msra.mxu0 0.0
        %4439 = vmatprep.subr.mxu0 0.0
        %4440 = vmatpush1.msra.mxu0 0.0
        %4441 = vmatprep.subr.mxu0 0.0
        %4442 = vmatpush1.msra.mxu0 0.0
        %4443 = vmatprep.subr.mxu0 0.0
        %4444 = vmatpush1.msra.mxu0 0.0
        %4445 = vmatprep.subr.mxu0 0.0
        %4446 = vmatpush1.msra.mxu0 0.0
        %4447 = vmatprep.subr.mxu0 0.0
        %4448 = vmatpush1.msra.mxu0 0.0
        %4449 = vmatprep.subr.mxu0 0.0
        %4450 = vmatpush1.msra.mxu0 0.0
        %4451 = vmatprep.subr.mxu0 0.0
        %4452 = vmatpush1.msra.mxu0 0.0
        %4453 = vmatprep.mubr.f32.mxu0 0.0
        %4454 = vmatmul.mubr.f32.gmra.mrb[0].mxu0 %v4340
        %v4455 = vpop.f32.mrb[0].mxu0
        %v4456 = vadd.f32 0.0, %v4455
        %v4457 = vpop.f32.mrb[0].mxu0
        %4458 = vmatprep.mubr.f32.mxu0 0.0
        %4459 = vmatmul.mubr.f32.gmra.mrb[0].mxu0 %v4341
        %v4460 = vpop.f32.mrb[0].mxu0
        %v4461 = vadd.f32 0.0, %v4460
        %v4462 = vpop.f32.mrb[0].mxu0
        %4463 = vmatprep.mubr.f32.mxu0 0.0
        %4464 = vmatmul.mubr.f32.gmra.mrb[0].mxu0 %v4342
        %v4465 = vpop.f32.mrb[0].mxu0
        %v4466 = vadd.f32 0.0, %v4465
        %v4467 = vpop.f32.mrb[0].mxu0
        %4468 = vmatprep.mubr.f32.mxu0 0.0
        %4469 = vmatmul.mubr.f32.gmra.mrb[0].mxu0 %v4343
        %v4470 = vpop.f32.mrb[0].mxu0
        %v4471 = vadd.f32 0.0, %v4470
        %v4472 = vpop.f32.mrb[0].mxu0
        %4473 = vmatprep.mubr.f32.mxu0 0.0
        %4474 = vmatmul.mubr.f32.gmra.mrb[0].mxu0 %v4344
        %v4475 = vpop.f32.mrb[0].mxu0
        %v4476 = vadd.f32 0.0, %v4475
        %v4477 = vpop.f32.mrb[0].mxu0
        %4478 = vmatprep.mubr.f32.mxu0 0.0
        %4479 = vmatmul.mubr.f32.gmra.mrb[0].mxu0 %v4345
        %v4480 = vpop.f32.mrb[0].mxu0
        %v4481 = vadd.f32 0.0, %v4480
        %v4482 = vpop.f32.mrb[0].mxu0
        %4483 = vmatprep.mubr.f32.mxu0 0.0
        %4484 = vmatmul.mubr.f32.gmra.mrb[0].mxu0 %v4346
        %v4485 = vpop.f32.mrb[0].mxu0
        %v4486 = vadd.f32 0.0, %v4485
        %v4487 = vpop.f32.mrb[0].mxu0
        %4488 = vmatprep.mubr.f32.mxu0 0.0
        %4489 = vmatmul.mubr.f32.gmra.mrb[0].mxu0 %v4347
        %v4490 = vpop.f32.mrb[0].mxu0
        %v4491 = vadd.f32 0.0, %v4490
        %v4492 = vpop.f32.mrb[0].mxu0
        %4493 = vmatprep.mubr.f32.mxu0 0.0
        %4494 = vmatmul.mubr.f32.gmra.mrb[0].mxu0 %v4348
        %v4495 = vpop.f32.mrb[0].mxu0
        %v4496 = vadd.f32 0.0, %v4495
        %v4497 = vpop.f32.mrb[0].mxu0
        %4498 = vmatprep.mubr.f32.mxu0 0.0
        %4499 = vmatmul.mubr.f32.gmra.mrb[0].mxu0 %v4349
        %v4500 = vpop.f32.mrb[0].mxu0
        %v4501 = vadd.f32 0.0, %v4500
        %v4502 = vpop.f32.mrb[0].mxu0
        %4503 = vmatprep.mubr.f32.mxu0 0.0
        %4504 = vmatmul.mubr.f32.gmra.mrb[0].mxu0 %v4350
        %v4505 = vpop.f32.mrb[0].mxu0
        %v4506 = vadd.f32 0.0, %v4505
        %v4507 = vpop.f32.mrb[0].mxu0
        %4508 = vmatprep.mubr.f32.mxu0 0.0
        %4509 = vmatmul.mubr.f32.gmra.mrb[0].mxu0 %v4351
        %v4510 = vpop.f32.mrb[0].mxu0
        %v4511 = vadd.f32 0.0, %v4510
        %v4512 = vpop.f32.mrb[0].mxu0
        %4513 = vmatprep.mubr.f32.mxu0 0.0
        %4514 = vmatmul.mubr.f32.gmra.mrb[0].mxu0 %v4352
        %v4515 = vpop.f32.mrb[0].mxu0
        %v4516 = vadd.f32 0.0, %v4515
        %v4517 = vpop.f32.mrb[0].mxu0
        %4518 = vmatprep.mubr.f32.mxu0 0.0
        %4519 = vmatmul.mubr.f32.gmra.mrb[0].mxu0 %v4353
        %v4520 = vpop.f32.mrb[0].mxu0
        %v4521 = vadd.f32 0.0, %v4520
        %v4522 = vpop.f32.mrb[0].mxu0
        %4523 = vmatprep.mubr.f32.mxu0 0.0
        %4524 = vmatmul.mubr.f32.gmra.mrb[0].mxu0 %v4354
        %v4525 = vpop.f32.mrb[0].mxu0
        %v4526 = vadd.f32 0.0, %v4525
        %v4527 = vpop.f32.mrb[0].mxu0
        %4528 = vmatprep.mubr.f32.mxu0 0.0
        %4529 = vmatmul.mubr.f32.gmra.mrb[0].mxu0 %v4355
        %v4530 = vpop.f32.mrb[0].mxu0
        %v4531 = vadd.f32 0.0, %v4530
        %v4532 = vpop.f32.mrb[0].mxu0
        %4533 = vmatprep.mubr.f32.mxu0 0.0
        %4534 = vmatmul.mubr.f32.gmra.mrb[0].mxu0 %v4356
        %v4535 = vpop.f32.mrb[0].mxu0
        %v4536 = vadd.f32 0.0, %v4535
        %v4537 = vpop.f32.mrb[0].mxu0
        %4538 = vmatprep.mubr.f32.mxu0 0.0
        %4539 = vmatmul.mubr.f32.gmra.mrb[0].mxu0 %v4357
        %v4540 = vpop.f32.mrb[0].mxu0
        %v4541 = vadd.f32 0.0, %v4540
        %v4542 = vpop.f32.mrb[0].mxu0
        %4543 = vmatprep.mubr.f32.mxu0 0.0
        %4544 = vmatmul.mubr.f32.gmra.mrb[0].mxu0 %v4358
        %v4545 = vpop.f32.mrb[0].mxu0
        %v4546 = vadd.f32 0.0, %v4545
        %v4547 = vpop.f32.mrb[0].mxu0
        %4548 = vmatprep.mubr.f32.mxu0 0.0
        %4549 = vmatmul.mubr.f32.gmra.mrb[0].mxu0 %v4359
        %v4550 = vpop.f32.mrb[0].mxu0
        %v4551 = vadd.f32 0.0, %v4550
        %v4552 = vpop.f32.mrb[0].mxu0
        %4553 = vmatprep.mubr.f32.mxu0 0.0
        %4554 = vmatmul.mubr.f32.gmra.mrb[0].mxu0 %v4360
        %v4555 = vpop.f32.mrb[0].mxu0
        %v4556 = vadd.f32 0.0, %v4555
        %v4557 = vpop.f32.mrb[0].mxu0
        %4558 = vmatprep.mubr.f32.mxu0 0.0
        %4559 = vmatmul.mubr.f32.gmra.mrb[0].mxu0 %v4361
        %v4560 = vpop.f32.mrb[0].mxu0
        %v4561 = vadd.f32 0.0, %v4560
        %v4562 = vpop.f32.mrb[0].mxu0
        %4563 = vmatprep.mubr.f32.mxu0 0.0
        %4564 = vmatmul.mubr.f32.gmra.mrb[0].mxu0 %v4362
        %v4565 = vpop.f32.mrb[0].mxu0
        %v4566 = vadd.f32 0.0, %v4565
        %v4567 = vpop.f32.mrb[0].mxu0
        %4568 = vmatprep.mubr.f32.mxu0 0.0
        %4569 = vmatmul.mubr.f32.gmra.mrb[0].mxu0 %v4363
        %v4570 = vpop.f32.mrb[0].mxu0
        %v4571 = vadd.f32 0.0, %v4570
        %v4572 = vpop.f32.mrb[0].mxu0
        %4573 = vmatprep.mubr.f32.mxu0 0.0
        %4574 = vmatmul.mubr.f32.gmra.mrb[0].mxu0 %v4364
        %v4575 = vpop.f32.mrb[0].mxu0
        %v4576 = vadd.f32 0.0, %v4575
        %v4577 = vpop.f32.mrb[0].mxu0
        %4578 = vmatprep.mubr.f32.mxu0 0.0
        %4579 = vmatmul.mubr.f32.gmra.mrb[0].mxu0 %v4365
        %v4580 = vpop.f32.mrb[0].mxu0
        %v4581 = vadd.f32 0.0, %v4580
        %v4582 = vpop.f32.mrb[0].mxu0
        %4583 = vmatprep.mubr.f32.mxu0 0.0
        %4584 = vmatmul.mubr.f32.gmra.mrb[0].mxu0 %v4366
        %v4585 = vpop.f32.mrb[0].mxu0
        %v4586 = vadd.f32 0.0, %v4585
        %v4587 = vpop.f32.mrb[0].mxu0
        %4588 = vmatprep.mubr.f32.mxu0 0.0
        %4589 = vmatmul.mubr.f32.gmra.mrb[0].mxu0 %v4367
        %v4590 = vpop.f32.mrb[0].mxu0
        %v4591 = vadd.f32 0.0, %v4590
        %v4592 = vpop.f32.mrb[0].mxu0
        %4593 = vmatprep.mubr.f32.mxu0 0.0
        %4594 = vmatmul.mubr.f32.gmra.mrb[0].mxu0 %v4368
        %v4595 = vpop.f32.mrb[0].mxu0
        %v4596 = vadd.f32 0.0, %v4595
        %v4597 = vpop.f32.mrb[0].mxu0
        %4598 = vmatprep.mubr.f32.mxu0 0.0
        %4599 = vmatmul.mubr.f32.gmra.mrb[0].mxu0 %v4369
        %v4600 = vpop.f32.mrb[0].mxu0
        %v4601 = vadd.f32 0.0, %v4600
        %v4602 = vpop.f32.mrb[0].mxu0
        %4603 = vmatprep.mubr.f32.mxu0 0.0
        %4604 = vmatmul.mubr.f32.gmra.mrb[0].mxu0 %v4370
        %v4605 = vpop.f32.mrb[0].mxu0
        %v4606 = vadd.f32 0.0, %v4605
        %v4607 = vpop.f32.mrb[0].mxu0
        %4608 = vmatprep.mubr.f32.mxu0 0.0
        %4609 = vmatmul.mubr.f32.gmra.mrb[0].mxu0 %v4371
        %v4610 = vpop.f32.mrb[0].mxu0
        %v4611 = vadd.f32 0.0, %v4610
        %v4612 = vpop.f32.mrb[0].mxu0
        %4613 = vdwg.mxu0
        %v4614 = vadd.f32 %v3654, %v4456
        %v4615 = vadd.f32 %v3655, %v4461
        %v4616 = vadd.f32 %v3656, %v4466
        %v4617 = vadd.f32 %v3657, %v4471
        %v4618 = vadd.f32 %v3658, %v4476
        %v4619 = vadd.f32 %v3659, %v4481
        %v4620 = vadd.f32 %v3660, %v4486
        %v4621 = vadd.f32 %v3661, %v4491
        %v4622 = vadd.f32 %v3662, %v4496
        %v4623 = vadd.f32 %v3663, %v4501
        %v4624 = vadd.f32 %v3664, %v4506
        %v4625 = vadd.f32 %v3665, %v4511
        %v4626 = vadd.f32 %v3666, %v4516
        %v4627 = vadd.f32 %v3667, %v4521
        %v4628 = vadd.f32 %v3668, %v4526
        %v4629 = vadd.f32 %v3669, %v4531
        %v4630 = vadd.f32 %v3670, %v4536
        %v4631 = vadd.f32 %v3671, %v4541
        %v4632 = vadd.f32 %v3672, %v4546
        %v4633 = vadd.f32 %v3673, %v4551
        %v4634 = vadd.f32 %v3674, %v4556
        %v4635 = vadd.f32 %v3675, %v4561
        %v4636 = vadd.f32 %v3676, %v4566
        %v4637 = vadd.f32 %v3677, %v4571
        %v4638 = vadd.f32 %v3678, %v4576
        %v4639 = vadd.f32 %v3679, %v4581
        %v4640 = vadd.f32 %v3680, %v4586
        %v4641 = vadd.f32 %v3681, %v4591
        %v4642 = vadd.f32 %v3682, %v4596
        %v4643 = vadd.f32 %v3683, %v4601
        %v4644 = vadd.f32 %v3684, %v4606
        %v4645 = vadd.f32 %v3685, %v4611
        %v4646 = vld [vmem:[%s14] sm:$0x1]
        %v4648 = vlaneseq
        %v4649 = vshrl.u32 %v4648, 7
        %v4650 = vsub.s32 0, %v4649
        %v4651 = vrot.slane %v4646, %v4650
        %v4653 = vmul.f32 %v4614, %v4651
        %v4654 = vmul.f32 %v4615, %v4651
        %v4655 = vmul.f32 %v4616, %v4651
        %v4656 = vmul.f32 %v4617, %v4651
        %v4657 = vmul.f32 %v4618, %v4651
        %v4658 = vmul.f32 %v4619, %v4651
        %v4659 = vmul.f32 %v4620, %v4651
        %v4660 = vmul.f32 %v4621, %v4651
        %v4661 = vmul.f32 %v4622, %v4651
        %v4662 = vmul.f32 %v4623, %v4651
        %v4663 = vmul.f32 %v4624, %v4651
        %v4664 = vmul.f32 %v4625, %v4651
        %v4665 = vmul.f32 %v4626, %v4651
        %v4666 = vmul.f32 %v4627, %v4651
        %v4667 = vmul.f32 %v4628, %v4651
        %v4668 = vmul.f32 %v4629, %v4651
        %v4669 = vmul.f32 %v4630, %v4651
        %v4670 = vmul.f32 %v4631, %v4651
        %v4671 = vmul.f32 %v4632, %v4651
        %v4672 = vmul.f32 %v4633, %v4651
        %v4673 = vmul.f32 %v4634, %v4651
        %v4674 = vmul.f32 %v4635, %v4651
        %v4675 = vmul.f32 %v4636, %v4651
        %v4676 = vmul.f32 %v4637, %v4651
        %v4677 = vmul.f32 %v4638, %v4651
        %v4678 = vmul.f32 %v4639, %v4651
        %v4679 = vmul.f32 %v4640, %v4651
        %v4680 = vmul.f32 %v4641, %v4651
        %v4681 = vmul.f32 %v4642, %v4651
        %v4682 = vmul.f32 %v4643, %v4651
        %v4683 = vmul.f32 %v4644, %v4651
        %v4684 = vmul.f32 %v4645, %v4651
        %v4685 = vld [vmem:[%s15] sm:$0x1]
        %v4687 = vlaneseq
        %v4688 = vshrl.u32 %v4687, 7
        %v4689 = vsub.s32 0, %v4688
        %v4690 = vrot.slane %v4685, %v4689
        %v4692 = vadd.f32 %v4653, %v4690
        %v4693 = vadd.f32 %v4654, %v4690
        %v4694 = vadd.f32 %v4655, %v4690
        %v4695 = vadd.f32 %v4656, %v4690
        %v4696 = vadd.f32 %v4657, %v4690
        %v4697 = vadd.f32 %v4658, %v4690
        %v4698 = vadd.f32 %v4659, %v4690
        %v4699 = vadd.f32 %v4660, %v4690
        %v4700 = vadd.f32 %v4661, %v4690
        %v4701 = vadd.f32 %v4662, %v4690
        %v4702 = vadd.f32 %v4663, %v4690
        %v4703 = vadd.f32 %v4664, %v4690
        %v4704 = vadd.f32 %v4665, %v4690
        %v4705 = vadd.f32 %v4666, %v4690
        %v4706 = vadd.f32 %v4667, %v4690
        %v4707 = vadd.f32 %v4668, %v4690
        %v4708 = vadd.f32 %v4669, %v4690
        %v4709 = vadd.f32 %v4670, %v4690
        %v4710 = vadd.f32 %v4671, %v4690
        %v4711 = vadd.f32 %v4672, %v4690
        %v4712 = vadd.f32 %v4673, %v4690
        %v4713 = vadd.f32 %v4674, %v4690
        %v4714 = vadd.f32 %v4675, %v4690
        %v4715 = vadd.f32 %v4676, %v4690
        %v4716 = vadd.f32 %v4677, %v4690
        %v4717 = vadd.f32 %v4678, %v4690
        %v4718 = vadd.f32 %v4679, %v4690
        %v4719 = vadd.f32 %v4680, %v4690
        %v4720 = vadd.f32 %v4681, %v4690
        %v4721 = vadd.f32 %v4682, %v4690
        %v4722 = vadd.f32 %v4683, %v4690
        %v4723 = vadd.f32 %v4684, %v4690
        %v4724 = vmax.f32 %v4692, 0.0
        %v4725 = vmax.f32 %v4693, 0.0
        %v4726 = vmax.f32 %v4694, 0.0
        %v4727 = vmax.f32 %v4695, 0.0
        %v4728 = vmax.f32 %v4696, 0.0
        %v4729 = vmax.f32 %v4697, 0.0
        %v4730 = vmax.f32 %v4698, 0.0
        %v4731 = vmax.f32 %v4699, 0.0
        %v4732 = vmax.f32 %v4700, 0.0
        %v4733 = vmax.f32 %v4701, 0.0
        %v4734 = vmax.f32 %v4702, 0.0
        %v4735 = vmax.f32 %v4703, 0.0
        %v4736 = vmax.f32 %v4704, 0.0
        %v4737 = vmax.f32 %v4705, 0.0
        %v4738 = vmax.f32 %v4706, 0.0
        %v4739 = vmax.f32 %v4707, 0.0
        %v4740 = vmax.f32 %v4708, 0.0
        %v4741 = vmax.f32 %v4709, 0.0
        %v4742 = vmax.f32 %v4710, 0.0
        %v4743 = vmax.f32 %v4711, 0.0
        %v4744 = vmax.f32 %v4712, 0.0
        %v4745 = vmax.f32 %v4713, 0.0
        %v4746 = vmax.f32 %v4714, 0.0
        %v4747 = vmax.f32 %v4715, 0.0
        %v4748 = vmax.f32 %v4716, 0.0
        %v4749 = vmax.f32 %v4717, 0.0
        %v4750 = vmax.f32 %v4718, 0.0
        %v4751 = vmax.f32 %v4719, 0.0
        %v4752 = vmax.f32 %v4720, 0.0
        %v4753 = vmax.f32 %v4721, 0.0
        %v4754 = vmax.f32 %v4722, 0.0
        %v4755 = vmax.f32 %v4723, 0.0
        %4756 = vst [vmem:[%s514] sm:$0xff] %v4724
        %4757 = vst [vmem:[%s514 + $0x8] sm:$0xff] %v4725
        %4758 = vst [vmem:[%s514 + $0x10] sm:$0xff] %v4726
        %4759 = vst [vmem:[%s514 + $0x18] sm:$0xff] %v4727
        %4760 = vst [vmem:[%s514 + $0x20] sm:$0xff] %v4728
        %4761 = vst [vmem:[%s514 + $0x28] sm:$0xff] %v4729
        %4762 = vst [vmem:[%s514 + $0x30] sm:$0xff] %v4730
        %4763 = vst [vmem:[%s514 + $0x38] sm:$0xff] %v4731
        %4764 = vst [vmem:[%s514 + $0x40] sm:$0xff] %v4732
        %4765 = vst [vmem:[%s514 + $0x48] sm:$0xff] %v4733
        %4766 = vst [vmem:[%s514 + $0x50] sm:$0xff] %v4734
        %4767 = vst [vmem:[%s514 + $0x58] sm:$0xff] %v4735
        %4768 = vst [vmem:[%s514 + $0x60] sm:$0xff] %v4736
        %4769 = vst [vmem:[%s514 + $0x68] sm:$0xff] %v4737
        %4770 = vst [vmem:[%s514 + $0x70] sm:$0xff] %v4738
        %4771 = vst [vmem:[%s514 + $0x78] sm:$0xff] %v4739
        %4772 = vst [vmem:[%s514 + $0x80] sm:$0xff] %v4740
        %4773 = vst [vmem:[%s514 + $0x88] sm:$0xff] %v4741
        %4774 = vst [vmem:[%s514 + $0x90] sm:$0xff] %v4742
        %4775 = vst [vmem:[%s514 + $0x98] sm:$0xff] %v4743
        %4776 = vst [vmem:[%s514 + $0xa0] sm:$0xff] %v4744
        %4777 = vst [vmem:[%s514 + $0xa8] sm:$0xff] %v4745
        %4778 = vst [vmem:[%s514 + $0xb0] sm:$0xff] %v4746
        %4779 = vst [vmem:[%s514 + $0xb8] sm:$0xff] %v4747
        %4780 = vst [vmem:[%s514 + $0xc0] sm:$0xff] %v4748
        %4781 = vst [vmem:[%s514 + $0xc8] sm:$0xff] %v4749
        %4782 = vst [vmem:[%s514 + $0xd0] sm:$0xff] %v4750
        %4783 = vst [vmem:[%s514 + $0xd8] sm:$0xff] %v4751
        %4784 = vst [vmem:[%s514 + $0xe0] sm:$0xff] %v4752
        %4785 = vst [vmem:[%s514 + $0xe8] sm:$0xff] %v4753
        %4786 = vst [vmem:[%s514 + $0xf0] sm:$0xff] %v4754
        %4787 = vst [vmem:[%s514 + $0xf8] sm:$0xff] %v4755
        %s4788 = sand.u32 %s379, 1
        %s4789 = scalar_lea.sflag [#allocation4], %s4788
        %s4790 = sand.u32 %s379, 1
        %s4791 = smul.addr %s4790, 256
        %s4792 = scalar_lea.vmem [#allocation3], %s4791
        // Predicated region
        $region85: #{aspp_block_forward.1} parent=83 // pred_check
          %p4793 = pneg %p389
        $region86: #{aspp_block_forward.1} parent=83 // pred_check_branch
          %4795 = sbr.rel (%p4793) target = $region88
        $region87: #{aspp_block_forward.1} parent=83 // pred_region
          %s4797 = ssub.s32 4096, 4096
          %4798 = vsyncadd %s4789, %s4797
          %s4799 = smul.addr %s30, 32
          %s4800 = smul.addr %s4799, 128
          %s4801 = scalar_lea.hbm %s16, %s4800
          %s4802 = sshll.u32 %s4792, 4
          %s4803 = int_to_ptr.vmem [resolvable:$true] %s4802
          %4808 = dma.vmem_to_hbm [thread:$0]  %s4803, 4096, %s4801, %s4789, 128, 128, 8
        $region88: #{aspp_block_forward.1} parent=83 // pred_fallthru
          _
      $region84: #{aspp_block_forward.1} parent=5 // pred_fallthru
        _
      %p4809 = scmp.le.s32.totalorder 2, %s25
      // Predicated region
      $region89: #{aspp_block_forward.1} parent=5 // pred_check
        %p4810 = pneg %p4809
      $region90: #{aspp_block_forward.1} parent=5 // pred_check_branch
        %4812 = sbr.rel (%p4810) target = $region92
      $region91: #{aspp_block_forward.1} parent=5 // pred_region
        %s4813 = ssub.s32 %s25, 2
        // Predicated region
        $region93: #{aspp_block_forward.1} parent=91 // pred_check
          %p4814 = pneg %p395
        $region94: #{aspp_block_forward.1} parent=91 // pred_check_branch
          %4816 = sbr.rel (%p4814) target = $region96
        $region95: #{aspp_block_forward.1} parent=91 // pred_region
          %s4817 = sand.u32 %s380, 1
          %s4818 = scalar_lea.sflag [#allocation4], %s4817
          %s4819 = sand.u32 %s380, 1
          %s4820 = smul.addr %s4819, 256
          %s4821 = scalar_lea.vmem [#allocation3], %s4820
          %4822 = dma.done %s4818, 4096
        $region96: #{aspp_block_forward.1} parent=91 // pred_fallthru
          _
      $region92: #{aspp_block_forward.1} parent=5 // pred_fallthru
        _
    $region6: #{aspp_block_forward.1} parent=1 // loop_footer
      %s29 = sadd.s32 1, %s25
    $region7: #{aspp_block_forward.1} parent=1 // loop_footer_branch
      %24 = sbr.rel target = $region3
    $region8: #{aspp_block_forward.1} parent=1 // loop_exit
      _
    %4823 = vsyncpa [#allocation4], 1
    %s4824 = scalar_lea.sflag [#allocation4], 1
    %4825 = vsyncpa %s4824, 1

</llo_original>
